<compile_context>
chip_gen: v7x
topology: tpu7x:2x2x1
jax: 0.10.0
libtpu: 0.0.40
codegen_flags: <defaults>
</compile_context>

<pallas_src>
import functools

import jax
import jax.numpy as jnp
import numpy as np
from jax.experimental import pallas as pl
from jax.experimental.pallas import tpu as pltpu

_VMEM_LIMIT = 64 * 1024 * 1024


# --------------------------------------------------------------------------
# Fused conv3x3 + BN-batch-statistics kernel
# --------------------------------------------------------------------------
def _conv3x3_bn_stats_kernel(x_ref, w_ref, y_ref, sum_ref, sq_ref, *, stride, wo):
    """One output row of a 3x3 conv + per-image BN stat accumulation.

    x_ref   : (1, Hp*stride, Wps, Cin) bf16  phase-split padded image (resident per image)
              row index = h_pad * stride + (w phase);  column j <-> padded col j*stride+phase
    w_ref   : (9, Cin, Cout)           bf16  taps ordered (kh, kw)
    y_ref   : (1, 1, Wo, Cout)         bf16  conv output row
    sum_ref : (1, 1, Cout)             f32   per-image sum accumulator   (resident)
    sq_ref  : (1, 1, Cout)             f32   per-image sum-sq accumulator (resident)
    """
    r = pl.program_id(1)

    @pl.when(r == 0)
    def _init():
        sum_ref[...] = jnp.zeros_like(sum_ref)
        sq_ref[...] = jnp.zeros_like(sq_ref)

    cout = w_ref.shape[-1]
    acc = jnp.zeros((wo, cout), jnp.float32)
    # 9 shifted taps, fully fused im2col: contiguous slices only (stride handled by
    # the host-side phase split), f32 accumulation on the MXU.
    for di in range(3):
        for dj in range(3):
            row = (r * stride + di) * stride + (dj % stride)
            tap = x_ref[0, row, pl.ds(dj // stride, wo), :]
            acc = acc + jnp.dot(tap, w_ref[di * 3 + dj],
                                preferred_element_type=jnp.float32)

    y_ref[...] = acc.reshape(1, 1, wo, cout).astype(y_ref.dtype)
    sum_ref[...] += jnp.sum(acc, axis=0, keepdims=True).reshape(1, 1, cout)
    sq_ref[...] += jnp.sum(acc * acc, axis=0, keepdims=True).reshape(1, 1, cout)


def _phase_split(xp, stride):
    """(N, Hp, Wp, C) padded bf16 image -> (N, Hp*stride, ceil(Wp/stride), C).

    Row index = h*stride + phase; column j of phase p is padded column j*stride+p.
    For stride == 1 this is the identity (free).  One small pass over the (small)
    conv input; it lets the kernel use only contiguous slices.
    """
    if stride == 1:
        return xp
    N, Hp, Wp, C = xp.shape
    Wps = pl.cdiv(Wp, stride) * stride
    if Wps != Wp:
        xp = jnp.pad(xp, ((0, 0), (0, 0), (0, Wps - Wp), (0, 0)))
    xs = xp.reshape(N, Hp, Wps // stride, stride, C).transpose(0, 1, 3, 2, 4)
    return xs.reshape(N, Hp * stride, Wps // stride, C)


def conv3x3_bn_stats(x_phased, w9, stride, Ho, Wo):
    """Fused conv + BN-stat accumulation.  Returns (y[N,Ho,Wo,Cout] bf16,
    per-image channel sums (N,1,Cout) f32, per-image channel sum-sq (N,1,Cout) f32)."""
    N, Hrows, Wps, Cin = x_phased.shape
    Cout = w9.shape[-1]
    kern = functools.partial(_conv3x3_bn_stats_kernel, stride=stride, wo=Wo)
    y, ssum, ssq = pl.pallas_call(
        kern,
        out_shape=(jax.ShapeDtypeStruct((N, Ho, Wo, Cout), jnp.bfloat16),
                   jax.ShapeDtypeStruct((N, 1, Cout), jnp.float32),
                   jax.ShapeDtypeStruct((N, 1, Cout), jnp.float32)),
        grid=(N, Ho),
        in_specs=[
            # whole phase-split image resident in VMEM across the row axis
            pl.BlockSpec((1, Hrows, Wps, Cin), lambda n, r: (n, 0, 0, 0)),
            pl.BlockSpec((9, Cin, Cout), lambda n, r: (0, 0, 0)),
        ],
        out_specs=(
            pl.BlockSpec((1, 1, Wo, Cout), lambda n, r: (n, r, 0, 0)),
            pl.BlockSpec((1, 1, Cout), lambda n, r: (n, 0, 0)),   # resident accumulator
            pl.BlockSpec((1, 1, Cout), lambda n, r: (n, 0, 0)),   # resident accumulator
        ),
        compiler_params=pltpu.CompilerParams(
            dimension_semantics=("parallel", "arbitrary"),
            vmem_limit_bytes=_VMEM_LIMIT),
    )(x_phased, w9)
    return y, ssum, ssq


def _prep_w(w_oihw):
    """OIHW f32 -> (9, Cin, Cout) bf16, taps ordered (kh, kw)."""
    cout, cin, kh, kw = w_oihw.shape
    return jnp.transpose(w_oihw, (2, 3, 1, 0)).reshape(kh * kw, cin, cout).astype(jnp.bfloat16)


def bn_scale_bias_from_stats(ssum, ssq, count, gamma, beta, eps=1e-5):
    """Tiny (C,)-sized finalization of the fused per-image stats (plain JAX)."""
    s = jnp.sum(ssum, axis=0).reshape(-1)
    q = jnp.sum(ssq, axis=0).reshape(-1)
    mean = s / count
    var = jnp.maximum(q / count - mean * mean, 0.0)   # biased variance (training-mode BN)
    scale = gamma / jnp.sqrt(var + eps)
    bias = beta - mean * scale
    return scale, bias


# --------------------------------------------------------------------------
# Fused BN-affine (+ residual affine / residual) + ReLU elementwise kernels
# --------------------------------------------------------------------------
def _affine_relu_kernel(y_ref, s_ref, b_ref, o_ref):
    a = y_ref[...].astype(jnp.float32) * s_ref[...] + b_ref[...]
    o_ref[...] = jnp.maximum(a, 0.0).astype(o_ref.dtype)


def _affine2_add_relu_kernel(y_ref, s_ref, b_ref, r_ref, rs_ref, rb_ref, o_ref):
    a = y_ref[...].astype(jnp.float32) * s_ref[...] + b_ref[...]
    a = a + r_ref[...].astype(jnp.float32) * rs_ref[...] + rb_ref[...]
    o_ref[...] = jnp.maximum(a, 0.0).astype(o_ref.dtype)


def _affine_add_relu_kernel(y_ref, s_ref, b_ref, r_ref, o_ref):
    a = y_ref[...].astype(jnp.float32) * s_ref[...] + b_ref[...] + r_ref[...].astype(jnp.float32)
    o_ref[...] = jnp.maximum(a, 0.0).astype(o_ref.dtype)


def _dense_layout(total, C):
    """Pick a lane-dense (rows, lanes) view of a channel-minor (M, C) slab."""
    if C % 128 == 0:
        return total // C, C, 1           # already lane-dense
    if (128 % C == 0) and (total % 128 == 0):
        L = 128
        while (L * 2 <= 1024) and (total % (L * 2) == 0) and (total // (L * 2) >= 8):
            L *= 2
        return total // L, L, L // C
    # TODO(synk): narrow-lane fallback (masked stores) for channel counts that
    # neither divide 128 nor are a multiple of 128.
    return total // C, C, 1


def fused_bn_add_relu(y, scale, bias, residual=None, res_scale=None, res_bias=None,
                      out_dtype=jnp.float32, row_tile=512):
    """out = relu(y*scale+bias [+ residual*res_scale+res_bias | + residual]).

    y/residual: (M, C) channel-minor slabs; scale/bias/res_*: (C,) f32.
    Runs over a lane-dense (R, L) view (L a multiple of 128 when possible)."""
    M, C = y.shape
    R, L, reps = _dense_layout(M * C, C)

    y2 = y.reshape(R, L)                                    # free, contiguous
    s_row = jnp.tile(scale.astype(jnp.float32), reps).reshape(1, L)
    b_row = jnp.tile(bias.astype(jnp.float32), reps).reshape(1, L)

    tr = min(row_tile, R)
    grid = (pl.cdiv(R, tr),)
    row_spec = pl.BlockSpec((tr, L), lambda i: (i, 0))
    const_spec = pl.BlockSpec((1, L), lambda i: (0, 0))
    cp = pltpu.CompilerParams(dimension_semantics=("parallel",),
                              vmem_limit_bytes=_VMEM_LIMIT)

    if residual is None:
        out = pl.pallas_call(
            _affine_relu_kernel,
            out_shape=jax.ShapeDtypeStruct((R, L), out_dtype),
            grid=grid,
            in_specs=[row_spec, const_spec, const_spec],
            out_specs=row_spec,
            compiler_params=cp,
        )(y2, s_row, b_row)
    elif res_scale is not None:
        r2 = residual.reshape(R, L)
        rs_row = jnp.tile(res_scale.astype(jnp.float32), reps).reshape(1, L)
        rb_row = jnp.tile(res_bias.astype(jnp.float32), reps).reshape(1, L)
        out = pl.pallas_call(
            _affine2_add_relu_kernel,
            out_shape=jax.ShapeDtypeStruct((R, L), out_dtype),
            grid=grid,
            in_specs=[row_spec, const_spec, const_spec, row_spec, const_spec, const_spec],
            out_specs=row_spec,
            compiler_params=cp,
        )(y2, s_row, b_row, r2, rs_row, rb_row)
    else:
        r2 = residual.reshape(R, L)
        out = pl.pallas_call(
            _affine_add_relu_kernel,
            out_shape=jax.ShapeDtypeStruct((R, L), out_dtype),
            grid=grid,
            in_specs=[row_spec, const_spec, const_spec, row_spec],
            out_specs=row_spec,
            compiler_params=cp,
        )(y2, s_row, b_row, r2)
    return out.reshape(M, C)


# --------------------------------------------------------------------------
# ResNetBlock forward (Pallas)
# --------------------------------------------------------------------------
def resnet_block_forward(x_nchw, params, stride):
    N, Cin, H, W = x_nchw.shape
    Cout = params["w1"].shape[0]
    Ho = (H + 2 - 3) // stride + 1
    Wo = (W + 2 - 3) // stride + 1
    cnt = N * Ho * Wo

    # NCHW -> NHWC + conv zero-pad + bf16 cast: one small pass over the input.
    # TODO(synk): the boundary transposes are layout plumbing left to XLA.
    x_nhwc = jnp.transpose(x_nchw, (0, 2, 3, 1)).astype(jnp.float32)
    xp = jnp.pad(x_nhwc, ((0, 0), (1, 1), (1, 1), (0, 0))).astype(jnp.bfloat16)
    xps = _phase_split(xp, stride)          # shared by conv1 and the shortcut conv

    w1 = _prep_w(params["w1"])
    w2 = _prep_w(params["w2"])

    # conv1 (+ fused BN stats) -> BN affine + ReLU (no residual materialized)
    y1, s1, q1 = conv3x3_bn_stats(xps, w1, stride, Ho, Wo)
    sc1, bi1 = bn_scale_bias_from_stats(s1, q1, cnt, params["g1"], params["bt1"])
    h1 = fused_bn_add_relu(y1.reshape(cnt, Cout), sc1, bi1, out_dtype=jnp.bfloat16)

    # conv2 (+ fused BN stats), stride 1
    h1p = jnp.pad(h1.reshape(N, Ho, Wo, Cout), ((0, 0), (1, 1), (1, 1), (0, 0)))
    y2, s2, q2 = conv3x3_bn_stats(h1p, w2, 1, Ho, Wo)
    sc2, bi2 = bn_scale_bias_from_stats(s2, q2, cnt, params["g2"], params["bt2"])

    if "ws" in params:
        # conv shortcut: fuse its BN affine directly into the final kernel
        ws = _prep_w(params["ws"])
        ys, ss, qs = conv3x3_bn_stats(xps, ws, stride, Ho, Wo)
        scs, bis = bn_scale_bias_from_stats(ss, qs, cnt, params["gs"], params["bts"])
        out2d = fused_bn_add_relu(y2.reshape(cnt, Cout), sc2, bi2,
                                  residual=ys.reshape(cnt, Cout),
                                  res_scale=scs, res_bias=bis,
                                  out_dtype=jnp.float32)
    else:
        # identity shortcut (stride == 1 and Cin == Cout)
        res = x_nhwc.reshape(cnt, Cout)
        out2d = fused_bn_add_relu(y2.reshape(cnt, Cout), sc2, bi2,
                                  residual=res, out_dtype=jnp.float32)

    out_nhwc = out2d.reshape(N, Ho, Wo, Cout)
    return jnp.transpose(out_nhwc, (0, 3, 1, 2))  # back to NCHW


# --------------------------------------------------------------------------
# Pure-JAX reference (training-mode BatchNorm, matching a fresh nn.Module)
# --------------------------------------------------------------------------
def ref_forward(x_nchw, params, stride):
    def conv(x, w, s):
        return jax.lax.conv_general_dilated(
            x, w, (s, s), ((1, 1), (1, 1)),
            dimension_numbers=("NCHW", "OIHW", "NCHW"))

    def bn(x, g, b, eps=1e-5):
        mean = jnp.mean(x, axis=(0, 2, 3), keepdims=True)
        var = jnp.mean((x - mean) ** 2, axis=(0, 2, 3), keepdims=True)
        return (x - mean) / jnp.sqrt(var + eps) * g.reshape(1, -1, 1, 1) + b.reshape(1, -1, 1, 1)

    out = jax.nn.relu(bn(conv(x_nchw, params["w1"], stride), params["g1"], params["bt1"]))
    out = bn(conv(out, params["w2"], 1), params["g2"], params["bt2"])
    if "ws" in params:
        sc = bn(conv(x_nchw, params["ws"], stride), params["gs"], params["bts"])
    else:
        sc = x_nchw
    return jax.nn.relu(out + sc)


if __name__ == "__main__":
    N, H, W = 2, 16, 16
    key = jax.random.PRNGKey(0)
    k1, k2, k3, k4, k5, kx, kx2 = jax.random.split(key, 7)

    fwd = jax.jit(resnet_block_forward, static_argnames=("stride",))

    # ---- case 1: downsampling block (stride=2, in_c != out_c -> conv+BN shortcut)
    in_c, out_c, stride = 4, 8, 2
    params = {
        "w1": 0.1 * jax.random.normal(k1, (out_c, in_c, 3, 3), jnp.float32),
        "g1": jnp.ones((out_c,), jnp.float32),
        "bt1": jnp.zeros((out_c,), jnp.float32),
        "w2": 0.1 * jax.random.normal(k2, (out_c, out_c, 3, 3), jnp.float32),
        "g2": jnp.ones((out_c,), jnp.float32),
        "bt2": jnp.zeros((out_c,), jnp.float32),
        "ws": 0.1 * jax.random.normal(k3, (out_c, in_c, 3, 3), jnp.float32),
        "gs": jnp.ones((out_c,), jnp.float32),
        "bts": jnp.zeros((out_c,), jnp.float32),
    }
    x = jax.random.normal(kx, (N, in_c, H, W), jnp.float32)

    out = jax.block_until_ready(fwd(x, params, stride=stride))
    ref = jax.block_until_ready(ref_forward(x, params, stride))
    assert out.shape == ref.shape == (N, out_c, H // stride, W // stride)
    np.testing.assert_allclose(np.asarray(out), np.asarray(ref), atol=5e-2, rtol=5e-2)

    # ---- case 2: identity-shortcut block (stride=1, in_c == out_c)
    params_id = {
        "w1": 0.1 * jax.random.normal(k4, (out_c, out_c, 3, 3), jnp.float32),
        "g1": jnp.ones((out_c,), jnp.float32),
        "bt1": jnp.zeros((out_c,), jnp.float32),
        "w2": 0.1 * jax.random.normal(k5, (out_c, out_c, 3, 3), jnp.float32),
        "g2": jnp.ones((out_c,), jnp.float32),
        "bt2": jnp.zeros((out_c,), jnp.float32),
    }
    x2 = jax.random.normal(kx2, (N, out_c, H, W), jnp.float32)

    out2 = jax.block_until_ready(fwd(x2, params_id, stride=1))
    ref2 = jax.block_until_ready(ref_forward(x2, params_id, 1))
    assert out2.shape == ref2.shape == (N, out_c, H, W)
    np.testing.assert_allclose(np.asarray(out2), np.asarray(ref2), atol=5e-2, rtol=5e-2)

    print("KERNEL_OK")
</pallas_src>

<mosaic_0001>
module attributes {stable_mosaic.version = 11 : i64} {
  func.func @_conv3x3_bn_stats_kernel(%arg0: i32, %arg1: i32, %arg2: memref<1x36x9x4xbf16, #tpu.memory_space<vmem>>, %arg3: memref<9x4x8xbf16, #tpu.memory_space<vmem>>, %arg4: memref<1x1x8x8xbf16, #tpu.memory_space<vmem>>, %arg5: memref<1x1x8xf32, #tpu.memory_space<vmem>>, %arg6: memref<1x1x8xf32, #tpu.memory_space<vmem>>) attributes {dimension_semantics = [#tpu.dimension_semantics<parallel>, #tpu.dimension_semantics<arbitrary>], iteration_bounds = array<i64: 2, 8>, scalar_prefetch = 0 : i64, scratch_operands = 0 : i64, tpu.core_type = #tpu.core_type<tc>, window_params = [{transform_indices = @transform_0, window_bounds = array<i64: 1, 36, 9, 4>}, {pipeline_mode = #tpu.pipeline_mode<synchronous>, transform_indices = @transform_1, window_bounds = array<i64: 9, 4, 8>}, {transform_indices = @transform_2, window_bounds = array<i64: 1, 1, 8, 8>}, {transform_indices = @transform_3, window_bounds = array<i64: 1, 1, 8>}, {transform_indices = @transform_4, window_bounds = array<i64: 1, 1, 8>}]} {
    %c0_i32 = arith.constant 0 : i32
    %0 = arith.cmpi eq, %arg1, %c0_i32 : i32
    %1 = arith.extui %0 : i1 to i32
    %c0_i32_0 = arith.constant 0 : i32
    %2 = arith.cmpi ne, %1, %c0_i32_0 : i32
    scf.if %2 {
      %cst_107 = arith.constant 0.000000e+00 : f32
      %119 = vector.broadcast %cst_107 : f32 to vector<1x1x8xf32>
      %c0_108 = arith.constant 0 : index
      %c0_109 = arith.constant 0 : index
      %c0_110 = arith.constant 0 : index
      %120 = vector.load %arg5[%c0_108, %c0_109, %c0_110] : memref<1x1x8xf32, #tpu.memory_space<vmem>>, vector<1x1x8xf32>
      tpu.vector_store %arg5[%c0_108, %c0_109, %c0_110], %119 {strides = array<i32>} : memref<1x1x8xf32, #tpu.memory_space<vmem>>, vector<1x1x8xf32>,
      %cst_111 = arith.constant 0.000000e+00 : f32
      %121 = vector.broadcast %cst_111 : f32 to vector<1x1x8xf32>
      %c0_112 = arith.constant 0 : index
      %c0_113 = arith.constant 0 : index
      %c0_114 = arith.constant 0 : index
      %122 = vector.load %arg6[%c0_112, %c0_113, %c0_114] : memref<1x1x8xf32, #tpu.memory_space<vmem>>, vector<1x1x8xf32>
      tpu.vector_store %arg6[%c0_112, %c0_113, %c0_114], %121 {strides = array<i32>} : memref<1x1x8xf32, #tpu.memory_space<vmem>>, vector<1x1x8xf32>,
    } else {
    }
    %cst = arith.constant 0.000000e+00 : f32
    %3 = vector.broadcast %cst : f32 to vector<8x8xf32>
    %c2_i32 = arith.constant 2 : i32
    %4 = arith.muli %arg1, %c2_i32 : i32
    %c0_i32_1 = arith.constant 0 : i32
    %5 = arith.addi %4, %c0_i32_1 : i32
    %c2_i32_2 = arith.constant 2 : i32
    %6 = arith.muli %5, %c2_i32_2 : i32
    %c0_i32_3 = arith.constant 0 : i32
    %7 = arith.addi %6, %c0_i32_3 : i32
    %c0 = arith.constant 0 : index
    %8 = arith.index_cast %7 : i32 to index
    %c0_4 = arith.constant 0 : index
    %c0_5 = arith.constant 0 : index
    %9 = vector.load %arg2[%c0, %8, %c0_4, %c0_5] : memref<1x36x9x4xbf16, #tpu.memory_space<vmem>>, vector<1x1x8x4xbf16>
    %10 = vector.shape_cast %9 : vector<1x1x8x4xbf16> to vector<8x4xbf16>
    %c0_6 = arith.constant 0 : index
    %c0_7 = arith.constant 0 : index
    %c0_8 = arith.constant 0 : index
    %11 = vector.load %arg3[%c0_6, %c0_7, %c0_8] : memref<9x4x8xbf16, #tpu.memory_space<vmem>>, vector<1x4x8xbf16>
    %12 = vector.shape_cast %11 : vector<1x4x8xbf16> to vector<4x8xbf16>
    %cst_9 = arith.constant dense<0.000000e+00> : vector<8x8xf32>
    %13 = tpu.matmul %10, %12, %cst_9 {dimension_numbers = #tpu.dot_dimension_numbers<[1], [0], [0], [1], [0, 0, 1, 1], [], []>} : vector<8x4xbf16>, vector<4x8xbf16>, vector<8x8xf32> -> vector<8x8xf32>
    %14 = arith.addf %3, %13 : vector<8x8xf32>
    %c2_i32_10 = arith.constant 2 : i32
    %15 = arith.muli %arg1, %c2_i32_10 : i32
    %c0_i32_11 = arith.constant 0 : i32
    %16 = arith.addi %15, %c0_i32_11 : i32
    %c2_i32_12 = arith.constant 2 : i32
    %17 = arith.muli %16, %c2_i32_12 : i32
    %c1_i32 = arith.constant 1 : i32
    %18 = arith.addi %17, %c1_i32 : i32
    %c0_13 = arith.constant 0 : index
    %19 = arith.index_cast %18 : i32 to index
    %c0_14 = arith.constant 0 : index
    %c0_15 = arith.constant 0 : index
    %20 = vector.load %arg2[%c0_13, %19, %c0_14, %c0_15] : memref<1x36x9x4xbf16, #tpu.memory_space<vmem>>, vector<1x1x8x4xbf16>
    %21 = vector.shape_cast %20 : vector<1x1x8x4xbf16> to vector<8x4xbf16>
    %c1 = arith.constant 1 : index
    %c0_16 = arith.constant 0 : index
    %c0_17 = arith.constant 0 : index
    %22 = vector.load %arg3[%c1, %c0_16, %c0_17] : memref<9x4x8xbf16, #tpu.memory_space<vmem>>, vector<1x4x8xbf16>
    %23 = vector.shape_cast %22 : vector<1x4x8xbf16> to vector<4x8xbf16>
    %cst_18 = arith.constant dense<0.000000e+00> : vector<8x8xf32>
    %24 = tpu.matmul %21, %23, %cst_18 {dimension_numbers = #tpu.dot_dimension_numbers<[1], [0], [0], [1], [0, 0, 1, 1], [], []>} : vector<8x4xbf16>, vector<4x8xbf16>, vector<8x8xf32> -> vector<8x8xf32>
    %25 = arith.addf %14, %24 : vector<8x8xf32>
    %c2_i32_19 = arith.constant 2 : i32
    %26 = arith.muli %arg1, %c2_i32_19 : i32
    %c0_i32_20 = arith.constant 0 : i32
    %27 = arith.addi %26, %c0_i32_20 : i32
    %c2_i32_21 = arith.constant 2 : i32
    %28 = arith.muli %27, %c2_i32_21 : i32
    %c0_i32_22 = arith.constant 0 : i32
    %29 = arith.addi %28, %c0_i32_22 : i32
    %c0_23 = arith.constant 0 : index
    %30 = arith.index_cast %29 : i32 to index
    %c1_24 = arith.constant 1 : index
    %c0_25 = arith.constant 0 : index
    %31 = vector.load %arg2[%c0_23, %30, %c1_24, %c0_25] : memref<1x36x9x4xbf16, #tpu.memory_space<vmem>>, vector<1x1x8x4xbf16>
    %32 = vector.shape_cast %31 : vector<1x1x8x4xbf16> to vector<8x4xbf16>
    %c2 = arith.constant 2 : index
    %c0_26 = arith.constant 0 : index
    %c0_27 = arith.constant 0 : index
    %33 = vector.load %arg3[%c2, %c0_26, %c0_27] : memref<9x4x8xbf16, #tpu.memory_space<vmem>>, vector<1x4x8xbf16>
    %34 = vector.shape_cast %33 : vector<1x4x8xbf16> to vector<4x8xbf16>
    %cst_28 = arith.constant dense<0.000000e+00> : vector<8x8xf32>
    %35 = tpu.matmul %32, %34, %cst_28 {dimension_numbers = #tpu.dot_dimension_numbers<[1], [0], [0], [1], [0, 0, 1, 1], [], []>} : vector<8x4xbf16>, vector<4x8xbf16>, vector<8x8xf32> -> vector<8x8xf32>
    %36 = arith.addf %25, %35 : vector<8x8xf32>
    %c2_i32_29 = arith.constant 2 : i32
    %37 = arith.muli %arg1, %c2_i32_29 : i32
    %c1_i32_30 = arith.constant 1 : i32
    %38 = arith.addi %37, %c1_i32_30 : i32
    %c2_i32_31 = arith.constant 2 : i32
    %39 = arith.muli %38, %c2_i32_31 : i32
    %c0_i32_32 = arith.constant 0 : i32
    %40 = arith.addi %39, %c0_i32_32 : i32
    %c0_33 = arith.constant 0 : index
    %41 = arith.index_cast %40 : i32 to index
    %c0_34 = arith.constant 0 : index
    %c0_35 = arith.constant 0 : index
    %42 = vector.load %arg2[%c0_33, %41, %c0_34, %c0_35] : memref<1x36x9x4xbf16, #tpu.memory_space<vmem>>, vector<1x1x8x4xbf16>
    %43 = vector.shape_cast %42 : vector<1x1x8x4xbf16> to vector<8x4xbf16>
    %c3 = arith.constant 3 : index
    %c0_36 = arith.constant 0 : index
    %c0_37 = arith.constant 0 : index
    %44 = vector.load %arg3[%c3, %c0_36, %c0_37] : memref<9x4x8xbf16, #tpu.memory_space<vmem>>, vector<1x4x8xbf16>
    %45 = vector.shape_cast %44 : vector<1x4x8xbf16> to vector<4x8xbf16>
    %cst_38 = arith.constant dense<0.000000e+00> : vector<8x8xf32>
    %46 = tpu.matmul %43, %45, %cst_38 {dimension_numbers = #tpu.dot_dimension_numbers<[1], [0], [0], [1], [0, 0, 1, 1], [], []>} : vector<8x4xbf16>, vector<4x8xbf16>, vector<8x8xf32> -> vector<8x8xf32>
    %47 = arith.addf %36, %46 : vector<8x8xf32>
    %c2_i32_39 = arith.constant 2 : i32
    %48 = arith.muli %arg1, %c2_i32_39 : i32
    %c1_i32_40 = arith.constant 1 : i32
    %49 = arith.addi %48, %c1_i32_40 : i32
    %c2_i32_41 = arith.constant 2 : i32
    %50 = arith.muli %49, %c2_i32_41 : i32
    %c1_i32_42 = arith.constant 1 : i32
    %51 = arith.addi %50, %c1_i32_42 : i32
    %c0_43 = arith.constant 0 : index
    %52 = arith.index_cast %51 : i32 to index
    %c0_44 = arith.constant 0 : index
    %c0_45 = arith.constant 0 : index
    %53 = vector.load %arg2[%c0_43, %52, %c0_44, %c0_45] : memref<1x36x9x4xbf16, #tpu.memory_space<vmem>>, vector<1x1x8x4xbf16>
    %54 = vector.shape_cast %53 : vector<1x1x8x4xbf16> to vector<8x4xbf16>
    %c4 = arith.constant 4 : index
    %c0_46 = arith.constant 0 : index
    %c0_47 = arith.constant 0 : index
    %55 = vector.load %arg3[%c4, %c0_46, %c0_47] : memref<9x4x8xbf16, #tpu.memory_space<vmem>>, vector<1x4x8xbf16>
    %56 = vector.shape_cast %55 : vector<1x4x8xbf16> to vector<4x8xbf16>
    %cst_48 = arith.constant dense<0.000000e+00> : vector<8x8xf32>
    %57 = tpu.matmul %54, %56, %cst_48 {dimension_numbers = #tpu.dot_dimension_numbers<[1], [0], [0], [1], [0, 0, 1, 1], [], []>} : vector<8x4xbf16>, vector<4x8xbf16>, vector<8x8xf32> -> vector<8x8xf32>
    %58 = arith.addf %47, %57 : vector<8x8xf32>
    %c2_i32_49 = arith.constant 2 : i32
    %59 = arith.muli %arg1, %c2_i32_49 : i32
    %c1_i32_50 = arith.constant 1 : i32
    %60 = arith.addi %59, %c1_i32_50 : i32
    %c2_i32_51 = arith.constant 2 : i32
    %61 = arith.muli %60, %c2_i32_51 : i32
    %c0_i32_52 = arith.constant 0 : i32
    %62 = arith.addi %61, %c0_i32_52 : i32
    %c0_53 = arith.constant 0 : index
    %63 = arith.index_cast %62 : i32 to index
    %c1_54 = arith.constant 1 : index
    %c0_55 = arith.constant 0 : index
    %64 = vector.load %arg2[%c0_53, %63, %c1_54, %c0_55] : memref<1x36x9x4xbf16, #tpu.memory_space<vmem>>, vector<1x1x8x4xbf16>
    %65 = vector.shape_cast %64 : vector<1x1x8x4xbf16> to vector<8x4xbf16>
    %c5 = arith.constant 5 : index
    %c0_56 = arith.constant 0 : index
    %c0_57 = arith.constant 0 : index
    %66 = vector.load %arg3[%c5, %c0_56, %c0_57] : memref<9x4x8xbf16, #tpu.memory_space<vmem>>, vector<1x4x8xbf16>
    %67 = vector.shape_cast %66 : vector<1x4x8xbf16> to vector<4x8xbf16>
    %cst_58 = arith.constant dense<0.000000e+00> : vector<8x8xf32>
    %68 = tpu.matmul %65, %67, %cst_58 {dimension_numbers = #tpu.dot_dimension_numbers<[1], [0], [0], [1], [0, 0, 1, 1], [], []>} : vector<8x4xbf16>, vector<4x8xbf16>, vector<8x8xf32> -> vector<8x8xf32>
    %69 = arith.addf %58, %68 : vector<8x8xf32>
    %c2_i32_59 = arith.constant 2 : i32
    %70 = arith.muli %arg1, %c2_i32_59 : i32
    %c2_i32_60 = arith.constant 2 : i32
    %71 = arith.addi %70, %c2_i32_60 : i32
    %c2_i32_61 = arith.constant 2 : i32
    %72 = arith.muli %71, %c2_i32_61 : i32
    %c0_i32_62 = arith.constant 0 : i32
    %73 = arith.addi %72, %c0_i32_62 : i32
    %c0_63 = arith.constant 0 : index
    %74 = arith.index_cast %73 : i32 to index
    %c0_64 = arith.constant 0 : index
    %c0_65 = arith.constant 0 : index
    %75 = vector.load %arg2[%c0_63, %74, %c0_64, %c0_65] : memref<1x36x9x4xbf16, #tpu.memory_space<vmem>>, vector<1x1x8x4xbf16>
    %76 = vector.shape_cast %75 : vector<1x1x8x4xbf16> to vector<8x4xbf16>
    %c6 = arith.constant 6 : index
    %c0_66 = arith.constant 0 : index
    %c0_67 = arith.constant 0 : index
    %77 = vector.load %arg3[%c6, %c0_66, %c0_67] : memref<9x4x8xbf16, #tpu.memory_space<vmem>>, vector<1x4x8xbf16>
    %78 = vector.shape_cast %77 : vector<1x4x8xbf16> to vector<4x8xbf16>
    %cst_68 = arith.constant dense<0.000000e+00> : vector<8x8xf32>
    %79 = tpu.matmul %76, %78, %cst_68 {dimension_numbers = #tpu.dot_dimension_numbers<[1], [0], [0], [1], [0, 0, 1, 1], [], []>} : vector<8x4xbf16>, vector<4x8xbf16>, vector<8x8xf32> -> vector<8x8xf32>
    %80 = arith.addf %69, %79 : vector<8x8xf32>
    %c2_i32_69 = arith.constant 2 : i32
    %81 = arith.muli %arg1, %c2_i32_69 : i32
    %c2_i32_70 = arith.constant 2 : i32
    %82 = arith.addi %81, %c2_i32_70 : i32
    %c2_i32_71 = arith.constant 2 : i32
    %83 = arith.muli %82, %c2_i32_71 : i32
    %c1_i32_72 = arith.constant 1 : i32
    %84 = arith.addi %83, %c1_i32_72 : i32
    %c0_73 = arith.constant 0 : index
    %85 = arith.index_cast %84 : i32 to index
    %c0_74 = arith.constant 0 : index
    %c0_75 = arith.constant 0 : index
    %86 = vector.load %arg2[%c0_73, %85, %c0_74, %c0_75] : memref<1x36x9x4xbf16, #tpu.memory_space<vmem>>, vector<1x1x8x4xbf16>
    %87 = vector.shape_cast %86 : vector<1x1x8x4xbf16> to vector<8x4xbf16>
    %c7 = arith.constant 7 : index
    %c0_76 = arith.constant 0 : index
    %c0_77 = arith.constant 0 : index
    %88 = vector.load %arg3[%c7, %c0_76, %c0_77] : memref<9x4x8xbf16, #tpu.memory_space<vmem>>, vector<1x4x8xbf16>
    %89 = vector.shape_cast %88 : vector<1x4x8xbf16> to vector<4x8xbf16>
    %cst_78 = arith.constant dense<0.000000e+00> : vector<8x8xf32>
    %90 = tpu.matmul %87, %89, %cst_78 {dimension_numbers = #tpu.dot_dimension_numbers<[1], [0], [0], [1], [0, 0, 1, 1], [], []>} : vector<8x4xbf16>, vector<4x8xbf16>, vector<8x8xf32> -> vector<8x8xf32>
    %91 = arith.addf %80, %90 : vector<8x8xf32>
    %c2_i32_79 = arith.constant 2 : i32
    %92 = arith.muli %arg1, %c2_i32_79 : i32
    %c2_i32_80 = arith.constant 2 : i32
    %93 = arith.addi %92, %c2_i32_80 : i32
    %c2_i32_81 = arith.constant 2 : i32
    %94 = arith.muli %93, %c2_i32_81 : i32
    %c0_i32_82 = arith.constant 0 : i32
    %95 = arith.addi %94, %c0_i32_82 : i32
    %c0_83 = arith.constant 0 : index
    %96 = arith.index_cast %95 : i32 to index
    %c1_84 = arith.constant 1 : index
    %c0_85 = arith.constant 0 : index
    %97 = vector.load %arg2[%c0_83, %96, %c1_84, %c0_85] : memref<1x36x9x4xbf16, #tpu.memory_space<vmem>>, vector<1x1x8x4xbf16>
    %98 = vector.shape_cast %97 : vector<1x1x8x4xbf16> to vector<8x4xbf16>
    %c8 = arith.constant 8 : index
    %c0_86 = arith.constant 0 : index
    %c0_87 = arith.constant 0 : index
    %99 = vector.load %arg3[%c8, %c0_86, %c0_87] : memref<9x4x8xbf16, #tpu.memory_space<vmem>>, vector<1x4x8xbf16>
    %100 = vector.shape_cast %99 : vector<1x4x8xbf16> to vector<4x8xbf16>
    %cst_88 = arith.constant dense<0.000000e+00> : vector<8x8xf32>
    %101 = tpu.matmul %98, %100, %cst_88 {dimension_numbers = #tpu.dot_dimension_numbers<[1], [0], [0], [1], [0, 0, 1, 1], [], []>} : vector<8x4xbf16>, vector<4x8xbf16>, vector<8x8xf32> -> vector<8x8xf32>
    %102 = arith.addf %91, %101 : vector<8x8xf32>
    %103 = vector.shape_cast %102 : vector<8x8xf32> to vector<1x1x8x8xf32>
    %104 = arith.truncf %103 : vector<1x1x8x8xf32> to vector<1x1x8x8xbf16>
    %c0_89 = arith.constant 0 : index
    %c0_90 = arith.constant 0 : index
    %c0_91 = arith.constant 0 : index
    %c0_92 = arith.constant 0 : index
    %105 = vector.load %arg4[%c0_89, %c0_90, %c0_91, %c0_92] : memref<1x1x8x8xbf16, #tpu.memory_space<vmem>>, vector<1x1x8x8xbf16>
    tpu.vector_store %arg4[%c0_89, %c0_90, %c0_91, %c0_92], %104 {strides = array<i32>} : memref<1x1x8x8xbf16, #tpu.memory_space<vmem>>, vector<1x1x8x8xbf16>,
    %c0_93 = arith.constant 0 : index
    %c0_94 = arith.constant 0 : index
    %c0_95 = arith.constant 0 : index
    %106 = vector.load %arg5[%c0_93, %c0_94, %c0_95] : memref<1x1x8xf32, #tpu.memory_space<vmem>>, vector<1x1x8xf32>
    %cst_96 = arith.constant dense<0.000000e+00> : vector<8xf32>
    %107 = vector.multi_reduction <add>, %102, %cst_96 [0] : vector<8x8xf32> to vector<8xf32>
    %108 = vector.shape_cast %107 : vector<8xf32> to vector<1x8xf32>
    %109 = vector.shape_cast %108 : vector<1x8xf32> to vector<1x1x8xf32>
    %110 = arith.addf %106, %109 : vector<1x1x8xf32>
    %c0_97 = arith.constant 0 : index
    %c0_98 = arith.constant 0 : index
    %c0_99 = arith.constant 0 : index
    %111 = vector.load %arg5[%c0_97, %c0_98, %c0_99] : memref<1x1x8xf32, #tpu.memory_space<vmem>>, vector<1x1x8xf32>
    tpu.vector_store %arg5[%c0_97, %c0_98, %c0_99], %110 {strides = array<i32>} : memref<1x1x8xf32, #tpu.memory_space<vmem>>, vector<1x1x8xf32>,
    %c0_100 = arith.constant 0 : index
    %c0_101 = arith.constant 0 : index
    %c0_102 = arith.constant 0 : index
    %112 = vector.load %arg6[%c0_100, %c0_101, %c0_102] : memref<1x1x8xf32, #tpu.memory_space<vmem>>, vector<1x1x8xf32>
    %113 = arith.mulf %102, %102 : vector<8x8xf32>
    %cst_103 = arith.constant dense<0.000000e+00> : vector<8xf32>
    %114 = vector.multi_reduction <add>, %113, %cst_103 [0] : vector<8x8xf32> to vector<8xf32>
    %115 = vector.shape_cast %114 : vector<8xf32> to vector<1x8xf32>
    %116 = vector.shape_cast %115 : vector<1x8xf32> to vector<1x1x8xf32>
    %117 = arith.addf %112, %116 : vector<1x1x8xf32>
    %c0_104 = arith.constant 0 : index
    %c0_105 = arith.constant 0 : index
    %c0_106 = arith.constant 0 : index
    %118 = vector.load %arg6[%c0_104, %c0_105, %c0_106] : memref<1x1x8xf32, #tpu.memory_space<vmem>>, vector<1x1x8xf32>
    tpu.vector_store %arg6[%c0_104, %c0_105, %c0_106], %117 {strides = array<i32>} : memref<1x1x8xf32, #tpu.memory_space<vmem>>, vector<1x1x8xf32>,
    return
  }
  func.func @transform_0(%arg0: i32, %arg1: i32) -> (i32, i32, i32, i32) {
    %c0_i32 = arith.constant 0 : i32
    %c0_i32_0 = arith.constant 0 : i32
    %c0_i32_1 = arith.constant 0 : i32
    %c0_i32_2 = arith.constant 0 : i32
    return %arg0, %c0_i32, %c0_i32_0, %c0_i32_1 : i32, i32, i32, i32
  }
  func.func @transform_1(%arg0: i32, %arg1: i32) -> (i32, i32, i32) {
    %c0_i32 = arith.constant 0 : i32
    %c0_i32_0 = arith.constant 0 : i32
    %c0_i32_1 = arith.constant 0 : i32
    %c0_i32_2 = arith.constant 0 : i32
    return %c0_i32, %c0_i32_0, %c0_i32_1 : i32, i32, i32
  }
  func.func @transform_2(%arg0: i32, %arg1: i32) -> (i32, i32, i32, i32) {
    %c0_i32 = arith.constant 0 : i32
    %c0_i32_0 = arith.constant 0 : i32
    %c0_i32_1 = arith.constant 0 : i32
    return %arg0, %arg1, %c0_i32, %c0_i32_0 : i32, i32, i32, i32
  }
  func.func @transform_3(%arg0: i32, %arg1: i32) -> (i32, i32, i32) {
    %c0_i32 = arith.constant 0 : i32
    %c0_i32_0 = arith.constant 0 : i32
    %c0_i32_1 = arith.constant 0 : i32
    return %arg0, %c0_i32, %c0_i32_0 : i32, i32, i32
  }
  func.func @transform_4(%arg0: i32, %arg1: i32) -> (i32, i32, i32) {
    %c0_i32 = arith.constant 0 : i32
    %c0_i32_0 = arith.constant 0 : i32
    %c0_i32_1 = arith.constant 0 : i32
    return %arg0, %c0_i32, %c0_i32_0 : i32, i32, i32
  }
}

module attributes {stable_mosaic.version = 11 : i64} {
  func.func @_affine_relu_kernel(%arg0: i32, %arg1: memref<8x128xbf16, #tpu.memory_space<vmem>>, %arg2: memref<1x128xf32, #tpu.memory_space<vmem>>, %arg3: memref<1x128xf32, #tpu.memory_space<vmem>>, %arg4: memref<8x128xbf16, #tpu.memory_space<vmem>>) attributes {dimension_semantics = [#tpu.dimension_semantics<parallel>], iteration_bounds = array<i64: 1>, scalar_prefetch = 0 : i64, scratch_operands = 0 : i64, tpu.core_type = #tpu.core_type<tc>, window_params = [{transform_indices = @transform_0, window_bounds = array<i64: 8, 128>}, {pipeline_mode = #tpu.pipeline_mode<synchronous>, transform_indices = @transform_1, window_bounds = array<i64: 1, 128>}, {pipeline_mode = #tpu.pipeline_mode<synchronous>, transform_indices = @transform_2, window_bounds = array<i64: 1, 128>}, {transform_indices = @transform_3, window_bounds = array<i64: 8, 128>}]} {
    %c0 = arith.constant 0 : index
    %c0_0 = arith.constant 0 : index
    %0 = vector.load %arg1[%c0, %c0_0] : memref<8x128xbf16, #tpu.memory_space<vmem>>, vector<8x128xbf16>
    %1 = arith.extf %0 : vector<8x128xbf16> to vector<8x128xf32>
    %c0_1 = arith.constant 0 : index
    %c0_2 = arith.constant 0 : index
    %2 = vector.load %arg2[%c0_1, %c0_2] : memref<1x128xf32, #tpu.memory_space<vmem>>, vector<1x128xf32>
    %3 = vector.broadcast %2 : vector<1x128xf32> to vector<8x128xf32>
    %4 = arith.mulf %1, %3 : vector<8x128xf32>
    %c0_3 = arith.constant 0 : index
    %c0_4 = arith.constant 0 : index
    %5 = vector.load %arg3[%c0_3, %c0_4] : memref<1x128xf32, #tpu.memory_space<vmem>>, vector<1x128xf32>
    %6 = vector.broadcast %5 : vector<1x128xf32> to vector<8x128xf32>
    %7 = arith.addf %4, %6 : vector<8x128xf32>
    %cst = arith.constant 0.000000e+00 : f32
    %8 = vector.broadcast %cst : f32 to vector<8x128xf32>
    %9 = arith.maximumf %7, %8 : vector<8x128xf32>
    %10 = arith.truncf %9 : vector<8x128xf32> to vector<8x128xbf16>
    %c0_5 = arith.constant 0 : index
    %c0_6 = arith.constant 0 : index
    %11 = vector.load %arg4[%c0_5, %c0_6] : memref<8x128xbf16, #tpu.memory_space<vmem>>, vector<8x128xbf16>
    tpu.vector_store %arg4[%c0_5, %c0_6], %10 {strides = array<i32>} : memref<8x128xbf16, #tpu.memory_space<vmem>>, vector<8x128xbf16>,
    return
  }
  func.func @transform_0(%arg0: i32) -> (i32, i32) {
    %c0_i32 = arith.constant 0 : i32
    %c0_i32_0 = arith.constant 0 : i32
    return %arg0, %c0_i32 : i32, i32
  }
  func.func @transform_1(%arg0: i32) -> (i32, i32) {
    %c0_i32 = arith.constant 0 : i32
    %c0_i32_0 = arith.constant 0 : i32
    %c0_i32_1 = arith.constant 0 : i32
    return %c0_i32, %c0_i32_0 : i32, i32
  }
  func.func @transform_2(%arg0: i32) -> (i32, i32) {
    %c0_i32 = arith.constant 0 : i32
    %c0_i32_0 = arith.constant 0 : i32
    %c0_i32_1 = arith.constant 0 : i32
    return %c0_i32, %c0_i32_0 : i32, i32
  }
  func.func @transform_3(%arg0: i32) -> (i32, i32) {
    %c0_i32 = arith.constant 0 : i32
    %c0_i32_0 = arith.constant 0 : i32
    return %arg0, %c0_i32 : i32, i32
  }
}

module attributes {stable_mosaic.version = 11 : i64} {
  func.func @_conv3x3_bn_stats_kernel(%arg0: i32, %arg1: i32, %arg2: memref<1x10x10x8xbf16, #tpu.memory_space<vmem>>, %arg3: memref<9x8x8xbf16, #tpu.memory_space<vmem>>, %arg4: memref<1x1x8x8xbf16, #tpu.memory_space<vmem>>, %arg5: memref<1x1x8xf32, #tpu.memory_space<vmem>>, %arg6: memref<1x1x8xf32, #tpu.memory_space<vmem>>) attributes {dimension_semantics = [#tpu.dimension_semantics<parallel>, #tpu.dimension_semantics<arbitrary>], iteration_bounds = array<i64: 2, 8>, scalar_prefetch = 0 : i64, scratch_operands = 0 : i64, tpu.core_type = #tpu.core_type<tc>, window_params = [{transform_indices = @transform_0, window_bounds = array<i64: 1, 10, 10, 8>}, {pipeline_mode = #tpu.pipeline_mode<synchronous>, transform_indices = @transform_1, window_bounds = array<i64: 9, 8, 8>}, {transform_indices = @transform_2, window_bounds = array<i64: 1, 1, 8, 8>}, {transform_indices = @transform_3, window_bounds = array<i64: 1, 1, 8>}, {transform_indices = @transform_4, window_bounds = array<i64: 1, 1, 8>}]} {
    %c0_i32 = arith.constant 0 : i32
    %0 = arith.cmpi eq, %arg1, %c0_i32 : i32
    %1 = arith.extui %0 : i1 to i32
    %c0_i32_0 = arith.constant 0 : i32
    %2 = arith.cmpi ne, %1, %c0_i32_0 : i32
    scf.if %2 {
      %cst_107 = arith.constant 0.000000e+00 : f32
      %119 = vector.broadcast %cst_107 : f32 to vector<1x1x8xf32>
      %c0_108 = arith.constant 0 : index
      %c0_109 = arith.constant 0 : index
      %c0_110 = arith.constant 0 : index
      %120 = vector.load %arg5[%c0_108, %c0_109, %c0_110] : memref<1x1x8xf32, #tpu.memory_space<vmem>>, vector<1x1x8xf32>
      tpu.vector_store %arg5[%c0_108, %c0_109, %c0_110], %119 {strides = array<i32>} : memref<1x1x8xf32, #tpu.memory_space<vmem>>, vector<1x1x8xf32>,
      %cst_111 = arith.constant 0.000000e+00 : f32
      %121 = vector.broadcast %cst_111 : f32 to vector<1x1x8xf32>
      %c0_112 = arith.constant 0 : index
      %c0_113 = arith.constant 0 : index
      %c0_114 = arith.constant 0 : index
      %122 = vector.load %arg6[%c0_112, %c0_113, %c0_114] : memref<1x1x8xf32, #tpu.memory_space<vmem>>, vector<1x1x8xf32>
      tpu.vector_store %arg6[%c0_112, %c0_113, %c0_114], %121 {strides = array<i32>} : memref<1x1x8xf32, #tpu.memory_space<vmem>>, vector<1x1x8xf32>,
    } else {
    }
    %cst = arith.constant 0.000000e+00 : f32
    %3 = vector.broadcast %cst : f32 to vector<8x8xf32>
    %c1_i32 = arith.constant 1 : i32
    %4 = arith.muli %arg1, %c1_i32 : i32
    %c0_i32_1 = arith.constant 0 : i32
    %5 = arith.addi %4, %c0_i32_1 : i32
    %c1_i32_2 = arith.constant 1 : i32
    %6 = arith.muli %5, %c1_i32_2 : i32
    %c0_i32_3 = arith.constant 0 : i32
    %7 = arith.addi %6, %c0_i32_3 : i32
    %c0 = arith.constant 0 : index
    %8 = arith.index_cast %7 : i32 to index
    %c0_4 = arith.constant 0 : index
    %c0_5 = arith.constant 0 : index
    %9 = vector.load %arg2[%c0, %8, %c0_4, %c0_5] : memref<1x10x10x8xbf16, #tpu.memory_space<vmem>>, vector<1x1x8x8xbf16>
    %10 = vector.shape_cast %9 : vector<1x1x8x8xbf16> to vector<8x8xbf16>
    %c0_6 = arith.constant 0 : index
    %c0_7 = arith.constant 0 : index
    %c0_8 = arith.constant 0 : index
    %11 = vector.load %arg3[%c0_6, %c0_7, %c0_8] : memref<9x8x8xbf16, #tpu.memory_space<vmem>>, vector<1x8x8xbf16>
    %12 = vector.shape_cast %11 : vector<1x8x8xbf16> to vector<8x8xbf16>
    %cst_9 = arith.constant dense<0.000000e+00> : vector<8x8xf32>
    %13 = tpu.matmul %10, %12, %cst_9 {dimension_numbers = #tpu.dot_dimension_numbers<[1], [0], [0], [1], [0, 0, 1, 1], [], []>} : vector<8x8xbf16>, vector<8x8xbf16>, vector<8x8xf32> -> vector<8x8xf32>
    %14 = arith.addf %3, %13 : vector<8x8xf32>
    %c1_i32_10 = arith.constant 1 : i32
    %15 = arith.muli %arg1, %c1_i32_10 : i32
    %c0_i32_11 = arith.constant 0 : i32
    %16 = arith.addi %15, %c0_i32_11 : i32
    %c1_i32_12 = arith.constant 1 : i32
    %17 = arith.muli %16, %c1_i32_12 : i32
    %c0_i32_13 = arith.constant 0 : i32
    %18 = arith.addi %17, %c0_i32_13 : i32
    %c0_14 = arith.constant 0 : index
    %19 = arith.index_cast %18 : i32 to index
    %c1 = arith.constant 1 : index
    %c0_15 = arith.constant 0 : index
    %20 = vector.load %arg2[%c0_14, %19, %c1, %c0_15] : memref<1x10x10x8xbf16, #tpu.memory_space<vmem>>, vector<1x1x8x8xbf16>
    %21 = vector.shape_cast %20 : vector<1x1x8x8xbf16> to vector<8x8xbf16>
    %c1_16 = arith.constant 1 : index
    %c0_17 = arith.constant 0 : index
    %c0_18 = arith.constant 0 : index
    %22 = vector.load %arg3[%c1_16, %c0_17, %c0_18] : memref<9x8x8xbf16, #tpu.memory_space<vmem>>, vector<1x8x8xbf16>
    %23 = vector.shape_cast %22 : vector<1x8x8xbf16> to vector<8x8xbf16>
    %cst_19 = arith.constant dense<0.000000e+00> : vector<8x8xf32>
    %24 = tpu.matmul %21, %23, %cst_19 {dimension_numbers = #tpu.dot_dimension_numbers<[1], [0], [0], [1], [0, 0, 1, 1], [], []>} : vector<8x8xbf16>, vector<8x8xbf16>, vector<8x8xf32> -> vector<8x8xf32>
    %25 = arith.addf %14, %24 : vector<8x8xf32>
    %c1_i32_20 = arith.constant 1 : i32
    %26 = arith.muli %arg1, %c1_i32_20 : i32
    %c0_i32_21 = arith.constant 0 : i32
    %27 = arith.addi %26, %c0_i32_21 : i32
    %c1_i32_22 = arith.constant 1 : i32
    %28 = arith.muli %27, %c1_i32_22 : i32
    %c0_i32_23 = arith.constant 0 : i32
    %29 = arith.addi %28, %c0_i32_23 : i32
    %c0_24 = arith.constant 0 : index
    %30 = arith.index_cast %29 : i32 to index
    %c2 = arith.constant 2 : index
    %c0_25 = arith.constant 0 : index
    %31 = vector.load %arg2[%c0_24, %30, %c2, %c0_25] : memref<1x10x10x8xbf16, #tpu.memory_space<vmem>>, vector<1x1x8x8xbf16>
    %32 = vector.shape_cast %31 : vector<1x1x8x8xbf16> to vector<8x8xbf16>
    %c2_26 = arith.constant 2 : index
    %c0_27 = arith.constant 0 : index
    %c0_28 = arith.constant 0 : index
    %33 = vector.load %arg3[%c2_26, %c0_27, %c0_28] : memref<9x8x8xbf16, #tpu.memory_space<vmem>>, vector<1x8x8xbf16>
    %34 = vector.shape_cast %33 : vector<1x8x8xbf16> to vector<8x8xbf16>
    %cst_29 = arith.constant dense<0.000000e+00> : vector<8x8xf32>
    %35 = tpu.matmul %32, %34, %cst_29 {dimension_numbers = #tpu.dot_dimension_numbers<[1], [0], [0], [1], [0, 0, 1, 1], [], []>} : vector<8x8xbf16>, vector<8x8xbf16>, vector<8x8xf32> -> vector<8x8xf32>
    %36 = arith.addf %25, %35 : vector<8x8xf32>
    %c1_i32_30 = arith.constant 1 : i32
    %37 = arith.muli %arg1, %c1_i32_30 : i32
    %c1_i32_31 = arith.constant 1 : i32
    %38 = arith.addi %37, %c1_i32_31 : i32
    %c1_i32_32 = arith.constant 1 : i32
    %39 = arith.muli %38, %c1_i32_32 : i32
    %c0_i32_33 = arith.constant 0 : i32
    %40 = arith.addi %39, %c0_i32_33 : i32
    %c0_34 = arith.constant 0 : index
    %41 = arith.index_cast %40 : i32 to index
    %c0_35 = arith.constant 0 : index
    %c0_36 = arith.constant 0 : index
    %42 = vector.load %arg2[%c0_34, %41, %c0_35, %c0_36] : memref<1x10x10x8xbf16, #tpu.memory_space<vmem>>, vector<1x1x8x8xbf16>
    %43 = vector.shape_cast %42 : vector<1x1x8x8xbf16> to vector<8x8xbf16>
    %c3 = arith.constant 3 : index
    %c0_37 = arith.constant 0 : index
    %c0_38 = arith.constant 0 : index
    %44 = vector.load %arg3[%c3, %c0_37, %c0_38] : memref<9x8x8xbf16, #tpu.memory_space<vmem>>, vector<1x8x8xbf16>
    %45 = vector.shape_cast %44 : vector<1x8x8xbf16> to vector<8x8xbf16>
    %cst_39 = arith.constant dense<0.000000e+00> : vector<8x8xf32>
    %46 = tpu.matmul %43, %45, %cst_39 {dimension_numbers = #tpu.dot_dimension_numbers<[1], [0], [0], [1], [0, 0, 1, 1], [], []>} : vector<8x8xbf16>, vector<8x8xbf16>, vector<8x8xf32> -> vector<8x8xf32>
    %47 = arith.addf %36, %46 : vector<8x8xf32>
    %c1_i32_40 = arith.constant 1 : i32
    %48 = arith.muli %arg1, %c1_i32_40 : i32
    %c1_i32_41 = arith.constant 1 : i32
    %49 = arith.addi %48, %c1_i32_41 : i32
    %c1_i32_42 = arith.constant 1 : i32
    %50 = arith.muli %49, %c1_i32_42 : i32
    %c0_i32_43 = arith.constant 0 : i32
    %51 = arith.addi %50, %c0_i32_43 : i32
    %c0_44 = arith.constant 0 : index
    %52 = arith.index_cast %51 : i32 to index
    %c1_45 = arith.constant 1 : index
    %c0_46 = arith.constant 0 : index
    %53 = vector.load %arg2[%c0_44, %52, %c1_45, %c0_46] : memref<1x10x10x8xbf16, #tpu.memory_space<vmem>>, vector<1x1x8x8xbf16>
    %54 = vector.shape_cast %53 : vector<1x1x8x8xbf16> to vector<8x8xbf16>
    %c4 = arith.constant 4 : index
    %c0_47 = arith.constant 0 : index
    %c0_48 = arith.constant 0 : index
    %55 = vector.load %arg3[%c4, %c0_47, %c0_48] : memref<9x8x8xbf16, #tpu.memory_space<vmem>>, vector<1x8x8xbf16>
    %56 = vector.shape_cast %55 : vector<1x8x8xbf16> to vector<8x8xbf16>
    %cst_49 = arith.constant dense<0.000000e+00> : vector<8x8xf32>
    %57 = tpu.matmul %54, %56, %cst_49 {dimension_numbers = #tpu.dot_dimension_numbers<[1], [0], [0], [1], [0, 0, 1, 1], [], []>} : vector<8x8xbf16>, vector<8x8xbf16>, vector<8x8xf32> -> vector<8x8xf32>
    %58 = arith.addf %47, %57 : vector<8x8xf32>
    %c1_i32_50 = arith.constant 1 : i32
    %59 = arith.muli %arg1, %c1_i32_50 : i32
    %c1_i32_51 = arith.constant 1 : i32
    %60 = arith.addi %59, %c1_i32_51 : i32
    %c1_i32_52 = arith.constant 1 : i32
    %61 = arith.muli %60, %c1_i32_52 : i32
    %c0_i32_53 = arith.constant 0 : i32
    %62 = arith.addi %61, %c0_i32_53 : i32
    %c0_54 = arith.constant 0 : index
    %63 = arith.index_cast %62 : i32 to index
    %c2_55 = arith.constant 2 : index
    %c0_56 = arith.constant 0 : index
    %64 = vector.load %arg2[%c0_54, %63, %c2_55, %c0_56] : memref<1x10x10x8xbf16, #tpu.memory_space<vmem>>, vector<1x1x8x8xbf16>
    %65 = vector.shape_cast %64 : vector<1x1x8x8xbf16> to vector<8x8xbf16>
    %c5 = arith.constant 5 : index
    %c0_57 = arith.constant 0 : index
    %c0_58 = arith.constant 0 : index
    %66 = vector.load %arg3[%c5, %c0_57, %c0_58] : memref<9x8x8xbf16, #tpu.memory_space<vmem>>, vector<1x8x8xbf16>
    %67 = vector.shape_cast %66 : vector<1x8x8xbf16> to vector<8x8xbf16>
    %cst_59 = arith.constant dense<0.000000e+00> : vector<8x8xf32>
    %68 = tpu.matmul %65, %67, %cst_59 {dimension_numbers = #tpu.dot_dimension_numbers<[1], [0], [0], [1], [0, 0, 1, 1], [], []>} : vector<8x8xbf16>, vector<8x8xbf16>, vector<8x8xf32> -> vector<8x8xf32>
    %69 = arith.addf %58, %68 : vector<8x8xf32>
    %c1_i32_60 = arith.constant 1 : i32
    %70 = arith.muli %arg1, %c1_i32_60 : i32
    %c2_i32 = arith.constant 2 : i32
    %71 = arith.addi %70, %c2_i32 : i32
    %c1_i32_61 = arith.constant 1 : i32
    %72 = arith.muli %71, %c1_i32_61 : i32
    %c0_i32_62 = arith.constant 0 : i32
    %73 = arith.addi %72, %c0_i32_62 : i32
    %c0_63 = arith.constant 0 : index
    %74 = arith.index_cast %73 : i32 to index
    %c0_64 = arith.constant 0 : index
    %c0_65 = arith.constant 0 : index
    %75 = vector.load %arg2[%c0_63, %74, %c0_64, %c0_65] : memref<1x10x10x8xbf16, #tpu.memory_space<vmem>>, vector<1x1x8x8xbf16>
    %76 = vector.shape_cast %75 : vector<1x1x8x8xbf16> to vector<8x8xbf16>
    %c6 = arith.constant 6 : index
    %c0_66 = arith.constant 0 : index
    %c0_67 = arith.constant 0 : index
    %77 = vector.load %arg3[%c6, %c0_66, %c0_67] : memref<9x8x8xbf16, #tpu.memory_space<vmem>>, vector<1x8x8xbf16>
    %78 = vector.shape_cast %77 : vector<1x8x8xbf16> to vector<8x8xbf16>
    %cst_68 = arith.constant dense<0.000000e+00> : vector<8x8xf32>
    %79 = tpu.matmul %76, %78, %cst_68 {dimension_numbers = #tpu.dot_dimension_numbers<[1], [0], [0], [1], [0, 0, 1, 1], [], []>} : vector<8x8xbf16>, vector<8x8xbf16>, vector<8x8xf32> -> vector<8x8xf32>
    %80 = arith.addf %69, %79 : vector<8x8xf32>
    %c1_i32_69 = arith.constant 1 : i32
    %81 = arith.muli %arg1, %c1_i32_69 : i32
    %c2_i32_70 = arith.constant 2 : i32
    %82 = arith.addi %81, %c2_i32_70 : i32
    %c1_i32_71 = arith.constant 1 : i32
    %83 = arith.muli %82, %c1_i32_71 : i32
    %c0_i32_72 = arith.constant 0 : i32
    %84 = arith.addi %83, %c0_i32_72 : i32
    %c0_73 = arith.constant 0 : index
    %85 = arith.index_cast %84 : i32 to index
    %c1_74 = arith.constant 1 : index
    %c0_75 = arith.constant 0 : index
    %86 = vector.load %arg2[%c0_73, %85, %c1_74, %c0_75] : memref<1x10x10x8xbf16, #tpu.memory_space<vmem>>, vector<1x1x8x8xbf16>
    %87 = vector.shape_cast %86 : vector<1x1x8x8xbf16> to vector<8x8xbf16>
    %c7 = arith.constant 7 : index
    %c0_76 = arith.constant 0 : index
    %c0_77 = arith.constant 0 : index
    %88 = vector.load %arg3[%c7, %c0_76, %c0_77] : memref<9x8x8xbf16, #tpu.memory_space<vmem>>, vector<1x8x8xbf16>
    %89 = vector.shape_cast %88 : vector<1x8x8xbf16> to vector<8x8xbf16>
    %cst_78 = arith.constant dense<0.000000e+00> : vector<8x8xf32>
    %90 = tpu.matmul %87, %89, %cst_78 {dimension_numbers = #tpu.dot_dimension_numbers<[1], [0], [0], [1], [0, 0, 1, 1], [], []>} : vector<8x8xbf16>, vector<8x8xbf16>, vector<8x8xf32> -> vector<8x8xf32>
    %91 = arith.addf %80, %90 : vector<8x8xf32>
    %c1_i32_79 = arith.constant 1 : i32
    %92 = arith.muli %arg1, %c1_i32_79 : i32
    %c2_i32_80 = arith.constant 2 : i32
    %93 = arith.addi %92, %c2_i32_80 : i32
    %c1_i32_81 = arith.constant 1 : i32
    %94 = arith.muli %93, %c1_i32_81 : i32
    %c0_i32_82 = arith.constant 0 : i32
    %95 = arith.addi %94, %c0_i32_82 : i32
    %c0_83 = arith.constant 0 : index
    %96 = arith.index_cast %95 : i32 to index
    %c2_84 = arith.constant 2 : index
    %c0_85 = arith.constant 0 : index
    %97 = vector.load %arg2[%c0_83, %96, %c2_84, %c0_85] : memref<1x10x10x8xbf16, #tpu.memory_space<vmem>>, vector<1x1x8x8xbf16>
    %98 = vector.shape_cast %97 : vector<1x1x8x8xbf16> to vector<8x8xbf16>
    %c8 = arith.constant 8 : index
    %c0_86 = arith.constant 0 : index
    %c0_87 = arith.constant 0 : index
    %99 = vector.load %arg3[%c8, %c0_86, %c0_87] : memref<9x8x8xbf16, #tpu.memory_space<vmem>>, vector<1x8x8xbf16>
    %100 = vector.shape_cast %99 : vector<1x8x8xbf16> to vector<8x8xbf16>
    %cst_88 = arith.constant dense<0.000000e+00> : vector<8x8xf32>
    %101 = tpu.matmul %98, %100, %cst_88 {dimension_numbers = #tpu.dot_dimension_numbers<[1], [0], [0], [1], [0, 0, 1, 1], [], []>} : vector<8x8xbf16>, vector<8x8xbf16>, vector<8x8xf32> -> vector<8x8xf32>
    %102 = arith.addf %91, %101 : vector<8x8xf32>
    %103 = vector.shape_cast %102 : vector<8x8xf32> to vector<1x1x8x8xf32>
    %104 = arith.truncf %103 : vector<1x1x8x8xf32> to vector<1x1x8x8xbf16>
    %c0_89 = arith.constant 0 : index
    %c0_90 = arith.constant 0 : index
    %c0_91 = arith.constant 0 : index
    %c0_92 = arith.constant 0 : index
    %105 = vector.load %arg4[%c0_89, %c0_90, %c0_91, %c0_92] : memref<1x1x8x8xbf16, #tpu.memory_space<vmem>>, vector<1x1x8x8xbf16>
    tpu.vector_store %arg4[%c0_89, %c0_90, %c0_91, %c0_92], %104 {strides = array<i32>} : memref<1x1x8x8xbf16, #tpu.memory_space<vmem>>, vector<1x1x8x8xbf16>,
    %c0_93 = arith.constant 0 : index
    %c0_94 = arith.constant 0 : index
    %c0_95 = arith.constant 0 : index
    %106 = vector.load %arg5[%c0_93, %c0_94, %c0_95] : memref<1x1x8xf32, #tpu.memory_space<vmem>>, vector<1x1x8xf32>
    %cst_96 = arith.constant dense<0.000000e+00> : vector<8xf32>
    %107 = vector.multi_reduction <add>, %102, %cst_96 [0] : vector<8x8xf32> to vector<8xf32>
    %108 = vector.shape_cast %107 : vector<8xf32> to vector<1x8xf32>
    %109 = vector.shape_cast %108 : vector<1x8xf32> to vector<1x1x8xf32>
    %110 = arith.addf %106, %109 : vector<1x1x8xf32>
    %c0_97 = arith.constant 0 : index
    %c0_98 = arith.constant 0 : index
    %c0_99 = arith.constant 0 : index
    %111 = vector.load %arg5[%c0_97, %c0_98, %c0_99] : memref<1x1x8xf32, #tpu.memory_space<vmem>>, vector<1x1x8xf32>
    tpu.vector_store %arg5[%c0_97, %c0_98, %c0_99], %110 {strides = array<i32>} : memref<1x1x8xf32, #tpu.memory_space<vmem>>, vector<1x1x8xf32>,
    %c0_100 = arith.constant 0 : index
    %c0_101 = arith.constant 0 : index
    %c0_102 = arith.constant 0 : index
    %112 = vector.load %arg6[%c0_100, %c0_101, %c0_102] : memref<1x1x8xf32, #tpu.memory_space<vmem>>, vector<1x1x8xf32>
    %113 = arith.mulf %102, %102 : vector<8x8xf32>
    %cst_103 = arith.constant dense<0.000000e+00> : vector<8xf32>
    %114 = vector.multi_reduction <add>, %113, %cst_103 [0] : vector<8x8xf32> to vector<8xf32>
    %115 = vector.shape_cast %114 : vector<8xf32> to vector<1x8xf32>
    %116 = vector.shape_cast %115 : vector<1x8xf32> to vector<1x1x8xf32>
    %117 = arith.addf %112, %116 : vector<1x1x8xf32>
    %c0_104 = arith.constant 0 : index
    %c0_105 = arith.constant 0 : index
    %c0_106 = arith.constant 0 : index
    %118 = vector.load %arg6[%c0_104, %c0_105, %c0_106] : memref<1x1x8xf32, #tpu.memory_space<vmem>>, vector<1x1x8xf32>
    tpu.vector_store %arg6[%c0_104, %c0_105, %c0_106], %117 {strides = array<i32>} : memref<1x1x8xf32, #tpu.memory_space<vmem>>, vector<1x1x8xf32>,
    return
  }
  func.func @transform_0(%arg0: i32, %arg1: i32) -> (i32, i32, i32, i32) {
    %c0_i32 = arith.constant 0 : i32
    %c0_i32_0 = arith.constant 0 : i32
    %c0_i32_1 = arith.constant 0 : i32
    %c0_i32_2 = arith.constant 0 : i32
    return %arg0, %c0_i32, %c0_i32_0, %c0_i32_1 : i32, i32, i32, i32
  }
  func.func @transform_1(%arg0: i32, %arg1: i32) -> (i32, i32, i32) {
    %c0_i32 = arith.constant 0 : i32
    %c0_i32_0 = arith.constant 0 : i32
    %c0_i32_1 = arith.constant 0 : i32
    %c0_i32_2 = arith.constant 0 : i32
    return %c0_i32, %c0_i32_0, %c0_i32_1 : i32, i32, i32
  }
  func.func @transform_2(%arg0: i32, %arg1: i32) -> (i32, i32, i32, i32) {
    %c0_i32 = arith.constant 0 : i32
    %c0_i32_0 = arith.constant 0 : i32
    %c0_i32_1 = arith.constant 0 : i32
    return %arg0, %arg1, %c0_i32, %c0_i32_0 : i32, i32, i32, i32
  }
  func.func @transform_3(%arg0: i32, %arg1: i32) -> (i32, i32, i32) {
    %c0_i32 = arith.constant 0 : i32
    %c0_i32_0 = arith.constant 0 : i32
    %c0_i32_1 = arith.constant 0 : i32
    return %arg0, %c0_i32, %c0_i32_0 : i32, i32, i32
  }
  func.func @transform_4(%arg0: i32, %arg1: i32) -> (i32, i32, i32) {
    %c0_i32 = arith.constant 0 : i32
    %c0_i32_0 = arith.constant 0 : i32
    %c0_i32_1 = arith.constant 0 : i32
    return %arg0, %c0_i32, %c0_i32_0 : i32, i32, i32
  }
}

module attributes {stable_mosaic.version = 11 : i64} {
  func.func @_affine2_add_relu_kernel(%arg0: i32, %arg1: memref<8x128xbf16, #tpu.memory_space<vmem>>, %arg2: memref<1x128xf32, #tpu.memory_space<vmem>>, %arg3: memref<1x128xf32, #tpu.memory_space<vmem>>, %arg4: memref<8x128xbf16, #tpu.memory_space<vmem>>, %arg5: memref<1x128xf32, #tpu.memory_space<vmem>>, %arg6: memref<1x128xf32, #tpu.memory_space<vmem>>, %arg7: memref<8x128xf32, #tpu.memory_space<vmem>>) attributes {dimension_semantics = [#tpu.dimension_semantics<parallel>], iteration_bounds = array<i64: 1>, scalar_prefetch = 0 : i64, scratch_operands = 0 : i64, tpu.core_type = #tpu.core_type<tc>, window_params = [{transform_indices = @transform_0, window_bounds = array<i64: 8, 128>}, {pipeline_mode = #tpu.pipeline_mode<synchronous>, transform_indices = @transform_1, window_bounds = array<i64: 1, 128>}, {pipeline_mode = #tpu.pipeline_mode<synchronous>, transform_indices = @transform_2, window_bounds = array<i64: 1, 128>}, {transform_indices = @transform_3, window_bounds = array<i64: 8, 128>}, {pipeline_mode = #tpu.pipeline_mode<synchronous>, transform_indices = @transform_4, window_bounds = array<i64: 1, 128>}, {pipeline_mode = #tpu.pipeline_mode<synchronous>, transform_indices = @transform_5, window_bounds = array<i64: 1, 128>}, {transform_indices = @transform_6, window_bounds = array<i64: 8, 128>}]} {
    %c0 = arith.constant 0 : index
    %c0_0 = arith.constant 0 : index
    %0 = vector.load %arg1[%c0, %c0_0] : memref<8x128xbf16, #tpu.memory_space<vmem>>, vector<8x128xbf16>
    %1 = arith.extf %0 : vector<8x128xbf16> to vector<8x128xf32>
    %c0_1 = arith.constant 0 : index
    %c0_2 = arith.constant 0 : index
    %2 = vector.load %arg2[%c0_1, %c0_2] : memref<1x128xf32, #tpu.memory_space<vmem>>, vector<1x128xf32>
    %3 = vector.broadcast %2 : vector<1x128xf32> to vector<8x128xf32>
    %4 = arith.mulf %1, %3 : vector<8x128xf32>
    %c0_3 = arith.constant 0 : index
    %c0_4 = arith.constant 0 : index
    %5 = vector.load %arg3[%c0_3, %c0_4] : memref<1x128xf32, #tpu.memory_space<vmem>>, vector<1x128xf32>
    %6 = vector.broadcast %5 : vector<1x128xf32> to vector<8x128xf32>
    %7 = arith.addf %4, %6 : vector<8x128xf32>
    %c0_5 = arith.constant 0 : index
    %c0_6 = arith.constant 0 : index
    %8 = vector.load %arg4[%c0_5, %c0_6] : memref<8x128xbf16, #tpu.memory_space<vmem>>, vector<8x128xbf16>
    %9 = arith.extf %8 : vector<8x128xbf16> to vector<8x128xf32>
    %c0_7 = arith.constant 0 : index
    %c0_8 = arith.constant 0 : index
    %10 = vector.load %arg5[%c0_7, %c0_8] : memref<1x128xf32, #tpu.memory_space<vmem>>, vector<1x128xf32>
    %11 = vector.broadcast %10 : vector<1x128xf32> to vector<8x128xf32>
    %12 = arith.mulf %9, %11 : vector<8x128xf32>
    %13 = arith.addf %7, %12 : vector<8x128xf32>
    %c0_9 = arith.constant 0 : index
    %c0_10 = arith.constant 0 : index
    %14 = vector.load %arg6[%c0_9, %c0_10] : memref<1x128xf32, #tpu.memory_space<vmem>>, vector<1x128xf32>
    %15 = vector.broadcast %14 : vector<1x128xf32> to vector<8x128xf32>
    %16 = arith.addf %13, %15 : vector<8x128xf32>
    %cst = arith.constant 0.000000e+00 : f32
    %17 = vector.broadcast %cst : f32 to vector<8x128xf32>
    %18 = arith.maximumf %16, %17 : vector<8x128xf32>
    %c0_11 = arith.constant 0 : index
    %c0_12 = arith.constant 0 : index
    %19 = vector.load %arg7[%c0_11, %c0_12] : memref<8x128xf32, #tpu.memory_space<vmem>>, vector<8x128xf32>
    tpu.vector_store %arg7[%c0_11, %c0_12], %18 {strides = array<i32>} : memref<8x128xf32, #tpu.memory_space<vmem>>, vector<8x128xf32>,
    return
  }
  func.func @transform_0(%arg0: i32) -> (i32, i32) {
    %c0_i32 = arith.constant 0 : i32
    %c0_i32_0 = arith.constant 0 : i32
    return %arg0, %c0_i32 : i32, i32
  }
  func.func @transform_1(%arg0: i32) -> (i32, i32) {
    %c0_i32 = arith.constant 0 : i32
    %c0_i32_0 = arith.constant 0 : i32
    %c0_i32_1 = arith.constant 0 : i32
    return %c0_i32, %c0_i32_0 : i32, i32
  }
  func.func @transform_2(%arg0: i32) -> (i32, i32) {
    %c0_i32 = arith.constant 0 : i32
    %c0_i32_0 = arith.constant 0 : i32
    %c0_i32_1 = arith.constant 0 : i32
    return %c0_i32, %c0_i32_0 : i32, i32
  }
  func.func @transform_3(%arg0: i32) -> (i32, i32) {
    %c0_i32 = arith.constant 0 : i32
    %c0_i32_0 = arith.constant 0 : i32
    return %arg0, %c0_i32 : i32, i32
  }
  func.func @transform_4(%arg0: i32) -> (i32, i32) {
    %c0_i32 = arith.constant 0 : i32
    %c0_i32_0 = arith.constant 0 : i32
    %c0_i32_1 = arith.constant 0 : i32
    return %c0_i32, %c0_i32_0 : i32, i32
  }
  func.func @transform_5(%arg0: i32) -> (i32, i32) {
    %c0_i32 = arith.constant 0 : i32
    %c0_i32_0 = arith.constant 0 : i32
    %c0_i32_1 = arith.constant 0 : i32
    return %c0_i32, %c0_i32_0 : i32, i32
  }
  func.func @transform_6(%arg0: i32) -> (i32, i32) {
    %c0_i32 = arith.constant 0 : i32
    %c0_i32_0 = arith.constant 0 : i32
    return %arg0, %c0_i32 : i32, i32
  }
}

</mosaic_0001>

<llo_original>
// kernel: tile.38
$region0: #{tile.38}
  #allocation0 [shape = 's32[1]{0}', space=sflag, size = 0x4, scoped, tag = 'scoped memory for tile.38']
  %s0 = inlined_call_operand.vmem [shape: f32[8], index: 0, kind: input, shape index: {}]
  %s1 = inlined_call_operand.vmem [shape: f32[16,8], index: 1, kind: output, shape index: {}]
  // Predicated region
  $region2: #{tile.38} parent=0 // pred_check
    _
  $region3: #{tile.38} parent=0 // pred_check_branch
    %3 = sbr.rel (0) target = $region5
  $region4: #{tile.38} parent=0 // pred_region
    _
  $region5: #{tile.38} parent=0 // pred_fallthru
    _
  %v4 = vld [vmem:[%s0] ss:$0 sm:$0xff]
  %5 = vst [vmem:[%s1] sm:$0xff] %v4
  %s6 = scalar_lea.vmem %s1, 8
  %7 = vst [vmem:[%s6] sm:$0xff] %v4

// kernel: tile.39
$region0: #{tile.39}
  %s0 = inlined_call_operand.vmem [shape: f32[16,8], index: 0, kind: input, shape index: {}]
  %s1 = inlined_call_operand.hbm [shape: f32[1,128], index: 1, kind: output, shape index: {}]
  $region1: #{tile.39} parent=0
    #allocation0 [shape = 'u8[512]{0}', space=vmem, size = 0x400, scoped, tag = 'operand span for operand 1']
    #allocation1 [shape = 's32[1]{0}', space=sflag, size = 0x4, scoped, tag = 'scoped memory for tile.39']
    #allocation2 [shape = 'u8[4096]{0}', space=vmem, size = 0x1000, scoped, tag = 'scoped mem for output reshape']
    %2 = vsyncpa [#allocation1], 0
    %v3 = vld [vmem:[%s0] sm:$0x1]
    %vm4 = vcmask 64512
    %5 = vst.msk [vmem:[#allocation2] sm:$0x1] %vm4, %v3
    %s6 = scalar_lea.vmem %s0, 15
    %v7 = vld [vmem:[%s6] sm:$0x1]
    %8 = vrot.lane.b32.xlu0 %v7, 120
    %v9 = vpop.permute.xlu0 %8
    %vm10 = vcmask 1048512
    %11 = vst.msk [vmem:[#allocation2] sm:$0x1] %vm10, %v9
    %s12 = scalar_lea.vmem %s0, 14
    %v13 = vld [vmem:[%s12] sm:$0x1]
    %14 = vrot.lane.b32.xlu0 %v13, 112
    %v15 = vpop.permute.xlu0 %14
    %vm16 = vcmask 982912
    %17 = vst.msk [vmem:[#allocation2] sm:$0x1] %vm16, %v15
    %s18 = scalar_lea.vmem %s0, 13
    %v19 = vld [vmem:[%s18] sm:$0x1]
    %20 = vrot.lane.b32.xlu0 %v19, 104
    %v21 = vpop.permute.xlu0 %20
    %vm22 = vcmask 917312
    %23 = vst.msk [vmem:[#allocation2] sm:$0x1] %vm22, %v21
    %s24 = scalar_lea.vmem %s0, 12
    %v25 = vld [vmem:[%s24] sm:$0x1]
    %26 = vrot.lane.b32.xlu0 %v25, 96
    %v27 = vpop.permute.xlu0 %26
    %vm28 = vcmask 851712
    %29 = vst.msk [vmem:[#allocation2] sm:$0x1] %vm28, %v27
    %s30 = scalar_lea.vmem %s0, 11
    %v31 = vld [vmem:[%s30] sm:$0x1]
    %32 = vrot.lane.b32.xlu0 %v31, 88
    %v33 = vpop.permute.xlu0 %32
    %vm34 = vcmask 786112
    %35 = vst.msk [vmem:[#allocation2] sm:$0x1] %vm34, %v33
    %s36 = scalar_lea.vmem %s0, 10
    %v37 = vld [vmem:[%s36] sm:$0x1]
    %38 = vrot.lane.b32.xlu0 %v37, 80
    %v39 = vpop.permute.xlu0 %38
    %vm40 = vcmask 720512
    %41 = vst.msk [vmem:[#allocation2] sm:$0x1] %vm40, %v39
    %s42 = scalar_lea.vmem %s0, 9
    %v43 = vld [vmem:[%s42] sm:$0x1]
    %44 = vrot.lane.b32.xlu0 %v43, 72
    %v45 = vpop.permute.xlu0 %44
    %vm46 = vcmask 654912
    %47 = vst.msk [vmem:[#allocation2] sm:$0x1] %vm46, %v45
    %s48 = scalar_lea.vmem %s0, 8
    %v49 = vld [vmem:[%s48] sm:$0x1]
    %50 = vrot.lane.b32.xlu0 %v49, 64
    %v51 = vpop.permute.xlu0 %50
    %vm52 = vcmask 589312
    %53 = vst.msk [vmem:[#allocation2] sm:$0x1] %vm52, %v51
    %s54 = scalar_lea.vmem %s0, 7
    %v55 = vld [vmem:[%s54] sm:$0x1]
    %56 = vrot.lane.b32.xlu0 %v55, 56
    %v57 = vpop.permute.xlu0 %56
    %vm58 = vcmask 523712
    %59 = vst.msk [vmem:[#allocation2] sm:$0x1] %vm58, %v57
    %s60 = scalar_lea.vmem %s0, 6
    %v61 = vld [vmem:[%s60] sm:$0x1]
    %62 = vrot.lane.b32.xlu0 %v61, 48
    %v63 = vpop.permute.xlu0 %62
    %vm64 = vcmask 458112
    %65 = vst.msk [vmem:[#allocation2] sm:$0x1] %vm64, %v63
    %s66 = scalar_lea.vmem %s0, 5
    %v67 = vld [vmem:[%s66] sm:$0x1]
    %68 = vrot.lane.b32.xlu0 %v67, 40
    %v69 = vpop.permute.xlu0 %68
    %vm70 = vcmask 392512
    %71 = vst.msk [vmem:[#allocation2] sm:$0x1] %vm70, %v69
    %s72 = scalar_lea.vmem %s0, 4
    %v73 = vld [vmem:[%s72] sm:$0x1]
    %74 = vrot.lane.b32.xlu0 %v73, 32
    %v75 = vpop.permute.xlu0 %74
    %vm76 = vcmask 326912
    %77 = vst.msk [vmem:[#allocation2] sm:$0x1] %vm76, %v75
    %s78 = scalar_lea.vmem %s0, 3
    %v79 = vld [vmem:[%s78] sm:$0x1]
    %80 = vrot.lane.b32.xlu0 %v79, 24
    %v81 = vpop.permute.xlu0 %80
    %vm82 = vcmask 261312
    %83 = vst.msk [vmem:[#allocation2] sm:$0x1] %vm82, %v81
    %s84 = scalar_lea.vmem %s0, 2
    %v85 = vld [vmem:[%s84] sm:$0x1]
    %86 = vrot.lane.b32.xlu0 %v85, 16
    %v87 = vpop.permute.xlu0 %86
    %vm88 = vcmask 195712
    %89 = vst.msk [vmem:[#allocation2] sm:$0x1] %vm88, %v87
    %s90 = scalar_lea.vmem %s0, 1
    %v91 = vld [vmem:[%s90] sm:$0x1]
    %92 = vrot.lane.b32.xlu0 %v91, 8
    %v93 = vpop.permute.xlu0 %92
    %vm94 = vcmask 130112
    %95 = vst.msk [vmem:[#allocation2] sm:$0x1] %vm94, %v93
    %s97 = sshllo.u32 0, 1
    %v99 = vld [vmem:[#allocation2] sm:%s97]
    %s100 = sshllo.u32 0, 1
    %101 = vst [vmem:[#allocation0] sm:%s100] %v99
    %s103 = ssub.s32 16, 16
    %104 = vsyncadd [#allocation1], %s103
    %s106 = sshll.u32 [#allocation0], 4
    %s107 = int_to_ptr.vmem [resolvable:$true] %s106
    %109 = dma.vmem_to_hbm [thread:$0]  %s107, 16, %s1, [#allocation1]
    %110 = dma.done [#allocation1], 16
    %111 = vsyncpa [#allocation1], 1

// kernel: tile.53
$region0: #{tile.53}
  #allocation2 [shape = 's32[1]{0}', space=sflag, size = 0x4, scoped, tag = 'scoped memory for tile.53']
  %s0 = inlined_call_operand.hbm [shape: f32[8], index: 0, kind: input, shape index: {}]
  %s1 = inlined_call_operand.vmem [shape: f32[16,8], index: 1, kind: output, shape index: {}]
  $region1: #{tile.53} parent=0
    #allocation0 [shape = 'u8[512]{0}', space=vmem, size = 0x400, scoped, tag = 'operand span for operand 0']
    #allocation1 [shape = 's32[1]{0}', space=sflag, size = 0x4, scoped, tag = 'scoped memory for tile.53']
    %2 = vsyncpa [#allocation1], 0
    // Predicated region
    $region2: #{tile.53} parent=1 // pred_check
      _
    $region3: #{tile.53} parent=1 // pred_check_branch
      %4 = sbr.rel (0) target = $region5
    $region4: #{tile.53} parent=1 // pred_region
      %s6 = ssub.s32 16, 16
      %7 = vsyncadd [#allocation1], %s6
      %s9 = sshll.u32 [#allocation0], 4
      %s10 = int_to_ptr.vmem [resolvable:$true] %s9
      %12 = dma.hbm_to_vmem [thread:$0]  %s0, 16, %s10, [#allocation1]
    $region5: #{tile.53} parent=1 // pred_fallthru
      _
    // Predicated region
    $region6: #{tile.53} parent=1 // pred_check
      _
    $region7: #{tile.53} parent=1 // pred_check_branch
      %14 = sbr.rel (0) target = $region9
    $region8: #{tile.53} parent=1 // pred_region
      %15 = dma.done [#allocation1], 16
    $region9: #{tile.53} parent=1 // pred_fallthru
      _
    %v16 = vld [vmem:[#allocation0] ss:$0 sm:$0xff]
    %17 = vst [vmem:[%s1] sm:$0xff] %v16
    %s18 = scalar_lea.vmem %s1, 8
    %19 = vst [vmem:[%s18] sm:$0xff] %v16
    %20 = vsyncpa [#allocation1], 1

// kernel: resnet_block_forward.6
$region0: #{resnet_block_forward.6}
  #allocation0 [shape = 'u32[]', space=smem, size = 0x4, offset = 0x4, fixed_abs, tag = 'smem constant byte address 0x4 - core index']
  #allocation1 [shape = 'u32[144,128]{1,0:T(1,128)}', space=vmem, size = 0x12000, scoped, tag = 'internal scratch']
  %s0 = inlined_call_operand.hbm [shape: bf16[8,128], index: 0, kind: input, shape index: {}]
  %s1 = inlined_call_operand.hbm [shape: f32[1,128], index: 1, kind: input, shape index: {}]
  %s2 = inlined_call_operand.hbm [shape: f32[1,128], index: 2, kind: input, shape index: {}]
  %s3 = inlined_call_operand.hbm [shape: bf16[8,128], index: 3, kind: output, shape index: {}]
  %s4 = sld [smem:[#allocation0]]
  $region34: #{resnet_block_forward.6} parent=0
    _
  %s6 = ssub.s32 1, %s4
  %s7 = scalar_select 0, %s6, %s4
  $region1: #{resnet_block_forward.6} parent=0
    #allocation2 [shape = 'u8[2048]{0}', space=vmem, size = 0x800, scoped, tag = 'input window, operand 0, single buffered']
    #allocation3 [shape = 's32[1]{0}', space=sflag, size = 0x4, scoped, tag = 'scoped memory for resnet_block_forward.6']
    #allocation4 [shape = 's32[1]{0}', space=sflag, size = 0x4, scoped, tag = 'scoped memory for resnet_block_forward.6']
    #allocation5 [shape = 'u8[512]{0}', space=vmem, size = 0x400, scoped, tag = 'input window, operand 1, single buffered']
    #allocation6 [shape = 's32[1]{0}', space=sflag, size = 0x4, scoped, tag = 'scoped memory for resnet_block_forward.6']
    #allocation7 [shape = 'u8[512]{0}', space=vmem, size = 0x400, scoped, tag = 'input window, operand 2, single buffered']
    #allocation8 [shape = 'u8[2048]{0}', space=vmem, size = 0x800, scoped, tag = 'output window, operand 0, single buffered']
    %8 = vsyncpa [#allocation3], 0
    %9 = vsyncpa [#allocation6], 0
    %10 = vsyncpa [#allocation4], 0
    // Predicated region
    $region2: #{resnet_block_forward.6} parent=1 // pred_check
      _
    $region3: #{resnet_block_forward.6} parent=1 // pred_check_branch
      %12 = sbr.rel (0) target = $region5
    $region4: #{resnet_block_forward.6} parent=1 // pred_region
      %s14 = ssub.s32 64, 64
      %15 = vsyncadd [#allocation3], %s14
      %s17 = sshll.u32 [#allocation2], 4
      %s18 = int_to_ptr.vmem [resolvable:$true] %s17
      %20 = dma.hbm_to_vmem [thread:$0]  %s0, 64, %s18, [#allocation3]
    $region5: #{resnet_block_forward.6} parent=1 // pred_fallthru
      _
    // Predicated region
    $region6: #{resnet_block_forward.6} parent=1 // pred_check
      _
    $region7: #{resnet_block_forward.6} parent=1 // pred_check_branch
      %22 = sbr.rel (0) target = $region9
    $region8: #{resnet_block_forward.6} parent=1 // pred_region
      %s24 = ssub.s32 16, 16
      %25 = vsyncadd [#allocation6], %s24
      %s27 = sshll.u32 [#allocation5], 4
      %s28 = int_to_ptr.vmem [resolvable:$true] %s27
      %30 = dma.hbm_to_vmem [thread:$0]  %s1, 16, %s28, [#allocation6]
    $region9: #{resnet_block_forward.6} parent=1 // pred_fallthru
      _
    // Predicated region
    $region10: #{resnet_block_forward.6} parent=1 // pred_check
      _
    $region11: #{resnet_block_forward.6} parent=1 // pred_check_branch
      %32 = sbr.rel (0) target = $region13
    $region12: #{resnet_block_forward.6} parent=1 // pred_region
      %s34 = ssub.s32 16, 16
      %35 = vsyncadd [#allocation6], %s34
      %s37 = sshll.u32 [#allocation7], 4
      %s38 = int_to_ptr.vmem [resolvable:$true] %s37
      %40 = dma.hbm_to_vmem [thread:$0]  %s2, 16, %s38, [#allocation6]
    $region13: #{resnet_block_forward.6} parent=1 // pred_fallthru
      _
    // Predicated region
    $region14: #{resnet_block_forward.6} parent=1 // pred_check
      _
    $region15: #{resnet_block_forward.6} parent=1 // pred_check_branch
      %42 = sbr.rel (0) target = $region17
    $region16: #{resnet_block_forward.6} parent=1 // pred_region
      %43 = dma.done [#allocation3], 64
    $region17: #{resnet_block_forward.6} parent=1 // pred_fallthru
      _
    // Predicated region
    $region18: #{resnet_block_forward.6} parent=1 // pred_check
      _
    $region19: #{resnet_block_forward.6} parent=1 // pred_check_branch
      %45 = sbr.rel (0) target = $region21
    $region20: #{resnet_block_forward.6} parent=1 // pred_region
      %46 = dma.done [#allocation6], 16
    $region21: #{resnet_block_forward.6} parent=1 // pred_fallthru
      _
    // Predicated region
    $region22: #{resnet_block_forward.6} parent=1 // pred_check
      _
    $region23: #{resnet_block_forward.6} parent=1 // pred_check_branch
      %48 = sbr.rel (0) target = $region25
    $region24: #{resnet_block_forward.6} parent=1 // pred_region
      %49 = dma.done [#allocation6], 16
    $region25: #{resnet_block_forward.6} parent=1 // pred_fallthru
      _
    %v50 = vld [vmem:[#allocation2] sm:$0xf]
    %v51 = vunpack.c.l.bf16 %v50
    %v52 = vld [vmem:[#allocation5] sm:$0x1]
    %v54 = vlaneseq
    %v55 = vshrl.u32 %v54, 7
    %v56 = vsub.s32 0, %v55
    %v57 = vrot.slane %v52, %v56
    %v59 = vmul.f32 %v51, %v57
    %v60 = vld [vmem:[#allocation7] sm:$0x1]
    %v62 = vlaneseq
    %v63 = vshrl.u32 %v62, 7
    %v64 = vsub.s32 0, %v63
    %v65 = vrot.slane %v60, %v64
    %v67 = vadd.f32 %v59, %v65
    %v68 = vmax.f32 %v67, 0.0
    %v69 = vpack.c.bf16 %v68, %v68
    %70 = vst [vmem:[#allocation8] sm:$0xf] %v69
    // Predicated region
    $region26: #{resnet_block_forward.6} parent=1 // pred_check
      _
    $region27: #{resnet_block_forward.6} parent=1 // pred_check_branch
      %72 = sbr.rel (0) target = $region29
    $region28: #{resnet_block_forward.6} parent=1 // pred_region
      %s74 = ssub.s32 64, 64
      %75 = vsyncadd [#allocation4], %s74
      %s77 = sshll.u32 [#allocation8], 4
      %s78 = int_to_ptr.vmem [resolvable:$true] %s77
      %80 = dma.vmem_to_hbm [thread:$0]  %s78, 64, %s3, [#allocation4]
    $region29: #{resnet_block_forward.6} parent=1 // pred_fallthru
      _
    // Predicated region
    $region30: #{resnet_block_forward.6} parent=1 // pred_check
      _
    $region31: #{resnet_block_forward.6} parent=1 // pred_check_branch
      %82 = sbr.rel (0) target = $region33
    $region32: #{resnet_block_forward.6} parent=1 // pred_region
      %83 = dma.done [#allocation4], 64
    $region33: #{resnet_block_forward.6} parent=1 // pred_fallthru
      _
    %84 = vsyncpa [#allocation3], 1
    %85 = vsyncpa [#allocation6], 1
    %86 = vsyncpa [#allocation4], 1

// kernel: resnet_block_forward.8
$region0: #{resnet_block_forward.8}
  #allocation0 [shape = 'u32[]', space=smem, size = 0x4, offset = 0x4, fixed_abs, tag = 'smem constant byte address 0x4 - core index']
  #allocation1 [shape = 'u32[144,128]{1,0:T(1,128)}', space=vmem, size = 0x12000, scoped, tag = 'internal scratch']
  %s0 = inlined_call_operand.hbm [shape: bf16[2,36,9,4], index: 0, kind: input, shape index: {}]
  %s1 = inlined_call_operand.hbm [shape: bf16[9,4,8], index: 1, kind: input, shape index: {}]
  %s2 = inlined_call_operand.hbm [shape: bf16[2,8,8,8], index: 2, kind: output, shape index: {0}]
  %s3 = inlined_call_operand.hbm [shape: f32[2,1,8], index: 3, kind: output, shape index: {1}]
  %s4 = inlined_call_operand.hbm [shape: f32[2,1,8], index: 4, kind: output, shape index: {2}]
  %5 = xla_tuple %s2, %s3, %s4
  %s6 = sld [smem:[#allocation0]]
  $region69: #{resnet_block_forward.8} parent=0
    _
  %s8 = ssub.s32 1, %s6
  %s9 = scalar_select 0, %s8, %s6
  $region1: #{resnet_block_forward.8} parent=0
    #allocation2 [shape = 'u8[294912]{0}', space=vmem, size = 0x48000, scoped, tag = 'input window, operand 0']
    #allocation3 [shape = 's32[2]{0}', space=sflag, size = 0x8, scoped, tag = 'scoped memory for resnet_block_forward.8']
    #allocation4 [shape = 's32[2]{0}', space=sflag, size = 0x8, scoped, tag = 'scoped memory for resnet_block_forward.8']
    #allocation5 [shape = 'u8[9216]{0}', space=vmem, size = 0x2400, scoped, tag = 'input window, operand 1, single buffered']
    #allocation6 [shape = 's32[1]{0}', space=sflag, size = 0x4, scoped, tag = 'scoped memory for resnet_block_forward.8']
    #allocation7 [shape = 'u8[4096]{0}', space=vmem, size = 0x1000, scoped, tag = 'output window, operand 0']
    #allocation8 [shape = 'u8[1024]{0}', space=vmem, size = 0x400, scoped, tag = 'output window, operand 1']
    #allocation9 [shape = 's32[2]{0}', space=sflag, size = 0x8, scoped, tag = 'scoped memory for resnet_block_forward.8']
    #allocation10 [shape = 'u8[1024]{0}', space=vmem, size = 0x400, scoped, tag = 'output window, operand 2']
    %10 = vsyncpa [#allocation3], 0
    %s11 = scalar_lea.sflag [#allocation3], 1
    %12 = vsyncpa %s11, 0
    %13 = vsyncpa [#allocation6], 0
    %14 = vsyncpa [#allocation4], 0
    %s15 = scalar_lea.sflag [#allocation4], 1
    %16 = vsyncpa %s15, 0
    %17 = vsyncpa [#allocation9], 0
    %s18 = scalar_lea.sflag [#allocation9], 1
    %19 = vsyncpa %s18, 0
    loop: start=0, step=1, limit=18
    $region2: #{resnet_block_forward.8} parent=1 // loop_pre_header
      _
    $region3: #{resnet_block_forward.8} parent=1 // loop_header
      %s21 = sphi 0, %s25
      %p22 = scmp.ge.s32.totalorder %s21, 18
      %s28 = sphi 0, %s40
      %s29 = sphi 0, %s36
      %s30 = sphi 0, %s28
      %s31 = sphi 0, %s29
      %s32 = sphi 0, %s30
      %s33 = sphi 0, %s31
      %s43 = sphi 0, %s45
      %s46 = sphi 0, %s43
      %s47 = sphi 0, %s46
      %s63 = sphi 0, %s47
      %s67 = sphi 0, %s67
      %s69 = sphi 0, %s67
      %s70 = sphi 0, %s69
      %s84 = sphi 0, %s70
      %s92 = sphi 0, %s94
      %s95 = sphi 0, %s92
      %s96 = sphi 0, %s95
      %s112 = sphi 0, %s96
      %s118 = sphi 0, %s120
      %s121 = sphi 0, %s118
      %s122 = sphi 0, %s121
      %s138 = sphi 0, %s122
      %s144 = sphi 0, %s146
      %s147 = sphi 0, %s144
      %s148 = sphi 0, %s147
      %s164 = sphi 0, %s148
    $region4: #{resnet_block_forward.8} parent=1 // loop_header_branch
      %24 = sbr.rel (%p22) target = $region8
    $region5: #{resnet_block_forward.8} parent=1 // loop_body
      %s26 = ssub.s32 %s21, 1
      %s27 = ssub.s32 %s21, 2
      %s34 = sadd.s32 1, %s29
      %p35 = scmp.ge.s32.totalorder %s34, 8
      %s36 = scalar_select %p35, 0, %s34
      %s37 = sadd.s32 1, %s28
      %s38 = scalar_select %p35, %s37, %s28
      %p39 = scmp.ge.s32.totalorder %s38, 2
      %s40 = scalar_select %p39, 0, %s38
      %s41 = ssub.s32 %s28, %s40
      %p42 = scmp.eq.s32.totalorder %s41, 0
      %s44 = sadd.s32 %s43, 1
      %s45 = scalar_select %p42, %s43, %s44
      %p48 = pneg %p42
      %p49 = scmp.eq.s32.totalorder %s21, 15
      %p50 = por %p48, %p49
      %p51 = scmp.ne.s32.totalorder %s43, %s46
      %p52 = scmp.eq.s32.totalorder %s21, 0
      %p53 = por %p51, %p52
      %p54 = scmp.ne.s32.totalorder %s43, %s46
      %p55 = scmp.eq.s32.totalorder %s26, 15
      %p56 = por %p54, %p55
      %p57 = scmp.ne.s32.totalorder %s46, %s47
      %p58 = scmp.eq.s32.totalorder %s26, 0
      %p59 = por %p57, %p58
      %p60 = scmp.ne.s32.totalorder %s46, %s47
      %p61 = scmp.eq.s32.totalorder %s27, 15
      %p62 = por %p60, %p61
      %p64 = scmp.ne.s32.totalorder %s47, %s63
      %p65 = scmp.eq.s32.totalorder %s27, 0
      %p66 = por %p64, %p65
      %s68 = sadd.s32 %s67, 1
      %p71 = scmp.eq.s32.totalorder %s21, 15
      %p72 = scmp.ne.s32.totalorder %s67, %s69
      %p73 = scmp.eq.s32.totalorder %s21, 0
      %p74 = por %p72, %p73
      %p75 = scmp.ne.s32.totalorder %s67, %s69
      %p76 = scmp.eq.s32.totalorder %s26, 15
      %p77 = por %p75, %p76
      %p78 = scmp.ne.s32.totalorder %s69, %s70
      %p79 = scmp.eq.s32.totalorder %s26, 0
      %p80 = por %p78, %p79
      %p81 = scmp.ne.s32.totalorder %s69, %s70
      %p82 = scmp.eq.s32.totalorder %s27, 15
      %p83 = por %p81, %p82
      %p85 = scmp.ne.s32.totalorder %s70, %s84
      %p86 = scmp.eq.s32.totalorder %s27, 0
      %p87 = por %p85, %p86
      %s88 = ssub.s32 %s28, %s40
      %s89 = ssub.s32 %s29, %s36
      %s90 = sor.u32 %s88, %s89
      %p91 = scmp.eq.s32.totalorder %s90, 0
      %s93 = sadd.s32 %s92, 1
      %s94 = scalar_select %p91, %s92, %s93
      %p97 = pneg %p91
      %p98 = scmp.eq.s32.totalorder %s21, 15
      %p99 = por %p97, %p98
      %p100 = scmp.ne.s32.totalorder %s92, %s95
      %p101 = scmp.eq.s32.totalorder %s21, 0
      %p102 = por %p100, %p101
      %p103 = scmp.ne.s32.totalorder %s92, %s95
      %p104 = scmp.eq.s32.totalorder %s26, 15
      %p105 = por %p103, %p104
      %p106 = scmp.ne.s32.totalorder %s95, %s96
      %p107 = scmp.eq.s32.totalorder %s26, 0
      %p108 = por %p106, %p107
      %p109 = scmp.ne.s32.totalorder %s95, %s96
      %p110 = scmp.eq.s32.totalorder %s27, 15
      %p111 = por %p109, %p110
      %p113 = scmp.ne.s32.totalorder %s96, %s112
      %p114 = scmp.eq.s32.totalorder %s27, 0
      %p115 = por %p113, %p114
      %s116 = ssub.s32 %s28, %s40
      %p117 = scmp.eq.s32.totalorder %s116, 0
      %s119 = sadd.s32 %s118, 1
      %s120 = scalar_select %p117, %s118, %s119
      %p123 = pneg %p117
      %p124 = scmp.eq.s32.totalorder %s21, 15
      %p125 = por %p123, %p124
      %p126 = scmp.ne.s32.totalorder %s118, %s121
      %p127 = scmp.eq.s32.totalorder %s21, 0
      %p128 = por %p126, %p127
      %p129 = scmp.ne.s32.totalorder %s118, %s121
      %p130 = scmp.eq.s32.totalorder %s26, 15
      %p131 = por %p129, %p130
      %p132 = scmp.ne.s32.totalorder %s121, %s122
      %p133 = scmp.eq.s32.totalorder %s26, 0
      %p134 = por %p132, %p133
      %p135 = scmp.ne.s32.totalorder %s121, %s122
      %p136 = scmp.eq.s32.totalorder %s27, 15
      %p137 = por %p135, %p136
      %p139 = scmp.ne.s32.totalorder %s122, %s138
      %p140 = scmp.eq.s32.totalorder %s27, 0
      %p141 = por %p139, %p140
      %s142 = ssub.s32 %s28, %s40
      %p143 = scmp.eq.s32.totalorder %s142, 0
      %s145 = sadd.s32 %s144, 1
      %s146 = scalar_select %p143, %s144, %s145
      %p149 = pneg %p143
      %p150 = scmp.eq.s32.totalorder %s21, 15
      %p151 = por %p149, %p150
      %p152 = scmp.ne.s32.totalorder %s144, %s147
      %p153 = scmp.eq.s32.totalorder %s21, 0
      %p154 = por %p152, %p153
      %p155 = scmp.ne.s32.totalorder %s144, %s147
      %p156 = scmp.eq.s32.totalorder %s26, 15
      %p157 = por %p155, %p156
      %p158 = scmp.ne.s32.totalorder %s147, %s148
      %p159 = scmp.eq.s32.totalorder %s26, 0
      %p160 = por %p158, %p159
      %p161 = scmp.ne.s32.totalorder %s147, %s148
      %p162 = scmp.eq.s32.totalorder %s27, 15
      %p163 = por %p161, %p162
      %p165 = scmp.ne.s32.totalorder %s148, %s164
      %p166 = scmp.eq.s32.totalorder %s27, 0
      %p167 = por %p165, %p166
      %p168 = scmp.le.s32.totalorder 1, %s21
      %p169 = scmp.lt.s32.totalorder %s21, 17
      %p170 = pnand %p168, %p169
      %p171 = pneg %p170
      // Predicated region
      $region9: #{resnet_block_forward.8} parent=5 // pred_check
        _
      $region10: #{resnet_block_forward.8} parent=5 // pred_check_branch
        %173 = sbr.rel (%p170) target = $region12
      $region11: #{resnet_block_forward.8} parent=5 // pred_region
        %s174 = ssub.s32 %s21, 1
        // Predicated region
        $region13: #{resnet_block_forward.8} parent=11 // pred_check
          %p175 = pneg %p80
        $region14: #{resnet_block_forward.8} parent=11 // pred_check_branch
          %177 = sbr.rel (%p175) target = $region16
        $region15: #{resnet_block_forward.8} parent=11 // pred_region
          %s179 = ssub.s32 288, 288
          %180 = vsyncadd [#allocation6], %s179
          %s181 = sshll.u32 [#allocation5], 4
          %s182 = int_to_ptr.vmem [resolvable:$true] %s181
          %187 = dma.hbm_to_vmem [thread:$0]  %s1, 288, %s182, [#allocation6], 32, 32, 2
        $region16: #{resnet_block_forward.8} parent=11 // pred_fallthru
          _
      $region12: #{resnet_block_forward.8} parent=5 // pred_fallthru
        _
      %p188 = scmp.lt.s32.totalorder %s21, 16
      // Predicated region
      $region17: #{resnet_block_forward.8} parent=5 // pred_check
        %p189 = pneg %p188
      $region18: #{resnet_block_forward.8} parent=5 // pred_check_branch
        %191 = sbr.rel (%p189) target = $region20
      $region19: #{resnet_block_forward.8} parent=5 // pred_region
        // Predicated region
        $region21: #{resnet_block_forward.8} parent=19 // pred_check
          %p192 = pneg %p53
        $region22: #{resnet_block_forward.8} parent=19 // pred_check_branch
          %194 = sbr.rel (%p192) target = $region24
        $region23: #{resnet_block_forward.8} parent=19 // pred_region
          %s195 = sand.u32 %s43, 1
          %s196 = scalar_lea.sflag [#allocation3], %s195
          %s197 = sand.u32 %s43, 1
          %s198 = smul.addr %s197, 288
          %s199 = scalar_lea.vmem [#allocation2], %s198
          %s201 = ssub.s32 4608, 4608
          %202 = vsyncadd %s196, %s201
          %s203 = smul.addr %s28, 72
          %s204 = smul.addr %s203, 64
          %s205 = scalar_lea.hbm %s0, %s204
          %s206 = sshll.u32 %s199, 4
          %s207 = int_to_ptr.vmem [resolvable:$true] %s206
          %212 = dma.hbm_to_vmem [thread:$0]  %s205, 4608, %s207, %s196, 64, 64, 4
        $region24: #{resnet_block_forward.8} parent=19 // pred_fallthru
          _
      $region20: #{resnet_block_forward.8} parent=5 // pred_fallthru
        _
      %p213 = scmp.le.s32.totalorder 1, %s21
      %p214 = scmp.lt.s32.totalorder %s21, 17
      %p215 = pnand %p213, %p214
      %p216 = pneg %p215
      // Predicated region
      $region25: #{resnet_block_forward.8} parent=5 // pred_check
        _
      $region26: #{resnet_block_forward.8} parent=5 // pred_check_branch
        %218 = sbr.rel (%p215) target = $region28
      $region27: #{resnet_block_forward.8} parent=5 // pred_region
        %s219 = ssub.s32 %s21, 1
        %s220 = sand.u32 %s46, 1
        %s221 = scalar_lea.sflag [#allocation3], %s220
        %s222 = sand.u32 %s46, 1
        %s223 = smul.addr %s222, 288
        %s224 = scalar_lea.vmem [#allocation2], %s223
        // Predicated region
        $region29: #{resnet_block_forward.8} parent=27 // pred_check
          %p225 = pneg %p59
        $region30: #{resnet_block_forward.8} parent=27 // pred_check_branch
          %227 = sbr.rel (%p225) target = $region32
        $region31: #{resnet_block_forward.8} parent=27 // pred_region
          %228 = dma.done %s221, 4608
        $region32: #{resnet_block_forward.8} parent=27 // pred_fallthru
          _
        // Predicated region
        $region33: #{resnet_block_forward.8} parent=27 // pred_check
          %p229 = pneg %p80
        $region34: #{resnet_block_forward.8} parent=27 // pred_check_branch
          %231 = sbr.rel (%p229) target = $region36
        $region35: #{resnet_block_forward.8} parent=27 // pred_region
          %232 = dma.done [#allocation6], 288
        $region36: #{resnet_block_forward.8} parent=27 // pred_fallthru
          _
        %s233 = sand.u32 %s46, 1
        %s234 = scalar_lea.sflag [#allocation3], %s233
        %s235 = sand.u32 %s46, 1
        %s236 = smul.addr %s235, 288
        %s237 = scalar_lea.vmem [#allocation2], %s236
        %p238 = pneg %p59
        %p239 = pneg %p56
        %p240 = pneg %p80
        %p241 = pneg %p77
        %p242 = pneg %p108
        %p243 = pneg %p105
        %s244 = sand.u32 %s95, 1
        %s245 = scalar_lea.sflag [#allocation4], %s244
        %s246 = sand.u32 %s95, 1
        %s247 = smul.addr %s246, 4
        %s248 = scalar_lea.vmem [#allocation7], %s247
        %p249 = pneg %p134
        %p250 = pneg %p131
        %s251 = sand.u32 %s26, 1
        %s252 = scalar_lea.sflag [#allocation9], %s251
        %s253 = sand.u32 %s121, 1
        %s254 = scalar_lea.vmem [#allocation8], %s253
        %p255 = pneg %p160
        %p256 = pneg %p157
        %s257 = sand.u32 %s26, 1
        %s258 = scalar_lea.sflag [#allocation9], %s257
        %s259 = sand.u32 %s147, 1
        %s260 = scalar_lea.vmem [#allocation10], %s259
        %p262 = scmp.eq.s32.totalorder %s31, 0
        // Predicated region
        $region37: #{resnet_block_forward.8} parent=27 // pred_check
          %p263 = pneg %p262
        $region38: #{resnet_block_forward.8} parent=27 // pred_check_branch
          %265 = sbr.rel (%p263) target = $region40
        $region39: #{resnet_block_forward.8} parent=27 // pred_region
          %vm266 = vcmask 57344
          %267 = vst.msk [vmem:[%s254] sm:$0x1] %vm266, 0.0
          %268 = vst.msk [vmem:[%s260] sm:$0x1] %vm266, 0.0
        $region40: #{resnet_block_forward.8} parent=27 // pred_fallthru
          _
        %s269 = smul.u32 %s31, 4
        %s270 = smul.u32 %s269, 2
        %s271 = smul.addr %s270, 4
        %s272 = scalar_lea.vmem %s224, %s271 [#allocation2]
        %v273 = vld [vmem:[%s272] sm:$0xf]
        %v274 = vld [vmem:[#allocation5] sm:$0x3]
        %s275 = sadd.s32 %s269, 1
        %s276 = smul.u32 %s275, 2
        %s277 = smul.addr %s276, 4
        %s278 = scalar_lea.vmem %s224, %s277 [#allocation2]
        %v279 = vld [vmem:[%s278] sm:$0xf]
        %s280 = scalar_lea.vmem [#allocation5], 2
        %v281 = vld [vmem:[%s280] sm:$0x3]
        %vm282 = vcmask 31744
        %v284 = vsel %vm282, %v279, 0
        %vm286 = vcmask 1041408
        %v288 = vsel %vm286, %v281, 0
        %290 = vmatprep.subr.bf16.mxu0 0
        %291 = vmatpush1.bf16.msra.mxu0 %v288
        %292 = vmatprep.subr.bf16.mxu0 0
        %293 = vmatpush1.bf16.msra.mxu0 0
        %294 = vmatprep.subr.bf16.mxu0 0
        %295 = vmatpush1.bf16.msra.mxu0 0
        %296 = vmatprep.subr.bf16.mxu0 0
        %297 = vmatpush1.bf16.msra.mxu0 0
        %298 = vmatprep.subr.bf16.mxu0 0
        %299 = vmatpush1.bf16.msra.mxu0 0
        %300 = vmatprep.subr.bf16.mxu0 0
        %301 = vmatpush1.bf16.msra.mxu0 0
        %302 = vmatprep.subr.bf16.mxu0 0
        %303 = vmatpush1.bf16.msra.mxu0 0
        %304 = vmatprep.subr.bf16.mxu0 0
        %305 = vmatpush1.bf16.msra.mxu0 0
        %306 = vmatprep.subr.bf16.mxu0 0
        %307 = vmatpush1.bf16.msra.mxu0 0
        %308 = vmatprep.subr.bf16.mxu0 0
        %309 = vmatpush1.bf16.msra.mxu0 0
        %310 = vmatprep.subr.bf16.mxu0 0
        %311 = vmatpush1.bf16.msra.mxu0 0
        %312 = vmatprep.subr.bf16.mxu0 0
        %313 = vmatpush1.bf16.msra.mxu0 0
        %314 = vmatprep.subr.bf16.mxu0 0
        %315 = vmatpush1.bf16.msra.mxu0 0
        %316 = vmatprep.subr.bf16.mxu0 0
        %317 = vmatpush1.bf16.msra.mxu0 0
        %318 = vmatprep.subr.bf16.mxu0 0
        %319 = vmatpush1.bf16.msra.mxu0 0
        %320 = vmatprep.subr.bf16.mxu0 0
        %321 = vmatpush1.bf16.msra.mxu0 0
        %322 = vmatprep.mubr.bf16.mxu0 0
        %323 = vmatmul.mubr.bf16.gmra.mrb[0].mxu0 %v284
        %v324 = vpop.f32.mrb[0].mxu0
        %v325 = vadd.f32 0.0, %v324
        %v326 = vpop.f32.mrb[0].mxu0
        %v327 = vpop.f32.mrb[0].mxu0
        %v328 = vpop.f32.mrb[0].mxu0
        %329 = vdwg.mxu0
        %v331 = vsel %vm282, %v273, 0
        %v334 = vsel %vm286, %v274, 0
        %336 = vmatprep.subr.bf16.mxu0 0
        %337 = vmatpush1.bf16.msra.mxu0 %v334
        %338 = vmatprep.subr.bf16.mxu0 0
        %339 = vmatpush1.bf16.msra.mxu0 0
        %340 = vmatprep.subr.bf16.mxu0 0
        %341 = vmatpush1.bf16.msra.mxu0 0
        %342 = vmatprep.subr.bf16.mxu0 0
        %343 = vmatpush1.bf16.msra.mxu0 0
        %344 = vmatprep.subr.bf16.mxu0 0
        %345 = vmatpush1.bf16.msra.mxu0 0
        %346 = vmatprep.subr.bf16.mxu0 0
        %347 = vmatpush1.bf16.msra.mxu0 0
        %348 = vmatprep.subr.bf16.mxu0 0
        %349 = vmatpush1.bf16.msra.mxu0 0
        %350 = vmatprep.subr.bf16.mxu0 0
        %351 = vmatpush1.bf16.msra.mxu0 0
        %352 = vmatprep.subr.bf16.mxu0 0
        %353 = vmatpush1.bf16.msra.mxu0 0
        %354 = vmatprep.subr.bf16.mxu0 0
        %355 = vmatpush1.bf16.msra.mxu0 0
        %356 = vmatprep.subr.bf16.mxu0 0
        %357 = vmatpush1.bf16.msra.mxu0 0
        %358 = vmatprep.subr.bf16.mxu0 0
        %359 = vmatpush1.bf16.msra.mxu0 0
        %360 = vmatprep.subr.bf16.mxu0 0
        %361 = vmatpush1.bf16.msra.mxu0 0
        %362 = vmatprep.subr.bf16.mxu0 0
        %363 = vmatpush1.bf16.msra.mxu0 0
        %364 = vmatprep.subr.bf16.mxu0 0
        %365 = vmatpush1.bf16.msra.mxu0 0
        %366 = vmatprep.subr.bf16.mxu0 0
        %367 = vmatpush1.bf16.msra.mxu0 0
        %368 = vmatprep.mubr.bf16.mxu0 0
        %369 = vmatmul.mubr.bf16.gmra.mrb[0].mxu0 %v331
        %v370 = vpop.f32.mrb[0].mxu0
        %v371 = vadd.f32 %v325, %v370
        %v372 = vpop.f32.mrb[0].mxu0
        %v373 = vpop.f32.mrb[0].mxu0
        %v374 = vpop.f32.mrb[0].mxu0
        %375 = vdwg.mxu0
        %v376 = vld [vmem:[%s272] sm:$0xf]
        %v377 = vld [vmem:[%s272 + $0x4] sm:$0x1]
        %s378 = scalar_lea.vmem [#allocation5], 4
        %v379 = vld [vmem:[%s378] sm:$0x3]
        %v382 = vunpack.c.l.b16 %v376
        %v383 = vunpack.c.l.b16 %v377
        %v384 = vpack.c.b16 %v383, %v382
        %v386 = vshrl.u32 %v384, 16
        %v388 = vshll.u32 %v384, 16
        %v390 = vrot.slane %v388, 1
        %v391 = vor.u32 %v386, %v390
        %v393 = vsel %vm282, %v391, 0
        %v396 = vsel %vm286, %v379, 0
        %398 = vmatprep.subr.bf16.mxu0 0
        %399 = vmatpush1.bf16.msra.mxu0 %v396
        %400 = vmatprep.subr.bf16.mxu0 0
        %401 = vmatpush1.bf16.msra.mxu0 0
        %402 = vmatprep.subr.bf16.mxu0 0
        %403 = vmatpush1.bf16.msra.mxu0 0
        %404 = vmatprep.subr.bf16.mxu0 0
        %405 = vmatpush1.bf16.msra.mxu0 0
        %406 = vmatprep.subr.bf16.mxu0 0
        %407 = vmatpush1.bf16.msra.mxu0 0
        %408 = vmatprep.subr.bf16.mxu0 0
        %409 = vmatpush1.bf16.msra.mxu0 0
        %410 = vmatprep.subr.bf16.mxu0 0
        %411 = vmatpush1.bf16.msra.mxu0 0
        %412 = vmatprep.subr.bf16.mxu0 0
        %413 = vmatpush1.bf16.msra.mxu0 0
        %414 = vmatprep.subr.bf16.mxu0 0
        %415 = vmatpush1.bf16.msra.mxu0 0
        %416 = vmatprep.subr.bf16.mxu0 0
        %417 = vmatpush1.bf16.msra.mxu0 0
        %418 = vmatprep.subr.bf16.mxu0 0
        %419 = vmatpush1.bf16.msra.mxu0 0
        %420 = vmatprep.subr.bf16.mxu0 0
        %421 = vmatpush1.bf16.msra.mxu0 0
        %422 = vmatprep.subr.bf16.mxu0 0
        %423 = vmatpush1.bf16.msra.mxu0 0
        %424 = vmatprep.subr.bf16.mxu0 0
        %425 = vmatpush1.bf16.msra.mxu0 0
        %426 = vmatprep.subr.bf16.mxu0 0
        %427 = vmatpush1.bf16.msra.mxu0 0
        %428 = vmatprep.subr.bf16.mxu0 0
        %429 = vmatpush1.bf16.msra.mxu0 0
        %430 = vmatprep.mubr.bf16.mxu0 0
        %431 = vmatmul.mubr.bf16.gmra.mrb[0].mxu0 %v393
        %v432 = vpop.f32.mrb[0].mxu0
        %v433 = vadd.f32 0.0, %v432
        %v434 = vpop.f32.mrb[0].mxu0
        %v435 = vpop.f32.mrb[0].mxu0
        %v436 = vpop.f32.mrb[0].mxu0
        %437 = vdwg.mxu0
        %v438 = vadd.f32 %v371, %v433
        %s439 = smul.u32 %s31, 2
        %s440 = sadd.s32 %s439, 1
        %s441 = smul.u32 %s440, 2
        %s442 = smul.u32 %s441, 2
        %s443 = smul.addr %s442, 4
        %s444 = scalar_lea.vmem %s224, %s443 [#allocation2]
        %v445 = vld [vmem:[%s444] sm:$0xf]
        %s446 = scalar_lea.vmem [#allocation5], 6
        %v447 = vld [vmem:[%s446] sm:$0x3]
        %v449 = vsel %vm282, %v445, 0
        %v452 = vsel %vm286, %v447, 0
        %454 = vmatprep.subr.bf16.mxu0 0
        %455 = vmatpush1.bf16.msra.mxu0 %v452
        %456 = vmatprep.subr.bf16.mxu0 0
        %457 = vmatpush1.bf16.msra.mxu0 0
        %458 = vmatprep.subr.bf16.mxu0 0
        %459 = vmatpush1.bf16.msra.mxu0 0
        %460 = vmatprep.subr.bf16.mxu0 0
        %461 = vmatpush1.bf16.msra.mxu0 0
        %462 = vmatprep.subr.bf16.mxu0 0
        %463 = vmatpush1.bf16.msra.mxu0 0
        %464 = vmatprep.subr.bf16.mxu0 0
        %465 = vmatpush1.bf16.msra.mxu0 0
        %466 = vmatprep.subr.bf16.mxu0 0
        %467 = vmatpush1.bf16.msra.mxu0 0
        %468 = vmatprep.subr.bf16.mxu0 0
        %469 = vmatpush1.bf16.msra.mxu0 0
        %470 = vmatprep.subr.bf16.mxu0 0
        %471 = vmatpush1.bf16.msra.mxu0 0
        %472 = vmatprep.subr.bf16.mxu0 0
        %473 = vmatpush1.bf16.msra.mxu0 0
        %474 = vmatprep.subr.bf16.mxu0 0
        %475 = vmatpush1.bf16.msra.mxu0 0
        %476 = vmatprep.subr.bf16.mxu0 0
        %477 = vmatpush1.bf16.msra.mxu0 0
        %478 = vmatprep.subr.bf16.mxu0 0
        %479 = vmatpush1.bf16.msra.mxu0 0
        %480 = vmatprep.subr.bf16.mxu0 0
        %481 = vmatpush1.bf16.msra.mxu0 0
        %482 = vmatprep.subr.bf16.mxu0 0
        %483 = vmatpush1.bf16.msra.mxu0 0
        %484 = vmatprep.subr.bf16.mxu0 0
        %485 = vmatpush1.bf16.msra.mxu0 0
        %486 = vmatprep.mubr.bf16.mxu0 0
        %487 = vmatmul.mubr.bf16.gmra.mrb[0].mxu0 %v449
        %v488 = vpop.f32.mrb[0].mxu0
        %v489 = vadd.f32 0.0, %v488
        %v490 = vpop.f32.mrb[0].mxu0
        %v491 = vpop.f32.mrb[0].mxu0
        %v492 = vpop.f32.mrb[0].mxu0
        %493 = vdwg.mxu0
        %v494 = vadd.f32 %v438, %v489
        %s495 = sadd.s32 %s441, 1
        %s496 = smul.u32 %s495, 2
        %s497 = smul.addr %s496, 4
        %s498 = scalar_lea.vmem %s224, %s497 [#allocation2]
        %v499 = vld [vmem:[%s498] sm:$0xf]
        %s500 = scalar_lea.vmem [#allocation5], 8
        %v501 = vld [vmem:[%s500] sm:$0x3]
        %v503 = vsel %vm282, %v499, 0
        %v506 = vsel %vm286, %v501, 0
        %508 = vmatprep.subr.bf16.mxu0 0
        %509 = vmatpush1.bf16.msra.mxu0 %v506
        %510 = vmatprep.subr.bf16.mxu0 0
        %511 = vmatpush1.bf16.msra.mxu0 0
        %512 = vmatprep.subr.bf16.mxu0 0
        %513 = vmatpush1.bf16.msra.mxu0 0
        %514 = vmatprep.subr.bf16.mxu0 0
        %515 = vmatpush1.bf16.msra.mxu0 0
        %516 = vmatprep.subr.bf16.mxu0 0
        %517 = vmatpush1.bf16.msra.mxu0 0
        %518 = vmatprep.subr.bf16.mxu0 0
        %519 = vmatpush1.bf16.msra.mxu0 0
        %520 = vmatprep.subr.bf16.mxu0 0
        %521 = vmatpush1.bf16.msra.mxu0 0
        %522 = vmatprep.subr.bf16.mxu0 0
        %523 = vmatpush1.bf16.msra.mxu0 0
        %524 = vmatprep.subr.bf16.mxu0 0
        %525 = vmatpush1.bf16.msra.mxu0 0
        %526 = vmatprep.subr.bf16.mxu0 0
        %527 = vmatpush1.bf16.msra.mxu0 0
        %528 = vmatprep.subr.bf16.mxu0 0
        %529 = vmatpush1.bf16.msra.mxu0 0
        %530 = vmatprep.subr.bf16.mxu0 0
        %531 = vmatpush1.bf16.msra.mxu0 0
        %532 = vmatprep.subr.bf16.mxu0 0
        %533 = vmatpush1.bf16.msra.mxu0 0
        %534 = vmatprep.subr.bf16.mxu0 0
        %535 = vmatpush1.bf16.msra.mxu0 0
        %536 = vmatprep.subr.bf16.mxu0 0
        %537 = vmatpush1.bf16.msra.mxu0 0
        %538 = vmatprep.subr.bf16.mxu0 0
        %539 = vmatpush1.bf16.msra.mxu0 0
        %540 = vmatprep.mubr.bf16.mxu0 0
        %541 = vmatmul.mubr.bf16.gmra.mrb[0].mxu0 %v503
        %v542 = vpop.f32.mrb[0].mxu0
        %v543 = vadd.f32 0.0, %v542
        %v544 = vpop.f32.mrb[0].mxu0
        %v545 = vpop.f32.mrb[0].mxu0
        %v546 = vpop.f32.mrb[0].mxu0
        %547 = vdwg.mxu0
        %v548 = vadd.f32 %v494, %v543
        %v549 = vld [vmem:[%s444] sm:$0xf]
        %v550 = vld [vmem:[%s444 + $0x4] sm:$0x1]
        %s551 = scalar_lea.vmem [#allocation5], 10
        %v552 = vld [vmem:[%s551] sm:$0x3]
        %v555 = vunpack.c.l.b16 %v549
        %v556 = vunpack.c.l.b16 %v550
        %v557 = vpack.c.b16 %v556, %v555
        %v559 = vshrl.u32 %v557, 16
        %v561 = vshll.u32 %v557, 16
        %v563 = vrot.slane %v561, 1
        %v564 = vor.u32 %v559, %v563
        %v566 = vsel %vm282, %v564, 0
        %v569 = vsel %vm286, %v552, 0
        %571 = vmatprep.subr.bf16.mxu0 0
        %572 = vmatpush1.bf16.msra.mxu0 %v569
        %573 = vmatprep.subr.bf16.mxu0 0
        %574 = vmatpush1.bf16.msra.mxu0 0
        %575 = vmatprep.subr.bf16.mxu0 0
        %576 = vmatpush1.bf16.msra.mxu0 0
        %577 = vmatprep.subr.bf16.mxu0 0
        %578 = vmatpush1.bf16.msra.mxu0 0
        %579 = vmatprep.subr.bf16.mxu0 0
        %580 = vmatpush1.bf16.msra.mxu0 0
        %581 = vmatprep.subr.bf16.mxu0 0
        %582 = vmatpush1.bf16.msra.mxu0 0
        %583 = vmatprep.subr.bf16.mxu0 0
        %584 = vmatpush1.bf16.msra.mxu0 0
        %585 = vmatprep.subr.bf16.mxu0 0
        %586 = vmatpush1.bf16.msra.mxu0 0
        %587 = vmatprep.subr.bf16.mxu0 0
        %588 = vmatpush1.bf16.msra.mxu0 0
        %589 = vmatprep.subr.bf16.mxu0 0
        %590 = vmatpush1.bf16.msra.mxu0 0
        %591 = vmatprep.subr.bf16.mxu0 0
        %592 = vmatpush1.bf16.msra.mxu0 0
        %593 = vmatprep.subr.bf16.mxu0 0
        %594 = vmatpush1.bf16.msra.mxu0 0
        %595 = vmatprep.subr.bf16.mxu0 0
        %596 = vmatpush1.bf16.msra.mxu0 0
        %597 = vmatprep.subr.bf16.mxu0 0
        %598 = vmatpush1.bf16.msra.mxu0 0
        %599 = vmatprep.subr.bf16.mxu0 0
        %600 = vmatpush1.bf16.msra.mxu0 0
        %601 = vmatprep.subr.bf16.mxu0 0
        %602 = vmatpush1.bf16.msra.mxu0 0
        %603 = vmatprep.mubr.bf16.mxu0 0
        %604 = vmatmul.mubr.bf16.gmra.mrb[0].mxu0 %v566
        %v605 = vpop.f32.mrb[0].mxu0
        %v606 = vadd.f32 0.0, %v605
        %v607 = vpop.f32.mrb[0].mxu0
        %v608 = vpop.f32.mrb[0].mxu0
        %v609 = vpop.f32.mrb[0].mxu0
        %610 = vdwg.mxu0
        %v611 = vadd.f32 %v548, %v606
        %s612 = sadd.s32 %s439, 2
        %s613 = smul.u32 %s612, 2
        %s614 = smul.u32 %s613, 2
        %s615 = smul.addr %s614, 4
        %s616 = scalar_lea.vmem %s224, %s615 [#allocation2]
        %v617 = vld [vmem:[%s616] sm:$0xf]
        %s618 = scalar_lea.vmem [#allocation5], 12
        %v619 = vld [vmem:[%s618] sm:$0x3]
        %v621 = vsel %vm282, %v617, 0
        %v624 = vsel %vm286, %v619, 0
        %626 = vmatprep.subr.bf16.mxu0 0
        %627 = vmatpush1.bf16.msra.mxu0 %v624
        %628 = vmatprep.subr.bf16.mxu0 0
        %629 = vmatpush1.bf16.msra.mxu0 0
        %630 = vmatprep.subr.bf16.mxu0 0
        %631 = vmatpush1.bf16.msra.mxu0 0
        %632 = vmatprep.subr.bf16.mxu0 0
        %633 = vmatpush1.bf16.msra.mxu0 0
        %634 = vmatprep.subr.bf16.mxu0 0
        %635 = vmatpush1.bf16.msra.mxu0 0
        %636 = vmatprep.subr.bf16.mxu0 0
        %637 = vmatpush1.bf16.msra.mxu0 0
        %638 = vmatprep.subr.bf16.mxu0 0
        %639 = vmatpush1.bf16.msra.mxu0 0
        %640 = vmatprep.subr.bf16.mxu0 0
        %641 = vmatpush1.bf16.msra.mxu0 0
        %642 = vmatprep.subr.bf16.mxu0 0
        %643 = vmatpush1.bf16.msra.mxu0 0
        %644 = vmatprep.subr.bf16.mxu0 0
        %645 = vmatpush1.bf16.msra.mxu0 0
        %646 = vmatprep.subr.bf16.mxu0 0
        %647 = vmatpush1.bf16.msra.mxu0 0
        %648 = vmatprep.subr.bf16.mxu0 0
        %649 = vmatpush1.bf16.msra.mxu0 0
        %650 = vmatprep.subr.bf16.mxu0 0
        %651 = vmatpush1.bf16.msra.mxu0 0
        %652 = vmatprep.subr.bf16.mxu0 0
        %653 = vmatpush1.bf16.msra.mxu0 0
        %654 = vmatprep.subr.bf16.mxu0 0
        %655 = vmatpush1.bf16.msra.mxu0 0
        %656 = vmatprep.subr.bf16.mxu0 0
        %657 = vmatpush1.bf16.msra.mxu0 0
        %658 = vmatprep.mubr.bf16.mxu0 0
        %659 = vmatmul.mubr.bf16.gmra.mrb[0].mxu0 %v621
        %v660 = vpop.f32.mrb[0].mxu0
        %v661 = vadd.f32 0.0, %v660
        %v662 = vpop.f32.mrb[0].mxu0
        %v663 = vpop.f32.mrb[0].mxu0
        %v664 = vpop.f32.mrb[0].mxu0
        %665 = vdwg.mxu0
        %v666 = vadd.f32 %v611, %v661
        %s667 = sadd.s32 %s613, 1
        %s668 = smul.u32 %s667, 2
        %s669 = smul.addr %s668, 4
        %s670 = scalar_lea.vmem %s224, %s669 [#allocation2]
        %v671 = vld [vmem:[%s670] sm:$0xf]
        %s672 = scalar_lea.vmem [#allocation5], 14
        %v673 = vld [vmem:[%s672] sm:$0x3]
        %v675 = vsel %vm282, %v671, 0
        %v678 = vsel %vm286, %v673, 0
        %680 = vmatprep.subr.bf16.mxu0 0
        %681 = vmatpush1.bf16.msra.mxu0 %v678
        %682 = vmatprep.subr.bf16.mxu0 0
        %683 = vmatpush1.bf16.msra.mxu0 0
        %684 = vmatprep.subr.bf16.mxu0 0
        %685 = vmatpush1.bf16.msra.mxu0 0
        %686 = vmatprep.subr.bf16.mxu0 0
        %687 = vmatpush1.bf16.msra.mxu0 0
        %688 = vmatprep.subr.bf16.mxu0 0
        %689 = vmatpush1.bf16.msra.mxu0 0
        %690 = vmatprep.subr.bf16.mxu0 0
        %691 = vmatpush1.bf16.msra.mxu0 0
        %692 = vmatprep.subr.bf16.mxu0 0
        %693 = vmatpush1.bf16.msra.mxu0 0
        %694 = vmatprep.subr.bf16.mxu0 0
        %695 = vmatpush1.bf16.msra.mxu0 0
        %696 = vmatprep.subr.bf16.mxu0 0
        %697 = vmatpush1.bf16.msra.mxu0 0
        %698 = vmatprep.subr.bf16.mxu0 0
        %699 = vmatpush1.bf16.msra.mxu0 0
        %700 = vmatprep.subr.bf16.mxu0 0
        %701 = vmatpush1.bf16.msra.mxu0 0
        %702 = vmatprep.subr.bf16.mxu0 0
        %703 = vmatpush1.bf16.msra.mxu0 0
        %704 = vmatprep.subr.bf16.mxu0 0
        %705 = vmatpush1.bf16.msra.mxu0 0
        %706 = vmatprep.subr.bf16.mxu0 0
        %707 = vmatpush1.bf16.msra.mxu0 0
        %708 = vmatprep.subr.bf16.mxu0 0
        %709 = vmatpush1.bf16.msra.mxu0 0
        %710 = vmatprep.subr.bf16.mxu0 0
        %711 = vmatpush1.bf16.msra.mxu0 0
        %712 = vmatprep.mubr.bf16.mxu0 0
        %713 = vmatmul.mubr.bf16.gmra.mrb[0].mxu0 %v675
        %v714 = vpop.f32.mrb[0].mxu0
        %v715 = vadd.f32 0.0, %v714
        %v716 = vpop.f32.mrb[0].mxu0
        %v717 = vpop.f32.mrb[0].mxu0
        %v718 = vpop.f32.mrb[0].mxu0
        %719 = vdwg.mxu0
        %v720 = vadd.f32 %v666, %v715
        %v721 = vld [vmem:[%s616] sm:$0xf]
        %v722 = vld [vmem:[%s616 + $0x4] sm:$0x1]
        %s723 = scalar_lea.vmem [#allocation5], 16
        %v724 = vld [vmem:[%s723] sm:$0x3]
        %v727 = vunpack.c.l.b16 %v721
        %v728 = vunpack.c.l.b16 %v722
        %v729 = vpack.c.b16 %v728, %v727
        %v731 = vshrl.u32 %v729, 16
        %v733 = vshll.u32 %v729, 16
        %v735 = vrot.slane %v733, 1
        %v736 = vor.u32 %v731, %v735
        %v738 = vsel %vm282, %v736, 0
        %v741 = vsel %vm286, %v724, 0
        %743 = vmatprep.subr.bf16.mxu0 0
        %744 = vmatpush1.bf16.msra.mxu0 %v741
        %745 = vmatprep.subr.bf16.mxu0 0
        %746 = vmatpush1.bf16.msra.mxu0 0
        %747 = vmatprep.subr.bf16.mxu0 0
        %748 = vmatpush1.bf16.msra.mxu0 0
        %749 = vmatprep.subr.bf16.mxu0 0
        %750 = vmatpush1.bf16.msra.mxu0 0
        %751 = vmatprep.subr.bf16.mxu0 0
        %752 = vmatpush1.bf16.msra.mxu0 0
        %753 = vmatprep.subr.bf16.mxu0 0
        %754 = vmatpush1.bf16.msra.mxu0 0
        %755 = vmatprep.subr.bf16.mxu0 0
        %756 = vmatpush1.bf16.msra.mxu0 0
        %757 = vmatprep.subr.bf16.mxu0 0
        %758 = vmatpush1.bf16.msra.mxu0 0
        %759 = vmatprep.subr.bf16.mxu0 0
        %760 = vmatpush1.bf16.msra.mxu0 0
        %761 = vmatprep.subr.bf16.mxu0 0
        %762 = vmatpush1.bf16.msra.mxu0 0
        %763 = vmatprep.subr.bf16.mxu0 0
        %764 = vmatpush1.bf16.msra.mxu0 0
        %765 = vmatprep.subr.bf16.mxu0 0
        %766 = vmatpush1.bf16.msra.mxu0 0
        %767 = vmatprep.subr.bf16.mxu0 0
        %768 = vmatpush1.bf16.msra.mxu0 0
        %769 = vmatprep.subr.bf16.mxu0 0
        %770 = vmatpush1.bf16.msra.mxu0 0
        %771 = vmatprep.subr.bf16.mxu0 0
        %772 = vmatpush1.bf16.msra.mxu0 0
        %773 = vmatprep.subr.bf16.mxu0 0
        %774 = vmatpush1.bf16.msra.mxu0 0
        %775 = vmatprep.mubr.bf16.mxu0 0
        %776 = vmatmul.mubr.bf16.gmra.mrb[0].mxu0 %v738
        %v777 = vpop.f32.mrb[0].mxu0
        %v778 = vadd.f32 0.0, %v777
        %v779 = vpop.f32.mrb[0].mxu0
        %v780 = vpop.f32.mrb[0].mxu0
        %v781 = vpop.f32.mrb[0].mxu0
        %782 = vdwg.mxu0
        %v783 = vadd.f32 %v720, %v778
        %v784 = vpack.c.bf16 %v783, %v783
        %vm785 = vcmask 60416
        %786 = vst.msk [vmem:[%s248] sm:$0xf] %vm785, %v784
        %v787 = vld [vmem:[%s254] sm:$0x1]
        %vm788 = vcmask 64512
        %v789 = vsel %vm788, %v783, 0.0
        %v790 = vrot.slane %v789, 4
        %v791 = vadd.f32 %v789, %v790
        %v792 = vrot.slane %v791, 2
        %v793 = vadd.f32 %v791, %v792
        %v794 = vrot.slane %v793, 1
        %v795 = vadd.f32 %v793, %v794
        %v796 = vadd.f32 %v787, %v795
        %vm797 = vcmask 57344
        %798 = vst.msk [vmem:[%s254] sm:$0x1] %vm797, %v796
        %v799 = vld [vmem:[%s260] sm:$0x1]
        %v800 = vmul.f32 %v783, %v783
        %v801 = vsel %vm788, %v800, 0.0
        %v802 = vrot.slane %v801, 4
        %v803 = vadd.f32 %v801, %v802
        %v804 = vrot.slane %v803, 2
        %v805 = vadd.f32 %v803, %v804
        %v806 = vrot.slane %v805, 1
        %v807 = vadd.f32 %v805, %v806
        %v808 = vadd.f32 %v799, %v807
        %809 = vst.msk [vmem:[%s260] sm:$0x1] %vm797, %v808
        %s810 = sand.u32 %s95, 1
        %s811 = scalar_lea.sflag [#allocation4], %s810
        %s812 = sand.u32 %s95, 1
        %s813 = smul.addr %s812, 4
        %s814 = scalar_lea.vmem [#allocation7], %s813
        %s815 = sand.u32 %s26, 1
        %s816 = scalar_lea.sflag [#allocation9], %s815
        %s817 = sand.u32 %s121, 1
        %s818 = scalar_lea.vmem [#allocation8], %s817
        %s819 = sand.u32 %s26, 1
        %s820 = scalar_lea.sflag [#allocation9], %s819
        %s821 = sand.u32 %s147, 1
        %s822 = scalar_lea.vmem [#allocation10], %s821
        // Predicated region
        $region41: #{resnet_block_forward.8} parent=27 // pred_check
          %p823 = pneg %p105
        $region42: #{resnet_block_forward.8} parent=27 // pred_check_branch
          %825 = sbr.rel (%p823) target = $region44
        $region43: #{resnet_block_forward.8} parent=27 // pred_region
          %s827 = ssub.s32 64, 64
          %828 = vsyncadd %s811, %s827
          %s829 = smul.addr %s30, 8
          %s830 = sadd.s32 %s31, %s829
          %s831 = smul.addr %s830, 64
          %s832 = scalar_lea.hbm %s2, %s831
          %s834 = sshll.u32 %s814, 4
          %s835 = int_to_ptr.vmem [resolvable:$true] %s834
          %837 = dma.vmem_to_hbm [thread:$0]  %s835, 64, %s832, %s811
        $region44: #{resnet_block_forward.8} parent=27 // pred_fallthru
          _
        // Predicated region
        $region45: #{resnet_block_forward.8} parent=27 // pred_check
          %p838 = pneg %p131
        $region46: #{resnet_block_forward.8} parent=27 // pred_check_branch
          %840 = sbr.rel (%p838) target = $region48
        $region47: #{resnet_block_forward.8} parent=27 // pred_region
          %s842 = ssub.s32 16, 16
          %843 = vsyncadd %s816, %s842
          %s844 = smul.addr %s30, 16
          %s845 = scalar_lea.hbm %s3, %s844
          %s847 = sshll.u32 %s818, 4
          %s848 = int_to_ptr.vmem [resolvable:$true] %s847
          %850 = dma.vmem_to_hbm [thread:$0]  %s848, 16, %s845, %s816
        $region48: #{resnet_block_forward.8} parent=27 // pred_fallthru
          _
        // Predicated region
        $region49: #{resnet_block_forward.8} parent=27 // pred_check
          %p851 = pneg %p157
        $region50: #{resnet_block_forward.8} parent=27 // pred_check_branch
          %853 = sbr.rel (%p851) target = $region52
        $region51: #{resnet_block_forward.8} parent=27 // pred_region
          %s855 = ssub.s32 16, 16
          %856 = vsyncadd %s820, %s855
          %s857 = smul.addr %s30, 16
          %s858 = scalar_lea.hbm %s4, %s857
          %s860 = sshll.u32 %s822, 4
          %s861 = int_to_ptr.vmem [resolvable:$true] %s860
          %863 = dma.vmem_to_hbm [thread:$0]  %s861, 16, %s858, %s820
        $region52: #{resnet_block_forward.8} parent=27 // pred_fallthru
          _
      $region28: #{resnet_block_forward.8} parent=5 // pred_fallthru
        _
      %p864 = scmp.le.s32.totalorder 2, %s21
      // Predicated region
      $region53: #{resnet_block_forward.8} parent=5 // pred_check
        %p865 = pneg %p864
      $region54: #{resnet_block_forward.8} parent=5 // pred_check_branch
        %867 = sbr.rel (%p865) target = $region56
      $region55: #{resnet_block_forward.8} parent=5 // pred_region
        %s868 = ssub.s32 %s21, 2
        // Predicated region
        $region57: #{resnet_block_forward.8} parent=55 // pred_check
          %p869 = pneg %p111
        $region58: #{resnet_block_forward.8} parent=55 // pred_check_branch
          %871 = sbr.rel (%p869) target = $region60
        $region59: #{resnet_block_forward.8} parent=55 // pred_region
          %s872 = sand.u32 %s96, 1
          %s873 = scalar_lea.sflag [#allocation4], %s872
          %s874 = sand.u32 %s96, 1
          %s875 = smul.addr %s874, 4
          %s876 = scalar_lea.vmem [#allocation7], %s875
          %877 = dma.done %s873, 64
        $region60: #{resnet_block_forward.8} parent=55 // pred_fallthru
          _
        // Predicated region
        $region61: #{resnet_block_forward.8} parent=55 // pred_check
          %p878 = pneg %p137
        $region62: #{resnet_block_forward.8} parent=55 // pred_check_branch
          %880 = sbr.rel (%p878) target = $region64
        $region63: #{resnet_block_forward.8} parent=55 // pred_region
          %s881 = sand.u32 %s27, 1
          %s882 = scalar_lea.sflag [#allocation9], %s881
          %s883 = sand.u32 %s122, 1
          %s884 = scalar_lea.vmem [#allocation8], %s883
          %885 = dma.done %s882, 16
        $region64: #{resnet_block_forward.8} parent=55 // pred_fallthru
          _
        // Predicated region
        $region65: #{resnet_block_forward.8} parent=55 // pred_check
          %p886 = pneg %p163
        $region66: #{resnet_block_forward.8} parent=55 // pred_check_branch
          %888 = sbr.rel (%p886) target = $region68
        $region67: #{resnet_block_forward.8} parent=55 // pred_region
          %s889 = sand.u32 %s27, 1
          %s890 = scalar_lea.sflag [#allocation9], %s889
          %s891 = sand.u32 %s148, 1
          %s892 = scalar_lea.vmem [#allocation10], %s891
          %893 = dma.done %s890, 16
        $region68: #{resnet_block_forward.8} parent=55 // pred_fallthru
          _
      $region56: #{resnet_block_forward.8} parent=5 // pred_fallthru
        _
    $region6: #{resnet_block_forward.8} parent=1 // loop_footer
      %s25 = sadd.s32 1, %s21
    $region7: #{resnet_block_forward.8} parent=1 // loop_footer_branch
      %20 = sbr.rel target = $region3
    $region8: #{resnet_block_forward.8} parent=1 // loop_exit
      _
    %894 = vsyncpa [#allocation3], 1
    %s895 = scalar_lea.sflag [#allocation3], 1
    %896 = vsyncpa %s895, 1
    %897 = vsyncpa [#allocation6], 1
    %898 = vsyncpa [#allocation4], 1
    %s899 = scalar_lea.sflag [#allocation4], 1
    %900 = vsyncpa %s899, 1
    %901 = vsyncpa [#allocation9], 1
    %s902 = scalar_lea.sflag [#allocation9], 1
    %903 = vsyncpa %s902, 1

// kernel: resnet_block_forward.7
$region0: #{resnet_block_forward.7}
  #allocation0 [shape = 'u32[]', space=smem, size = 0x4, offset = 0x4, fixed_abs, tag = 'smem constant byte address 0x4 - core index']
  #allocation1 [shape = 'u32[144,128]{1,0:T(1,128)}', space=vmem, size = 0x12000, scoped, tag = 'internal scratch']
  %s0 = inlined_call_operand.hbm [shape: bf16[2,10,10,8], index: 0, kind: input, shape index: {}]
  %s1 = inlined_call_operand.hbm [shape: bf16[9,8,8], index: 1, kind: input, shape index: {}]
  %s2 = inlined_call_operand.hbm [shape: bf16[2,8,8,8], index: 2, kind: output, shape index: {0}]
  %s3 = inlined_call_operand.hbm [shape: f32[2,1,8], index: 3, kind: output, shape index: {1}]
  %s4 = inlined_call_operand.hbm [shape: f32[2,1,8], index: 4, kind: output, shape index: {2}]
  %5 = xla_tuple %s2, %s3, %s4
  %s6 = sld [smem:[#allocation0]]
  $region69: #{resnet_block_forward.7} parent=0
    _
  %s8 = ssub.s32 1, %s6
  %s9 = scalar_select 0, %s8, %s6
  $region1: #{resnet_block_forward.7} parent=0
    #allocation2 [shape = 'u8[81920]{0}', space=vmem, size = 0x14000, scoped, tag = 'input window, operand 0']
    #allocation3 [shape = 's32[2]{0}', space=sflag, size = 0x8, scoped, tag = 'scoped memory for resnet_block_forward.7']
    #allocation4 [shape = 's32[2]{0}', space=sflag, size = 0x8, scoped, tag = 'scoped memory for resnet_block_forward.7']
    #allocation5 [shape = 'u8[18432]{0}', space=vmem, size = 0x4800, scoped, tag = 'input window, operand 1, single buffered']
    #allocation6 [shape = 's32[1]{0}', space=sflag, size = 0x4, scoped, tag = 'scoped memory for resnet_block_forward.7']
    #allocation7 [shape = 'u8[4096]{0}', space=vmem, size = 0x1000, scoped, tag = 'output window, operand 0']
    #allocation8 [shape = 'u8[1024]{0}', space=vmem, size = 0x400, scoped, tag = 'output window, operand 1']
    #allocation9 [shape = 's32[2]{0}', space=sflag, size = 0x8, scoped, tag = 'scoped memory for resnet_block_forward.7']
    #allocation10 [shape = 'u8[1024]{0}', space=vmem, size = 0x400, scoped, tag = 'output window, operand 2']
    %10 = vsyncpa [#allocation3], 0
    %s11 = scalar_lea.sflag [#allocation3], 1
    %12 = vsyncpa %s11, 0
    %13 = vsyncpa [#allocation6], 0
    %14 = vsyncpa [#allocation4], 0
    %s15 = scalar_lea.sflag [#allocation4], 1
    %16 = vsyncpa %s15, 0
    %17 = vsyncpa [#allocation9], 0
    %s18 = scalar_lea.sflag [#allocation9], 1
    %19 = vsyncpa %s18, 0
    loop: start=0, step=1, limit=18
    $region2: #{resnet_block_forward.7} parent=1 // loop_pre_header
      _
    $region3: #{resnet_block_forward.7} parent=1 // loop_header
      %s21 = sphi 0, %s25
      %p22 = scmp.ge.s32.totalorder %s21, 18
      %s28 = sphi 0, %s40
      %s29 = sphi 0, %s36
      %s30 = sphi 0, %s28
      %s31 = sphi 0, %s29
      %s32 = sphi 0, %s30
      %s33 = sphi 0, %s31
      %s43 = sphi 0, %s45
      %s46 = sphi 0, %s43
      %s47 = sphi 0, %s46
      %s63 = sphi 0, %s47
      %s67 = sphi 0, %s67
      %s69 = sphi 0, %s67
      %s70 = sphi 0, %s69
      %s84 = sphi 0, %s70
      %s92 = sphi 0, %s94
      %s95 = sphi 0, %s92
      %s96 = sphi 0, %s95
      %s112 = sphi 0, %s96
      %s118 = sphi 0, %s120
      %s121 = sphi 0, %s118
      %s122 = sphi 0, %s121
      %s138 = sphi 0, %s122
      %s144 = sphi 0, %s146
      %s147 = sphi 0, %s144
      %s148 = sphi 0, %s147
      %s164 = sphi 0, %s148
    $region4: #{resnet_block_forward.7} parent=1 // loop_header_branch
      %24 = sbr.rel (%p22) target = $region8
    $region5: #{resnet_block_forward.7} parent=1 // loop_body
      %s26 = ssub.s32 %s21, 1
      %s27 = ssub.s32 %s21, 2
      %s34 = sadd.s32 1, %s29
      %p35 = scmp.ge.s32.totalorder %s34, 8
      %s36 = scalar_select %p35, 0, %s34
      %s37 = sadd.s32 1, %s28
      %s38 = scalar_select %p35, %s37, %s28
      %p39 = scmp.ge.s32.totalorder %s38, 2
      %s40 = scalar_select %p39, 0, %s38
      %s41 = ssub.s32 %s28, %s40
      %p42 = scmp.eq.s32.totalorder %s41, 0
      %s44 = sadd.s32 %s43, 1
      %s45 = scalar_select %p42, %s43, %s44
      %p48 = pneg %p42
      %p49 = scmp.eq.s32.totalorder %s21, 15
      %p50 = por %p48, %p49
      %p51 = scmp.ne.s32.totalorder %s43, %s46
      %p52 = scmp.eq.s32.totalorder %s21, 0
      %p53 = por %p51, %p52
      %p54 = scmp.ne.s32.totalorder %s43, %s46
      %p55 = scmp.eq.s32.totalorder %s26, 15
      %p56 = por %p54, %p55
      %p57 = scmp.ne.s32.totalorder %s46, %s47
      %p58 = scmp.eq.s32.totalorder %s26, 0
      %p59 = por %p57, %p58
      %p60 = scmp.ne.s32.totalorder %s46, %s47
      %p61 = scmp.eq.s32.totalorder %s27, 15
      %p62 = por %p60, %p61
      %p64 = scmp.ne.s32.totalorder %s47, %s63
      %p65 = scmp.eq.s32.totalorder %s27, 0
      %p66 = por %p64, %p65
      %s68 = sadd.s32 %s67, 1
      %p71 = scmp.eq.s32.totalorder %s21, 15
      %p72 = scmp.ne.s32.totalorder %s67, %s69
      %p73 = scmp.eq.s32.totalorder %s21, 0
      %p74 = por %p72, %p73
      %p75 = scmp.ne.s32.totalorder %s67, %s69
      %p76 = scmp.eq.s32.totalorder %s26, 15
      %p77 = por %p75, %p76
      %p78 = scmp.ne.s32.totalorder %s69, %s70
      %p79 = scmp.eq.s32.totalorder %s26, 0
      %p80 = por %p78, %p79
      %p81 = scmp.ne.s32.totalorder %s69, %s70
      %p82 = scmp.eq.s32.totalorder %s27, 15
      %p83 = por %p81, %p82
      %p85 = scmp.ne.s32.totalorder %s70, %s84
      %p86 = scmp.eq.s32.totalorder %s27, 0
      %p87 = por %p85, %p86
      %s88 = ssub.s32 %s28, %s40
      %s89 = ssub.s32 %s29, %s36
      %s90 = sor.u32 %s88, %s89
      %p91 = scmp.eq.s32.totalorder %s90, 0
      %s93 = sadd.s32 %s92, 1
      %s94 = scalar_select %p91, %s92, %s93
      %p97 = pneg %p91
      %p98 = scmp.eq.s32.totalorder %s21, 15
      %p99 = por %p97, %p98
      %p100 = scmp.ne.s32.totalorder %s92, %s95
      %p101 = scmp.eq.s32.totalorder %s21, 0
      %p102 = por %p100, %p101
      %p103 = scmp.ne.s32.totalorder %s92, %s95
      %p104 = scmp.eq.s32.totalorder %s26, 15
      %p105 = por %p103, %p104
      %p106 = scmp.ne.s32.totalorder %s95, %s96
      %p107 = scmp.eq.s32.totalorder %s26, 0
      %p108 = por %p106, %p107
      %p109 = scmp.ne.s32.totalorder %s95, %s96
      %p110 = scmp.eq.s32.totalorder %s27, 15
      %p111 = por %p109, %p110
      %p113 = scmp.ne.s32.totalorder %s96, %s112
      %p114 = scmp.eq.s32.totalorder %s27, 0
      %p115 = por %p113, %p114
      %s116 = ssub.s32 %s28, %s40
      %p117 = scmp.eq.s32.totalorder %s116, 0
      %s119 = sadd.s32 %s118, 1
      %s120 = scalar_select %p117, %s118, %s119
      %p123 = pneg %p117
      %p124 = scmp.eq.s32.totalorder %s21, 15
      %p125 = por %p123, %p124
      %p126 = scmp.ne.s32.totalorder %s118, %s121
      %p127 = scmp.eq.s32.totalorder %s21, 0
      %p128 = por %p126, %p127
      %p129 = scmp.ne.s32.totalorder %s118, %s121
      %p130 = scmp.eq.s32.totalorder %s26, 15
      %p131 = por %p129, %p130
      %p132 = scmp.ne.s32.totalorder %s121, %s122
      %p133 = scmp.eq.s32.totalorder %s26, 0
      %p134 = por %p132, %p133
      %p135 = scmp.ne.s32.totalorder %s121, %s122
      %p136 = scmp.eq.s32.totalorder %s27, 15
      %p137 = por %p135, %p136
      %p139 = scmp.ne.s32.totalorder %s122, %s138
      %p140 = scmp.eq.s32.totalorder %s27, 0
      %p141 = por %p139, %p140
      %s142 = ssub.s32 %s28, %s40
      %p143 = scmp.eq.s32.totalorder %s142, 0
      %s145 = sadd.s32 %s144, 1
      %s146 = scalar_select %p143, %s144, %s145
      %p149 = pneg %p143
      %p150 = scmp.eq.s32.totalorder %s21, 15
      %p151 = por %p149, %p150
      %p152 = scmp.ne.s32.totalorder %s144, %s147
      %p153 = scmp.eq.s32.totalorder %s21, 0
      %p154 = por %p152, %p153
      %p155 = scmp.ne.s32.totalorder %s144, %s147
      %p156 = scmp.eq.s32.totalorder %s26, 15
      %p157 = por %p155, %p156
      %p158 = scmp.ne.s32.totalorder %s147, %s148
      %p159 = scmp.eq.s32.totalorder %s26, 0
      %p160 = por %p158, %p159
      %p161 = scmp.ne.s32.totalorder %s147, %s148
      %p162 = scmp.eq.s32.totalorder %s27, 15
      %p163 = por %p161, %p162
      %p165 = scmp.ne.s32.totalorder %s148, %s164
      %p166 = scmp.eq.s32.totalorder %s27, 0
      %p167 = por %p165, %p166
      %p168 = scmp.le.s32.totalorder 1, %s21
      %p169 = scmp.lt.s32.totalorder %s21, 17
      %p170 = pnand %p168, %p169
      %p171 = pneg %p170
      // Predicated region
      $region9: #{resnet_block_forward.7} parent=5 // pred_check
        _
      $region10: #{resnet_block_forward.7} parent=5 // pred_check_branch
        %173 = sbr.rel (%p170) target = $region12
      $region11: #{resnet_block_forward.7} parent=5 // pred_region
        %s174 = ssub.s32 %s21, 1
        // Predicated region
        $region13: #{resnet_block_forward.7} parent=11 // pred_check
          %p175 = pneg %p80
        $region14: #{resnet_block_forward.7} parent=11 // pred_check_branch
          %177 = sbr.rel (%p175) target = $region16
        $region15: #{resnet_block_forward.7} parent=11 // pred_region
          %s179 = ssub.s32 576, 576
          %180 = vsyncadd [#allocation6], %s179
          %s181 = sshll.u32 [#allocation5], 4
          %s182 = int_to_ptr.vmem [resolvable:$true] %s181
          %187 = dma.hbm_to_vmem [thread:$0]  %s1, 576, %s182, [#allocation6], 64, 64, 4
        $region16: #{resnet_block_forward.7} parent=11 // pred_fallthru
          _
      $region12: #{resnet_block_forward.7} parent=5 // pred_fallthru
        _
      %p188 = scmp.lt.s32.totalorder %s21, 16
      // Predicated region
      $region17: #{resnet_block_forward.7} parent=5 // pred_check
        %p189 = pneg %p188
      $region18: #{resnet_block_forward.7} parent=5 // pred_check_branch
        %191 = sbr.rel (%p189) target = $region20
      $region19: #{resnet_block_forward.7} parent=5 // pred_region
        // Predicated region
        $region21: #{resnet_block_forward.7} parent=19 // pred_check
          %p192 = pneg %p53
        $region22: #{resnet_block_forward.7} parent=19 // pred_check_branch
          %194 = sbr.rel (%p192) target = $region24
        $region23: #{resnet_block_forward.7} parent=19 // pred_region
          %s195 = sand.u32 %s43, 1
          %s196 = scalar_lea.sflag [#allocation3], %s195
          %s197 = sand.u32 %s43, 1
          %s198 = smul.addr %s197, 80
          %s199 = scalar_lea.vmem [#allocation2], %s198
          %s201 = ssub.s32 1280, 1280
          %202 = vsyncadd %s196, %s201
          %s203 = smul.addr %s28, 20
          %s204 = smul.addr %s203, 64
          %s205 = scalar_lea.hbm %s0, %s204
          %s206 = sshll.u32 %s199, 4
          %s207 = int_to_ptr.vmem [resolvable:$true] %s206
          %212 = dma.hbm_to_vmem [thread:$0]  %s205, 1280, %s207, %s196, 64, 64, 4
        $region24: #{resnet_block_forward.7} parent=19 // pred_fallthru
          _
      $region20: #{resnet_block_forward.7} parent=5 // pred_fallthru
        _
      %p213 = scmp.le.s32.totalorder 1, %s21
      %p214 = scmp.lt.s32.totalorder %s21, 17
      %p215 = pnand %p213, %p214
      %p216 = pneg %p215
      // Predicated region
      $region25: #{resnet_block_forward.7} parent=5 // pred_check
        _
      $region26: #{resnet_block_forward.7} parent=5 // pred_check_branch
        %218 = sbr.rel (%p215) target = $region28
      $region27: #{resnet_block_forward.7} parent=5 // pred_region
        %s219 = ssub.s32 %s21, 1
        %s220 = sand.u32 %s46, 1
        %s221 = scalar_lea.sflag [#allocation3], %s220
        %s222 = sand.u32 %s46, 1
        %s223 = smul.addr %s222, 80
        %s224 = scalar_lea.vmem [#allocation2], %s223
        // Predicated region
        $region29: #{resnet_block_forward.7} parent=27 // pred_check
          %p225 = pneg %p59
        $region30: #{resnet_block_forward.7} parent=27 // pred_check_branch
          %227 = sbr.rel (%p225) target = $region32
        $region31: #{resnet_block_forward.7} parent=27 // pred_region
          %228 = dma.done %s221, 1280
        $region32: #{resnet_block_forward.7} parent=27 // pred_fallthru
          _
        // Predicated region
        $region33: #{resnet_block_forward.7} parent=27 // pred_check
          %p229 = pneg %p80
        $region34: #{resnet_block_forward.7} parent=27 // pred_check_branch
          %231 = sbr.rel (%p229) target = $region36
        $region35: #{resnet_block_forward.7} parent=27 // pred_region
          %232 = dma.done [#allocation6], 576
        $region36: #{resnet_block_forward.7} parent=27 // pred_fallthru
          _
        %s233 = sand.u32 %s46, 1
        %s234 = scalar_lea.sflag [#allocation3], %s233
        %s235 = sand.u32 %s46, 1
        %s236 = smul.addr %s235, 80
        %s237 = scalar_lea.vmem [#allocation2], %s236
        %p238 = pneg %p59
        %p239 = pneg %p56
        %p240 = pneg %p80
        %p241 = pneg %p77
        %p242 = pneg %p108
        %p243 = pneg %p105
        %s244 = sand.u32 %s95, 1
        %s245 = scalar_lea.sflag [#allocation4], %s244
        %s246 = sand.u32 %s95, 1
        %s247 = smul.addr %s246, 4
        %s248 = scalar_lea.vmem [#allocation7], %s247
        %p249 = pneg %p134
        %p250 = pneg %p131
        %s251 = sand.u32 %s26, 1
        %s252 = scalar_lea.sflag [#allocation9], %s251
        %s253 = sand.u32 %s121, 1
        %s254 = scalar_lea.vmem [#allocation8], %s253
        %p255 = pneg %p160
        %p256 = pneg %p157
        %s257 = sand.u32 %s26, 1
        %s258 = scalar_lea.sflag [#allocation9], %s257
        %s259 = sand.u32 %s147, 1
        %s260 = scalar_lea.vmem [#allocation10], %s259
        %p262 = scmp.eq.s32.totalorder %s31, 0
        // Predicated region
        $region37: #{resnet_block_forward.7} parent=27 // pred_check
          %p263 = pneg %p262
        $region38: #{resnet_block_forward.7} parent=27 // pred_check_branch
          %265 = sbr.rel (%p263) target = $region40
        $region39: #{resnet_block_forward.7} parent=27 // pred_region
          %vm266 = vcmask 57344
          %267 = vst.msk [vmem:[%s254] sm:$0x1] %vm266, 0.0
          %268 = vst.msk [vmem:[%s260] sm:$0x1] %vm266, 0.0
        $region40: #{resnet_block_forward.7} parent=27 // pred_fallthru
          _
        %s269 = smul.u32 %s31, 2
        %s270 = smul.addr %s269, 4
        %s271 = scalar_lea.vmem %s224, %s270 [#allocation2]
        %v272 = vld [vmem:[%s271] sm:$0xf]
        %v273 = vld [vmem:[#allocation5] sm:$0xf]
        %v274 = vld [vmem:[%s271 + $0x4] sm:$0x1]
        %s275 = scalar_lea.vmem [#allocation5], 4
        %v276 = vld [vmem:[%s275] sm:$0xf]
        %v279 = vunpack.c.l.b16 %v272
        %v280 = vunpack.c.l.b16 %v274
        %v281 = vpack.c.b16 %v280, %v279
        %v283 = vshrl.u32 %v281, 16
        %v285 = vshll.u32 %v281, 16
        %v287 = vrot.slane %v285, 1
        %v288 = vor.u32 %v283, %v287
        %vm289 = vcmask 64512
        %v291 = vsel %vm289, %v288, 0
        %vm293 = vcmask 1043456
        %v295 = vsel %vm293, %v276, 0
        %297 = vmatprep.subr.bf16.mxu0 0
        %298 = vmatpush1.bf16.msra.mxu0 %v295
        %299 = vmatprep.subr.bf16.mxu0 0
        %300 = vmatpush1.bf16.msra.mxu0 0
        %301 = vmatprep.subr.bf16.mxu0 0
        %302 = vmatpush1.bf16.msra.mxu0 0
        %303 = vmatprep.subr.bf16.mxu0 0
        %304 = vmatpush1.bf16.msra.mxu0 0
        %305 = vmatprep.subr.bf16.mxu0 0
        %306 = vmatpush1.bf16.msra.mxu0 0
        %307 = vmatprep.subr.bf16.mxu0 0
        %308 = vmatpush1.bf16.msra.mxu0 0
        %309 = vmatprep.subr.bf16.mxu0 0
        %310 = vmatpush1.bf16.msra.mxu0 0
        %311 = vmatprep.subr.bf16.mxu0 0
        %312 = vmatpush1.bf16.msra.mxu0 0
        %313 = vmatprep.subr.bf16.mxu0 0
        %314 = vmatpush1.bf16.msra.mxu0 0
        %315 = vmatprep.subr.bf16.mxu0 0
        %316 = vmatpush1.bf16.msra.mxu0 0
        %317 = vmatprep.subr.bf16.mxu0 0
        %318 = vmatpush1.bf16.msra.mxu0 0
        %319 = vmatprep.subr.bf16.mxu0 0
        %320 = vmatpush1.bf16.msra.mxu0 0
        %321 = vmatprep.subr.bf16.mxu0 0
        %322 = vmatpush1.bf16.msra.mxu0 0
        %323 = vmatprep.subr.bf16.mxu0 0
        %324 = vmatpush1.bf16.msra.mxu0 0
        %325 = vmatprep.subr.bf16.mxu0 0
        %326 = vmatpush1.bf16.msra.mxu0 0
        %327 = vmatprep.subr.bf16.mxu0 0
        %328 = vmatpush1.bf16.msra.mxu0 0
        %329 = vmatprep.mubr.bf16.mxu0 0
        %330 = vmatmul.mubr.bf16.gmra.mrb[0].mxu0 %v291
        %v331 = vpop.f32.mrb[0].mxu0
        %v332 = vadd.f32 0.0, %v331
        %v333 = vpop.f32.mrb[0].mxu0
        %v334 = vpop.f32.mrb[0].mxu0
        %v335 = vpop.f32.mrb[0].mxu0
        %336 = vdwg.mxu0
        %v338 = vsel %vm289, %v272, 0
        %v341 = vsel %vm293, %v273, 0
        %343 = vmatprep.subr.bf16.mxu0 0
        %344 = vmatpush1.bf16.msra.mxu0 %v341
        %345 = vmatprep.subr.bf16.mxu0 0
        %346 = vmatpush1.bf16.msra.mxu0 0
        %347 = vmatprep.subr.bf16.mxu0 0
        %348 = vmatpush1.bf16.msra.mxu0 0
        %349 = vmatprep.subr.bf16.mxu0 0
        %350 = vmatpush1.bf16.msra.mxu0 0
        %351 = vmatprep.subr.bf16.mxu0 0
        %352 = vmatpush1.bf16.msra.mxu0 0
        %353 = vmatprep.subr.bf16.mxu0 0
        %354 = vmatpush1.bf16.msra.mxu0 0
        %355 = vmatprep.subr.bf16.mxu0 0
        %356 = vmatpush1.bf16.msra.mxu0 0
        %357 = vmatprep.subr.bf16.mxu0 0
        %358 = vmatpush1.bf16.msra.mxu0 0
        %359 = vmatprep.subr.bf16.mxu0 0
        %360 = vmatpush1.bf16.msra.mxu0 0
        %361 = vmatprep.subr.bf16.mxu0 0
        %362 = vmatpush1.bf16.msra.mxu0 0
        %363 = vmatprep.subr.bf16.mxu0 0
        %364 = vmatpush1.bf16.msra.mxu0 0
        %365 = vmatprep.subr.bf16.mxu0 0
        %366 = vmatpush1.bf16.msra.mxu0 0
        %367 = vmatprep.subr.bf16.mxu0 0
        %368 = vmatpush1.bf16.msra.mxu0 0
        %369 = vmatprep.subr.bf16.mxu0 0
        %370 = vmatpush1.bf16.msra.mxu0 0
        %371 = vmatprep.subr.bf16.mxu0 0
        %372 = vmatpush1.bf16.msra.mxu0 0
        %373 = vmatprep.subr.bf16.mxu0 0
        %374 = vmatpush1.bf16.msra.mxu0 0
        %375 = vmatprep.mubr.bf16.mxu0 0
        %376 = vmatmul.mubr.bf16.gmra.mrb[0].mxu0 %v338
        %v377 = vpop.f32.mrb[0].mxu0
        %v378 = vadd.f32 %v332, %v377
        %v379 = vpop.f32.mrb[0].mxu0
        %v380 = vpop.f32.mrb[0].mxu0
        %v381 = vpop.f32.mrb[0].mxu0
        %382 = vdwg.mxu0
        %v383 = vld [vmem:[%s271] sm:$0xe]
        %s384 = scalar_lea.vmem [#allocation5], 8
        %v385 = vld [vmem:[%s384] sm:$0xf]
        %v387 = vunpack.c.l.b16 %v383
        %v388 = vpack.c.b16 %v280, %v387
        %v389 = vrot.slane %v388, 1
        %v391 = vsel %vm289, %v389, 0
        %v394 = vsel %vm293, %v385, 0
        %396 = vmatprep.subr.bf16.mxu0 0
        %397 = vmatpush1.bf16.msra.mxu0 %v394
        %398 = vmatprep.subr.bf16.mxu0 0
        %399 = vmatpush1.bf16.msra.mxu0 0
        %400 = vmatprep.subr.bf16.mxu0 0
        %401 = vmatpush1.bf16.msra.mxu0 0
        %402 = vmatprep.subr.bf16.mxu0 0
        %403 = vmatpush1.bf16.msra.mxu0 0
        %404 = vmatprep.subr.bf16.mxu0 0
        %405 = vmatpush1.bf16.msra.mxu0 0
        %406 = vmatprep.subr.bf16.mxu0 0
        %407 = vmatpush1.bf16.msra.mxu0 0
        %408 = vmatprep.subr.bf16.mxu0 0
        %409 = vmatpush1.bf16.msra.mxu0 0
        %410 = vmatprep.subr.bf16.mxu0 0
        %411 = vmatpush1.bf16.msra.mxu0 0
        %412 = vmatprep.subr.bf16.mxu0 0
        %413 = vmatpush1.bf16.msra.mxu0 0
        %414 = vmatprep.subr.bf16.mxu0 0
        %415 = vmatpush1.bf16.msra.mxu0 0
        %416 = vmatprep.subr.bf16.mxu0 0
        %417 = vmatpush1.bf16.msra.mxu0 0
        %418 = vmatprep.subr.bf16.mxu0 0
        %419 = vmatpush1.bf16.msra.mxu0 0
        %420 = vmatprep.subr.bf16.mxu0 0
        %421 = vmatpush1.bf16.msra.mxu0 0
        %422 = vmatprep.subr.bf16.mxu0 0
        %423 = vmatpush1.bf16.msra.mxu0 0
        %424 = vmatprep.subr.bf16.mxu0 0
        %425 = vmatpush1.bf16.msra.mxu0 0
        %426 = vmatprep.subr.bf16.mxu0 0
        %427 = vmatpush1.bf16.msra.mxu0 0
        %428 = vmatprep.mubr.bf16.mxu0 0
        %429 = vmatmul.mubr.bf16.gmra.mrb[0].mxu0 %v391
        %v430 = vpop.f32.mrb[0].mxu0
        %v431 = vadd.f32 0.0, %v430
        %v432 = vpop.f32.mrb[0].mxu0
        %v433 = vpop.f32.mrb[0].mxu0
        %v434 = vpop.f32.mrb[0].mxu0
        %435 = vdwg.mxu0
        %v436 = vadd.f32 %v378, %v431
        %s437 = sadd.s32 %s31, 1
        %s438 = smul.u32 %s437, 2
        %s439 = smul.addr %s438, 4
        %s440 = scalar_lea.vmem %s224, %s439 [#allocation2]
        %v441 = vld [vmem:[%s440] sm:$0xf]
        %s442 = scalar_lea.vmem [#allocation5], 12
        %v443 = vld [vmem:[%s442] sm:$0xf]
        %v445 = vsel %vm289, %v441, 0
        %v448 = vsel %vm293, %v443, 0
        %450 = vmatprep.subr.bf16.mxu0 0
        %451 = vmatpush1.bf16.msra.mxu0 %v448
        %452 = vmatprep.subr.bf16.mxu0 0
        %453 = vmatpush1.bf16.msra.mxu0 0
        %454 = vmatprep.subr.bf16.mxu0 0
        %455 = vmatpush1.bf16.msra.mxu0 0
        %456 = vmatprep.subr.bf16.mxu0 0
        %457 = vmatpush1.bf16.msra.mxu0 0
        %458 = vmatprep.subr.bf16.mxu0 0
        %459 = vmatpush1.bf16.msra.mxu0 0
        %460 = vmatprep.subr.bf16.mxu0 0
        %461 = vmatpush1.bf16.msra.mxu0 0
        %462 = vmatprep.subr.bf16.mxu0 0
        %463 = vmatpush1.bf16.msra.mxu0 0
        %464 = vmatprep.subr.bf16.mxu0 0
        %465 = vmatpush1.bf16.msra.mxu0 0
        %466 = vmatprep.subr.bf16.mxu0 0
        %467 = vmatpush1.bf16.msra.mxu0 0
        %468 = vmatprep.subr.bf16.mxu0 0
        %469 = vmatpush1.bf16.msra.mxu0 0
        %470 = vmatprep.subr.bf16.mxu0 0
        %471 = vmatpush1.bf16.msra.mxu0 0
        %472 = vmatprep.subr.bf16.mxu0 0
        %473 = vmatpush1.bf16.msra.mxu0 0
        %474 = vmatprep.subr.bf16.mxu0 0
        %475 = vmatpush1.bf16.msra.mxu0 0
        %476 = vmatprep.subr.bf16.mxu0 0
        %477 = vmatpush1.bf16.msra.mxu0 0
        %478 = vmatprep.subr.bf16.mxu0 0
        %479 = vmatpush1.bf16.msra.mxu0 0
        %480 = vmatprep.subr.bf16.mxu0 0
        %481 = vmatpush1.bf16.msra.mxu0 0
        %482 = vmatprep.mubr.bf16.mxu0 0
        %483 = vmatmul.mubr.bf16.gmra.mrb[0].mxu0 %v445
        %v484 = vpop.f32.mrb[0].mxu0
        %v485 = vadd.f32 0.0, %v484
        %v486 = vpop.f32.mrb[0].mxu0
        %v487 = vpop.f32.mrb[0].mxu0
        %v488 = vpop.f32.mrb[0].mxu0
        %489 = vdwg.mxu0
        %v490 = vadd.f32 %v436, %v485
        %v491 = vld [vmem:[%s440] sm:$0xf]
        %v492 = vld [vmem:[%s440 + $0x4] sm:$0x1]
        %s493 = scalar_lea.vmem [#allocation5], 16
        %v494 = vld [vmem:[%s493] sm:$0xf]
        %v497 = vunpack.c.l.b16 %v491
        %v498 = vunpack.c.l.b16 %v492
        %v499 = vpack.c.b16 %v498, %v497
        %v501 = vshrl.u32 %v499, 16
        %v503 = vshll.u32 %v499, 16
        %v505 = vrot.slane %v503, 1
        %v506 = vor.u32 %v501, %v505
        %v508 = vsel %vm289, %v506, 0
        %v511 = vsel %vm293, %v494, 0
        %513 = vmatprep.subr.bf16.mxu0 0
        %514 = vmatpush1.bf16.msra.mxu0 %v511
        %515 = vmatprep.subr.bf16.mxu0 0
        %516 = vmatpush1.bf16.msra.mxu0 0
        %517 = vmatprep.subr.bf16.mxu0 0
        %518 = vmatpush1.bf16.msra.mxu0 0
        %519 = vmatprep.subr.bf16.mxu0 0
        %520 = vmatpush1.bf16.msra.mxu0 0
        %521 = vmatprep.subr.bf16.mxu0 0
        %522 = vmatpush1.bf16.msra.mxu0 0
        %523 = vmatprep.subr.bf16.mxu0 0
        %524 = vmatpush1.bf16.msra.mxu0 0
        %525 = vmatprep.subr.bf16.mxu0 0
        %526 = vmatpush1.bf16.msra.mxu0 0
        %527 = vmatprep.subr.bf16.mxu0 0
        %528 = vmatpush1.bf16.msra.mxu0 0
        %529 = vmatprep.subr.bf16.mxu0 0
        %530 = vmatpush1.bf16.msra.mxu0 0
        %531 = vmatprep.subr.bf16.mxu0 0
        %532 = vmatpush1.bf16.msra.mxu0 0
        %533 = vmatprep.subr.bf16.mxu0 0
        %534 = vmatpush1.bf16.msra.mxu0 0
        %535 = vmatprep.subr.bf16.mxu0 0
        %536 = vmatpush1.bf16.msra.mxu0 0
        %537 = vmatprep.subr.bf16.mxu0 0
        %538 = vmatpush1.bf16.msra.mxu0 0
        %539 = vmatprep.subr.bf16.mxu0 0
        %540 = vmatpush1.bf16.msra.mxu0 0
        %541 = vmatprep.subr.bf16.mxu0 0
        %542 = vmatpush1.bf16.msra.mxu0 0
        %543 = vmatprep.subr.bf16.mxu0 0
        %544 = vmatpush1.bf16.msra.mxu0 0
        %545 = vmatprep.mubr.bf16.mxu0 0
        %546 = vmatmul.mubr.bf16.gmra.mrb[0].mxu0 %v508
        %v547 = vpop.f32.mrb[0].mxu0
        %v548 = vadd.f32 0.0, %v547
        %v549 = vpop.f32.mrb[0].mxu0
        %v550 = vpop.f32.mrb[0].mxu0
        %v551 = vpop.f32.mrb[0].mxu0
        %552 = vdwg.mxu0
        %v553 = vadd.f32 %v490, %v548
        %v554 = vld [vmem:[%s440] sm:$0xe]
        %s555 = scalar_lea.vmem [#allocation5], 20
        %v556 = vld [vmem:[%s555] sm:$0xf]
        %v558 = vunpack.c.l.b16 %v554
        %v559 = vpack.c.b16 %v498, %v558
        %v560 = vrot.slane %v559, 1
        %v562 = vsel %vm289, %v560, 0
        %v565 = vsel %vm293, %v556, 0
        %567 = vmatprep.subr.bf16.mxu0 0
        %568 = vmatpush1.bf16.msra.mxu0 %v565
        %569 = vmatprep.subr.bf16.mxu0 0
        %570 = vmatpush1.bf16.msra.mxu0 0
        %571 = vmatprep.subr.bf16.mxu0 0
        %572 = vmatpush1.bf16.msra.mxu0 0
        %573 = vmatprep.subr.bf16.mxu0 0
        %574 = vmatpush1.bf16.msra.mxu0 0
        %575 = vmatprep.subr.bf16.mxu0 0
        %576 = vmatpush1.bf16.msra.mxu0 0
        %577 = vmatprep.subr.bf16.mxu0 0
        %578 = vmatpush1.bf16.msra.mxu0 0
        %579 = vmatprep.subr.bf16.mxu0 0
        %580 = vmatpush1.bf16.msra.mxu0 0
        %581 = vmatprep.subr.bf16.mxu0 0
        %582 = vmatpush1.bf16.msra.mxu0 0
        %583 = vmatprep.subr.bf16.mxu0 0
        %584 = vmatpush1.bf16.msra.mxu0 0
        %585 = vmatprep.subr.bf16.mxu0 0
        %586 = vmatpush1.bf16.msra.mxu0 0
        %587 = vmatprep.subr.bf16.mxu0 0
        %588 = vmatpush1.bf16.msra.mxu0 0
        %589 = vmatprep.subr.bf16.mxu0 0
        %590 = vmatpush1.bf16.msra.mxu0 0
        %591 = vmatprep.subr.bf16.mxu0 0
        %592 = vmatpush1.bf16.msra.mxu0 0
        %593 = vmatprep.subr.bf16.mxu0 0
        %594 = vmatpush1.bf16.msra.mxu0 0
        %595 = vmatprep.subr.bf16.mxu0 0
        %596 = vmatpush1.bf16.msra.mxu0 0
        %597 = vmatprep.subr.bf16.mxu0 0
        %598 = vmatpush1.bf16.msra.mxu0 0
        %599 = vmatprep.mubr.bf16.mxu0 0
        %600 = vmatmul.mubr.bf16.gmra.mrb[0].mxu0 %v562
        %v601 = vpop.f32.mrb[0].mxu0
        %v602 = vadd.f32 0.0, %v601
        %v603 = vpop.f32.mrb[0].mxu0
        %v604 = vpop.f32.mrb[0].mxu0
        %v605 = vpop.f32.mrb[0].mxu0
        %606 = vdwg.mxu0
        %v607 = vadd.f32 %v553, %v602
        %s608 = sadd.s32 %s31, 2
        %s609 = smul.u32 %s608, 2
        %s610 = smul.addr %s609, 4
        %s611 = scalar_lea.vmem %s224, %s610 [#allocation2]
        %v612 = vld [vmem:[%s611] sm:$0xf]
        %s613 = scalar_lea.vmem [#allocation5], 24
        %v614 = vld [vmem:[%s613] sm:$0xf]
        %v616 = vsel %vm289, %v612, 0
        %v619 = vsel %vm293, %v614, 0
        %621 = vmatprep.subr.bf16.mxu0 0
        %622 = vmatpush1.bf16.msra.mxu0 %v619
        %623 = vmatprep.subr.bf16.mxu0 0
        %624 = vmatpush1.bf16.msra.mxu0 0
        %625 = vmatprep.subr.bf16.mxu0 0
        %626 = vmatpush1.bf16.msra.mxu0 0
        %627 = vmatprep.subr.bf16.mxu0 0
        %628 = vmatpush1.bf16.msra.mxu0 0
        %629 = vmatprep.subr.bf16.mxu0 0
        %630 = vmatpush1.bf16.msra.mxu0 0
        %631 = vmatprep.subr.bf16.mxu0 0
        %632 = vmatpush1.bf16.msra.mxu0 0
        %633 = vmatprep.subr.bf16.mxu0 0
        %634 = vmatpush1.bf16.msra.mxu0 0
        %635 = vmatprep.subr.bf16.mxu0 0
        %636 = vmatpush1.bf16.msra.mxu0 0
        %637 = vmatprep.subr.bf16.mxu0 0
        %638 = vmatpush1.bf16.msra.mxu0 0
        %639 = vmatprep.subr.bf16.mxu0 0
        %640 = vmatpush1.bf16.msra.mxu0 0
        %641 = vmatprep.subr.bf16.mxu0 0
        %642 = vmatpush1.bf16.msra.mxu0 0
        %643 = vmatprep.subr.bf16.mxu0 0
        %644 = vmatpush1.bf16.msra.mxu0 0
        %645 = vmatprep.subr.bf16.mxu0 0
        %646 = vmatpush1.bf16.msra.mxu0 0
        %647 = vmatprep.subr.bf16.mxu0 0
        %648 = vmatpush1.bf16.msra.mxu0 0
        %649 = vmatprep.subr.bf16.mxu0 0
        %650 = vmatpush1.bf16.msra.mxu0 0
        %651 = vmatprep.subr.bf16.mxu0 0
        %652 = vmatpush1.bf16.msra.mxu0 0
        %653 = vmatprep.mubr.bf16.mxu0 0
        %654 = vmatmul.mubr.bf16.gmra.mrb[0].mxu0 %v616
        %v655 = vpop.f32.mrb[0].mxu0
        %v656 = vadd.f32 0.0, %v655
        %v657 = vpop.f32.mrb[0].mxu0
        %v658 = vpop.f32.mrb[0].mxu0
        %v659 = vpop.f32.mrb[0].mxu0
        %660 = vdwg.mxu0
        %v661 = vadd.f32 %v607, %v656
        %v662 = vld [vmem:[%s611] sm:$0xf]
        %v663 = vld [vmem:[%s611 + $0x4] sm:$0x1]
        %s664 = scalar_lea.vmem [#allocation5], 28
        %v665 = vld [vmem:[%s664] sm:$0xf]
        %v668 = vunpack.c.l.b16 %v662
        %v669 = vunpack.c.l.b16 %v663
        %v670 = vpack.c.b16 %v669, %v668
        %v672 = vshrl.u32 %v670, 16
        %v674 = vshll.u32 %v670, 16
        %v676 = vrot.slane %v674, 1
        %v677 = vor.u32 %v672, %v676
        %v679 = vsel %vm289, %v677, 0
        %v682 = vsel %vm293, %v665, 0
        %684 = vmatprep.subr.bf16.mxu0 0
        %685 = vmatpush1.bf16.msra.mxu0 %v682
        %686 = vmatprep.subr.bf16.mxu0 0
        %687 = vmatpush1.bf16.msra.mxu0 0
        %688 = vmatprep.subr.bf16.mxu0 0
        %689 = vmatpush1.bf16.msra.mxu0 0
        %690 = vmatprep.subr.bf16.mxu0 0
        %691 = vmatpush1.bf16.msra.mxu0 0
        %692 = vmatprep.subr.bf16.mxu0 0
        %693 = vmatpush1.bf16.msra.mxu0 0
        %694 = vmatprep.subr.bf16.mxu0 0
        %695 = vmatpush1.bf16.msra.mxu0 0
        %696 = vmatprep.subr.bf16.mxu0 0
        %697 = vmatpush1.bf16.msra.mxu0 0
        %698 = vmatprep.subr.bf16.mxu0 0
        %699 = vmatpush1.bf16.msra.mxu0 0
        %700 = vmatprep.subr.bf16.mxu0 0
        %701 = vmatpush1.bf16.msra.mxu0 0
        %702 = vmatprep.subr.bf16.mxu0 0
        %703 = vmatpush1.bf16.msra.mxu0 0
        %704 = vmatprep.subr.bf16.mxu0 0
        %705 = vmatpush1.bf16.msra.mxu0 0
        %706 = vmatprep.subr.bf16.mxu0 0
        %707 = vmatpush1.bf16.msra.mxu0 0
        %708 = vmatprep.subr.bf16.mxu0 0
        %709 = vmatpush1.bf16.msra.mxu0 0
        %710 = vmatprep.subr.bf16.mxu0 0
        %711 = vmatpush1.bf16.msra.mxu0 0
        %712 = vmatprep.subr.bf16.mxu0 0
        %713 = vmatpush1.bf16.msra.mxu0 0
        %714 = vmatprep.subr.bf16.mxu0 0
        %715 = vmatpush1.bf16.msra.mxu0 0
        %716 = vmatprep.mubr.bf16.mxu0 0
        %717 = vmatmul.mubr.bf16.gmra.mrb[0].mxu0 %v679
        %v718 = vpop.f32.mrb[0].mxu0
        %v719 = vadd.f32 0.0, %v718
        %v720 = vpop.f32.mrb[0].mxu0
        %v721 = vpop.f32.mrb[0].mxu0
        %v722 = vpop.f32.mrb[0].mxu0
        %723 = vdwg.mxu0
        %v724 = vadd.f32 %v661, %v719
        %v725 = vld [vmem:[%s611] sm:$0xe]
        %s726 = scalar_lea.vmem [#allocation5], 32
        %v727 = vld [vmem:[%s726] sm:$0xf]
        %v729 = vunpack.c.l.b16 %v725
        %v730 = vpack.c.b16 %v669, %v729
        %v731 = vrot.slane %v730, 1
        %v733 = vsel %vm289, %v731, 0
        %v736 = vsel %vm293, %v727, 0
        %738 = vmatprep.subr.bf16.mxu0 0
        %739 = vmatpush1.bf16.msra.mxu0 %v736
        %740 = vmatprep.subr.bf16.mxu0 0
        %741 = vmatpush1.bf16.msra.mxu0 0
        %742 = vmatprep.subr.bf16.mxu0 0
        %743 = vmatpush1.bf16.msra.mxu0 0
        %744 = vmatprep.subr.bf16.mxu0 0
        %745 = vmatpush1.bf16.msra.mxu0 0
        %746 = vmatprep.subr.bf16.mxu0 0
        %747 = vmatpush1.bf16.msra.mxu0 0
        %748 = vmatprep.subr.bf16.mxu0 0
        %749 = vmatpush1.bf16.msra.mxu0 0
        %750 = vmatprep.subr.bf16.mxu0 0
        %751 = vmatpush1.bf16.msra.mxu0 0
        %752 = vmatprep.subr.bf16.mxu0 0
        %753 = vmatpush1.bf16.msra.mxu0 0
        %754 = vmatprep.subr.bf16.mxu0 0
        %755 = vmatpush1.bf16.msra.mxu0 0
        %756 = vmatprep.subr.bf16.mxu0 0
        %757 = vmatpush1.bf16.msra.mxu0 0
        %758 = vmatprep.subr.bf16.mxu0 0
        %759 = vmatpush1.bf16.msra.mxu0 0
        %760 = vmatprep.subr.bf16.mxu0 0
        %761 = vmatpush1.bf16.msra.mxu0 0
        %762 = vmatprep.subr.bf16.mxu0 0
        %763 = vmatpush1.bf16.msra.mxu0 0
        %764 = vmatprep.subr.bf16.mxu0 0
        %765 = vmatpush1.bf16.msra.mxu0 0
        %766 = vmatprep.subr.bf16.mxu0 0
        %767 = vmatpush1.bf16.msra.mxu0 0
        %768 = vmatprep.subr.bf16.mxu0 0
        %769 = vmatpush1.bf16.msra.mxu0 0
        %770 = vmatprep.mubr.bf16.mxu0 0
        %771 = vmatmul.mubr.bf16.gmra.mrb[0].mxu0 %v733
        %v772 = vpop.f32.mrb[0].mxu0
        %v773 = vadd.f32 0.0, %v772
        %v774 = vpop.f32.mrb[0].mxu0
        %v775 = vpop.f32.mrb[0].mxu0
        %v776 = vpop.f32.mrb[0].mxu0
        %777 = vdwg.mxu0
        %v778 = vadd.f32 %v724, %v773
        %v779 = vpack.c.bf16 %v778, %v778
        %vm780 = vcmask 60416
        %781 = vst.msk [vmem:[%s248] sm:$0xf] %vm780, %v779
        %v782 = vld [vmem:[%s254] sm:$0x1]
        %v783 = vsel %vm289, %v778, 0.0
        %v784 = vrot.slane %v783, 4
        %v785 = vadd.f32 %v783, %v784
        %v786 = vrot.slane %v785, 2
        %v787 = vadd.f32 %v785, %v786
        %v788 = vrot.slane %v787, 1
        %v789 = vadd.f32 %v787, %v788
        %v790 = vadd.f32 %v782, %v789
        %vm791 = vcmask 57344
        %792 = vst.msk [vmem:[%s254] sm:$0x1] %vm791, %v790
        %v793 = vld [vmem:[%s260] sm:$0x1]
        %v794 = vmul.f32 %v778, %v778
        %v795 = vsel %vm289, %v794, 0.0
        %v796 = vrot.slane %v795, 4
        %v797 = vadd.f32 %v795, %v796
        %v798 = vrot.slane %v797, 2
        %v799 = vadd.f32 %v797, %v798
        %v800 = vrot.slane %v799, 1
        %v801 = vadd.f32 %v799, %v800
        %v802 = vadd.f32 %v793, %v801
        %803 = vst.msk [vmem:[%s260] sm:$0x1] %vm791, %v802
        %s804 = sand.u32 %s95, 1
        %s805 = scalar_lea.sflag [#allocation4], %s804
        %s806 = sand.u32 %s95, 1
        %s807 = smul.addr %s806, 4
        %s808 = scalar_lea.vmem [#allocation7], %s807
        %s809 = sand.u32 %s26, 1
        %s810 = scalar_lea.sflag [#allocation9], %s809
        %s811 = sand.u32 %s121, 1
        %s812 = scalar_lea.vmem [#allocation8], %s811
        %s813 = sand.u32 %s26, 1
        %s814 = scalar_lea.sflag [#allocation9], %s813
        %s815 = sand.u32 %s147, 1
        %s816 = scalar_lea.vmem [#allocation10], %s815
        // Predicated region
        $region41: #{resnet_block_forward.7} parent=27 // pred_check
          %p817 = pneg %p105
        $region42: #{resnet_block_forward.7} parent=27 // pred_check_branch
          %819 = sbr.rel (%p817) target = $region44
        $region43: #{resnet_block_forward.7} parent=27 // pred_region
          %s821 = ssub.s32 64, 64
          %822 = vsyncadd %s805, %s821
          %s823 = smul.addr %s30, 8
          %s824 = sadd.s32 %s31, %s823
          %s825 = smul.addr %s824, 64
          %s826 = scalar_lea.hbm %s2, %s825
          %s828 = sshll.u32 %s808, 4
          %s829 = int_to_ptr.vmem [resolvable:$true] %s828
          %831 = dma.vmem_to_hbm [thread:$0]  %s829, 64, %s826, %s805
        $region44: #{resnet_block_forward.7} parent=27 // pred_fallthru
          _
        // Predicated region
        $region45: #{resnet_block_forward.7} parent=27 // pred_check
          %p832 = pneg %p131
        $region46: #{resnet_block_forward.7} parent=27 // pred_check_branch
          %834 = sbr.rel (%p832) target = $region48
        $region47: #{resnet_block_forward.7} parent=27 // pred_region
          %s836 = ssub.s32 16, 16
          %837 = vsyncadd %s810, %s836
          %s838 = smul.addr %s30, 16
          %s839 = scalar_lea.hbm %s3, %s838
          %s841 = sshll.u32 %s812, 4
          %s842 = int_to_ptr.vmem [resolvable:$true] %s841
          %844 = dma.vmem_to_hbm [thread:$0]  %s842, 16, %s839, %s810
        $region48: #{resnet_block_forward.7} parent=27 // pred_fallthru
          _
        // Predicated region
        $region49: #{resnet_block_forward.7} parent=27 // pred_check
          %p845 = pneg %p157
        $region50: #{resnet_block_forward.7} parent=27 // pred_check_branch
          %847 = sbr.rel (%p845) target = $region52
        $region51: #{resnet_block_forward.7} parent=27 // pred_region
          %s849 = ssub.s32 16, 16
          %850 = vsyncadd %s814, %s849
          %s851 = smul.addr %s30, 16
          %s852 = scalar_lea.hbm %s4, %s851
          %s854 = sshll.u32 %s816, 4
          %s855 = int_to_ptr.vmem [resolvable:$true] %s854
          %857 = dma.vmem_to_hbm [thread:$0]  %s855, 16, %s852, %s814
        $region52: #{resnet_block_forward.7} parent=27 // pred_fallthru
          _
      $region28: #{resnet_block_forward.7} parent=5 // pred_fallthru
        _
      %p858 = scmp.le.s32.totalorder 2, %s21
      // Predicated region
      $region53: #{resnet_block_forward.7} parent=5 // pred_check
        %p859 = pneg %p858
      $region54: #{resnet_block_forward.7} parent=5 // pred_check_branch
        %861 = sbr.rel (%p859) target = $region56
      $region55: #{resnet_block_forward.7} parent=5 // pred_region
        %s862 = ssub.s32 %s21, 2
        // Predicated region
        $region57: #{resnet_block_forward.7} parent=55 // pred_check
          %p863 = pneg %p111
        $region58: #{resnet_block_forward.7} parent=55 // pred_check_branch
          %865 = sbr.rel (%p863) target = $region60
        $region59: #{resnet_block_forward.7} parent=55 // pred_region
          %s866 = sand.u32 %s96, 1
          %s867 = scalar_lea.sflag [#allocation4], %s866
          %s868 = sand.u32 %s96, 1
          %s869 = smul.addr %s868, 4
          %s870 = scalar_lea.vmem [#allocation7], %s869
          %871 = dma.done %s867, 64
        $region60: #{resnet_block_forward.7} parent=55 // pred_fallthru
          _
        // Predicated region
        $region61: #{resnet_block_forward.7} parent=55 // pred_check
          %p872 = pneg %p137
        $region62: #{resnet_block_forward.7} parent=55 // pred_check_branch
          %874 = sbr.rel (%p872) target = $region64
        $region63: #{resnet_block_forward.7} parent=55 // pred_region
          %s875 = sand.u32 %s27, 1
          %s876 = scalar_lea.sflag [#allocation9], %s875
          %s877 = sand.u32 %s122, 1
          %s878 = scalar_lea.vmem [#allocation8], %s877
          %879 = dma.done %s876, 16
        $region64: #{resnet_block_forward.7} parent=55 // pred_fallthru
          _
        // Predicated region
        $region65: #{resnet_block_forward.7} parent=55 // pred_check
          %p880 = pneg %p163
        $region66: #{resnet_block_forward.7} parent=55 // pred_check_branch
          %882 = sbr.rel (%p880) target = $region68
        $region67: #{resnet_block_forward.7} parent=55 // pred_region
          %s883 = sand.u32 %s27, 1
          %s884 = scalar_lea.sflag [#allocation9], %s883
          %s885 = sand.u32 %s148, 1
          %s886 = scalar_lea.vmem [#allocation10], %s885
          %887 = dma.done %s884, 16
        $region68: #{resnet_block_forward.7} parent=55 // pred_fallthru
          _
      $region56: #{resnet_block_forward.7} parent=5 // pred_fallthru
        _
    $region6: #{resnet_block_forward.7} parent=1 // loop_footer
      %s25 = sadd.s32 1, %s21
    $region7: #{resnet_block_forward.7} parent=1 // loop_footer_branch
      %20 = sbr.rel target = $region3
    $region8: #{resnet_block_forward.7} parent=1 // loop_exit
      _
    %888 = vsyncpa [#allocation3], 1
    %s889 = scalar_lea.sflag [#allocation3], 1
    %890 = vsyncpa %s889, 1
    %891 = vsyncpa [#allocation6], 1
    %892 = vsyncpa [#allocation4], 1
    %s893 = scalar_lea.sflag [#allocation4], 1
    %894 = vsyncpa %s893, 1
    %895 = vsyncpa [#allocation9], 1
    %s896 = scalar_lea.sflag [#allocation9], 1
    %897 = vsyncpa %s896, 1

// kernel: resnet_block_forward.9
$region0: #{resnet_block_forward.9}
  #allocation0 [shape = 'u32[]', space=smem, size = 0x4, offset = 0x4, fixed_abs, tag = 'smem constant byte address 0x4 - core index']
  #allocation1 [shape = 'u32[144,128]{1,0:T(1,128)}', space=vmem, size = 0x12000, scoped, tag = 'internal scratch']
  %s0 = inlined_call_operand.hbm [shape: bf16[8,128], index: 0, kind: input, shape index: {}]
  %s1 = inlined_call_operand.hbm [shape: f32[1,128], index: 1, kind: input, shape index: {}]
  %s2 = inlined_call_operand.hbm [shape: f32[1,128], index: 2, kind: input, shape index: {}]
  %s3 = inlined_call_operand.hbm [shape: bf16[8,128], index: 3, kind: input, shape index: {}]
  %s4 = inlined_call_operand.hbm [shape: f32[1,128], index: 4, kind: input, shape index: {}]
  %s5 = inlined_call_operand.hbm [shape: f32[1,128], index: 5, kind: input, shape index: {}]
  %s6 = inlined_call_operand.hbm [shape: f32[8,128], index: 6, kind: output, shape index: {}]
  %s7 = sld [smem:[#allocation0]]
  $region58: #{resnet_block_forward.9} parent=0
    _
  %s9 = ssub.s32 1, %s7
  %s10 = scalar_select 0, %s9, %s7
  $region1: #{resnet_block_forward.9} parent=0
    #allocation2 [shape = 'u8[2048]{0}', space=vmem, size = 0x800, scoped, tag = 'input window, operand 0, single buffered']
    #allocation3 [shape = 's32[1]{0}', space=sflag, size = 0x4, scoped, tag = 'scoped memory for resnet_block_forward.9']
    #allocation4 [shape = 's32[1]{0}', space=sflag, size = 0x4, scoped, tag = 'scoped memory for resnet_block_forward.9']
    #allocation5 [shape = 'u8[512]{0}', space=vmem, size = 0x400, scoped, tag = 'input window, operand 1, single buffered']
    #allocation6 [shape = 's32[1]{0}', space=sflag, size = 0x4, scoped, tag = 'scoped memory for resnet_block_forward.9']
    #allocation7 [shape = 'u8[512]{0}', space=vmem, size = 0x400, scoped, tag = 'input window, operand 2, single buffered']
    #allocation8 [shape = 'u8[2048]{0}', space=vmem, size = 0x800, scoped, tag = 'input window, operand 3, single buffered']
    #allocation9 [shape = 's32[1]{0}', space=sflag, size = 0x4, scoped, tag = 'scoped memory for resnet_block_forward.9']
    #allocation10 [shape = 'u8[512]{0}', space=vmem, size = 0x400, scoped, tag = 'input window, operand 4, single buffered']
    #allocation11 [shape = 'u8[512]{0}', space=vmem, size = 0x400, scoped, tag = 'input window, operand 5, single buffered']
    #allocation12 [shape = 's32[1]{0}', space=sflag, size = 0x4, scoped, tag = 'scoped memory for resnet_block_forward.9']
    #allocation13 [shape = 'u8[4096]{0}', space=vmem, size = 0x1000, scoped, tag = 'output window, operand 0, single buffered']
    %11 = vsyncpa [#allocation3], 0
    %12 = vsyncpa [#allocation6], 0
    %13 = vsyncpa [#allocation9], 0
    %14 = vsyncpa [#allocation12], 0
    %15 = vsyncpa [#allocation4], 0
    // Predicated region
    $region2: #{resnet_block_forward.9} parent=1 // pred_check
      _
    $region3: #{resnet_block_forward.9} parent=1 // pred_check_branch
      %17 = sbr.rel (0) target = $region5
    $region4: #{resnet_block_forward.9} parent=1 // pred_region
      %s19 = ssub.s32 64, 64
      %20 = vsyncadd [#allocation3], %s19
      %s22 = sshll.u32 [#allocation2], 4
      %s23 = int_to_ptr.vmem [resolvable:$true] %s22
      %25 = dma.hbm_to_vmem [thread:$0]  %s0, 64, %s23, [#allocation3]
    $region5: #{resnet_block_forward.9} parent=1 // pred_fallthru
      _
    // Predicated region
    $region6: #{resnet_block_forward.9} parent=1 // pred_check
      _
    $region7: #{resnet_block_forward.9} parent=1 // pred_check_branch
      %27 = sbr.rel (0) target = $region9
    $region8: #{resnet_block_forward.9} parent=1 // pred_region
      %s29 = ssub.s32 16, 16
      %30 = vsyncadd [#allocation6], %s29
      %s32 = sshll.u32 [#allocation5], 4
      %s33 = int_to_ptr.vmem [resolvable:$true] %s32
      %35 = dma.hbm_to_vmem [thread:$0]  %s1, 16, %s33, [#allocation6]
    $region9: #{resnet_block_forward.9} parent=1 // pred_fallthru
      _
    // Predicated region
    $region10: #{resnet_block_forward.9} parent=1 // pred_check
      _
    $region11: #{resnet_block_forward.9} parent=1 // pred_check_branch
      %37 = sbr.rel (0) target = $region13
    $region12: #{resnet_block_forward.9} parent=1 // pred_region
      %s39 = ssub.s32 16, 16
      %40 = vsyncadd [#allocation6], %s39
      %s42 = sshll.u32 [#allocation7], 4
      %s43 = int_to_ptr.vmem [resolvable:$true] %s42
      %45 = dma.hbm_to_vmem [thread:$0]  %s2, 16, %s43, [#allocation6]
    $region13: #{resnet_block_forward.9} parent=1 // pred_fallthru
      _
    // Predicated region
    $region14: #{resnet_block_forward.9} parent=1 // pred_check
      _
    $region15: #{resnet_block_forward.9} parent=1 // pred_check_branch
      %47 = sbr.rel (0) target = $region17
    $region16: #{resnet_block_forward.9} parent=1 // pred_region
      %s49 = ssub.s32 64, 64
      %50 = vsyncadd [#allocation9], %s49
      %s52 = sshll.u32 [#allocation8], 4
      %s53 = int_to_ptr.vmem [resolvable:$true] %s52
      %55 = dma.hbm_to_vmem [thread:$0]  %s3, 64, %s53, [#allocation9]
    $region17: #{resnet_block_forward.9} parent=1 // pred_fallthru
      _
    // Predicated region
    $region18: #{resnet_block_forward.9} parent=1 // pred_check
      _
    $region19: #{resnet_block_forward.9} parent=1 // pred_check_branch
      %57 = sbr.rel (0) target = $region21
    $region20: #{resnet_block_forward.9} parent=1 // pred_region
      %s59 = ssub.s32 16, 16
      %60 = vsyncadd [#allocation9], %s59
      %s62 = sshll.u32 [#allocation10], 4
      %s63 = int_to_ptr.vmem [resolvable:$true] %s62
      %65 = dma.hbm_to_vmem [thread:$0]  %s4, 16, %s63, [#allocation9]
    $region21: #{resnet_block_forward.9} parent=1 // pred_fallthru
      _
    // Predicated region
    $region22: #{resnet_block_forward.9} parent=1 // pred_check
      _
    $region23: #{resnet_block_forward.9} parent=1 // pred_check_branch
      %67 = sbr.rel (0) target = $region25
    $region24: #{resnet_block_forward.9} parent=1 // pred_region
      %s69 = ssub.s32 16, 16
      %70 = vsyncadd [#allocation12], %s69
      %s72 = sshll.u32 [#allocation11], 4
      %s73 = int_to_ptr.vmem [resolvable:$true] %s72
      %75 = dma.hbm_to_vmem [thread:$0]  %s5, 16, %s73, [#allocation12]
    $region25: #{resnet_block_forward.9} parent=1 // pred_fallthru
      _
    // Predicated region
    $region26: #{resnet_block_forward.9} parent=1 // pred_check
      _
    $region27: #{resnet_block_forward.9} parent=1 // pred_check_branch
      %77 = sbr.rel (0) target = $region29
    $region28: #{resnet_block_forward.9} parent=1 // pred_region
      %78 = dma.done [#allocation3], 64
    $region29: #{resnet_block_forward.9} parent=1 // pred_fallthru
      _
    // Predicated region
    $region30: #{resnet_block_forward.9} parent=1 // pred_check
      _
    $region31: #{resnet_block_forward.9} parent=1 // pred_check_branch
      %80 = sbr.rel (0) target = $region33
    $region32: #{resnet_block_forward.9} parent=1 // pred_region
      %81 = dma.done [#allocation6], 16
    $region33: #{resnet_block_forward.9} parent=1 // pred_fallthru
      _
    // Predicated region
    $region34: #{resnet_block_forward.9} parent=1 // pred_check
      _
    $region35: #{resnet_block_forward.9} parent=1 // pred_check_branch
      %83 = sbr.rel (0) target = $region37
    $region36: #{resnet_block_forward.9} parent=1 // pred_region
      %84 = dma.done [#allocation6], 16
    $region37: #{resnet_block_forward.9} parent=1 // pred_fallthru
      _
    // Predicated region
    $region38: #{resnet_block_forward.9} parent=1 // pred_check
      _
    $region39: #{resnet_block_forward.9} parent=1 // pred_check_branch
      %86 = sbr.rel (0) target = $region41
    $region40: #{resnet_block_forward.9} parent=1 // pred_region
      %87 = dma.done [#allocation9], 64
    $region41: #{resnet_block_forward.9} parent=1 // pred_fallthru
      _
    // Predicated region
    $region42: #{resnet_block_forward.9} parent=1 // pred_check
      _
    $region43: #{resnet_block_forward.9} parent=1 // pred_check_branch
      %89 = sbr.rel (0) target = $region45
    $region44: #{resnet_block_forward.9} parent=1 // pred_region
      %90 = dma.done [#allocation9], 16
    $region45: #{resnet_block_forward.9} parent=1 // pred_fallthru
      _
    // Predicated region
    $region46: #{resnet_block_forward.9} parent=1 // pred_check
      _
    $region47: #{resnet_block_forward.9} parent=1 // pred_check_branch
      %92 = sbr.rel (0) target = $region49
    $region48: #{resnet_block_forward.9} parent=1 // pred_region
      %93 = dma.done [#allocation12], 16
    $region49: #{resnet_block_forward.9} parent=1 // pred_fallthru
      _
    %v94 = vld [vmem:[#allocation2] sm:$0xf]
    %v95 = vunpack.c.l.bf16 %v94
    %v96 = vld [vmem:[#allocation5] sm:$0x1]
    %v98 = vlaneseq
    %v99 = vshrl.u32 %v98, 7
    %v100 = vsub.s32 0, %v99
    %v101 = vrot.slane %v96, %v100
    %v103 = vmul.f32 %v95, %v101
    %v104 = vld [vmem:[#allocation7] sm:$0x1]
    %v106 = vlaneseq
    %v107 = vshrl.u32 %v106, 7
    %v108 = vsub.s32 0, %v107
    %v109 = vrot.slane %v104, %v108
    %v111 = vadd.f32 %v103, %v109
    %v112 = vld [vmem:[#allocation8] sm:$0xf]
    %v113 = vunpack.c.l.bf16 %v112
    %v114 = vld [vmem:[#allocation10] sm:$0x1]
    %v116 = vlaneseq
    %v117 = vshrl.u32 %v116, 7
    %v118 = vsub.s32 0, %v117
    %v119 = vrot.slane %v114, %v118
    %v121 = vmul.f32 %v113, %v119
    %v122 = vadd.f32 %v111, %v121
    %v123 = vld [vmem:[#allocation11] sm:$0x1]
    %v125 = vlaneseq
    %v126 = vshrl.u32 %v125, 7
    %v127 = vsub.s32 0, %v126
    %v128 = vrot.slane %v123, %v127
    %v130 = vadd.f32 %v122, %v128
    %v131 = vmax.f32 %v130, 0.0
    %132 = vst [vmem:[#allocation13] sm:$0xff] %v131
    // Predicated region
    $region50: #{resnet_block_forward.9} parent=1 // pred_check
      _
    $region51: #{resnet_block_forward.9} parent=1 // pred_check_branch
      %134 = sbr.rel (0) target = $region53
    $region52: #{resnet_block_forward.9} parent=1 // pred_region
      %s136 = ssub.s32 128, 128
      %137 = vsyncadd [#allocation4], %s136
      %s139 = sshll.u32 [#allocation13], 4
      %s140 = int_to_ptr.vmem [resolvable:$true] %s139
      %142 = dma.vmem_to_hbm [thread:$0]  %s140, 128, %s6, [#allocation4]
    $region53: #{resnet_block_forward.9} parent=1 // pred_fallthru
      _
    // Predicated region
    $region54: #{resnet_block_forward.9} parent=1 // pred_check
      _
    $region55: #{resnet_block_forward.9} parent=1 // pred_check_branch
      %144 = sbr.rel (0) target = $region57
    $region56: #{resnet_block_forward.9} parent=1 // pred_region
      %145 = dma.done [#allocation4], 128
    $region57: #{resnet_block_forward.9} parent=1 // pred_fallthru
      _
    %146 = vsyncpa [#allocation3], 1
    %147 = vsyncpa [#allocation6], 1
    %148 = vsyncpa [#allocation9], 1
    %149 = vsyncpa [#allocation12], 1
    %150 = vsyncpa [#allocation4], 1

</llo_original>
